<compile_context>
chip_gen: v7x
topology: tpu7x:2x2x1
jax: 0.10.0
libtpu: 0.0.40
codegen_flags: <defaults>
</compile_context>

<pallas_src>
import functools
import math

import jax
import jax.numpy as jnp
from jax.experimental import pallas as pl
from jax.experimental.pallas import tpu as pltpu


# ----------------------------------------------------------------------------
# Pallas kernel 1: MiniPointNet, tiled over groups: (TG*K, Cin) -> (TG, Dp)
# ----------------------------------------------------------------------------
def mini_pointnet_kernel(pts_ref, w1, b1, s1, t1, w2, b2, w3a, w3b, b3, s2, t2,
                         w4, b4, out_ref, *, groups_per_tile, group_size,
                         in_channels):
    TG, K, Cin = groups_per_tile, group_size, in_channels
    x = pts_ref[...]                                                   # (TG*K, Cin) f32

    # first_conv Conv1d(Cin,128,1): Cin is tiny -> VPU broadcast FMAs, not MXU.
    w1v = w1[...]
    f = b1[...]
    for c in range(Cin):
        f = f + x[:, c:c + 1] * w1v[c:c + 1, :]                        # (TG*K, 128)
    # folded eval BatchNorm affine + ReLU, then Conv1d(128,256,1)
    f = jnp.maximum(f * s1[...] + t1[...], 0.0)
    f = jnp.dot(f.astype(jnp.bfloat16), w2[...],
                preferred_element_type=jnp.float32) + b2[...]          # (TG*K, 256)

    # per-group global max feature (K is a multiple of 8 -> whole-sublane reshape)
    g = jnp.max(f.reshape(TG, K, 256), axis=1)                         # (TG, 256)

    # second_conv on the [global ; local] concat, done algebraically:
    #   cat([g, f]) @ w3  ==  broadcast(g @ w3[:256]) + f @ w3[256:]
    hg = jnp.dot(g.astype(jnp.bfloat16), w3a[...],
                 preferred_element_type=jnp.float32)                   # (TG, 512)
    hf = jnp.dot(f.astype(jnp.bfloat16), w3b[...],
                 preferred_element_type=jnp.float32)                   # (TG*K, 512)
    h = hf.reshape(TG, K, 512) + hg[:, None, :] + b3[...]
    h = jnp.maximum(h * s2[...] + t2[...], 0.0)                        # (TG, K, 512)

    hh = jnp.dot(h.reshape(TG * K, 512).astype(jnp.bfloat16), w4[...],
                 preferred_element_type=jnp.float32) + b4[...]         # (TG*K, Dp)
    out_ref[...] = jnp.max(hh.reshape(TG, K, -1), axis=1)              # (TG, Dp) lane-dense


def _pick_group_tile(num_groups, group_size, requested=None):
    if requested is not None:
        tg = requested
    else:
        tg = max(8, ((2048 // max(group_size, 1)) // 8) * 8)           # ~<=2048 rows / tile
    tg = min(tg, num_groups)
    # tile must divide the group count and be a multiple of 8 (sublane rule),
    # otherwise fall back to one full tile.
    if num_groups % tg != 0 or (tg % 8 != 0 and tg != num_groups):
        tg = num_groups
    return tg


def mini_pointnet(groups_flat, p, *, group_tile=None):
    BG, K, Cin = groups_flat.shape
    D = p["w4"].shape[1]
    Dp = ((D + 127) // 128) * 128                 # lane-dense output stores
    TG = _pick_group_tile(BG, K, group_tile)

    w4 = jnp.pad(p["w4"], ((0, 0), (0, Dp - D)))
    b4 = jnp.pad(p["b4"], ((0, 0), (0, Dp - D)))
    weights = [p["w1"], p["b1"], p["s1"], p["t1"], p["w2"], p["b2"],
               p["w3a"], p["w3b"], p["b3"], p["s2"], p["t2"], w4, b4]

    def const_spec(a):
        # constant block index across the group-tile axis -> weights stay resident
        return pl.BlockSpec(a.shape, lambda i, nd=a.ndim: (0,) * nd)

    kern = functools.partial(mini_pointnet_kernel, groups_per_tile=TG,
                             group_size=K, in_channels=Cin)
    out = pl.pallas_call(
        kern,
        out_shape=jax.ShapeDtypeStruct((BG, Dp), jnp.float32),
        grid=(BG // TG,),
        in_specs=[pl.BlockSpec((TG * K, Cin), lambda i: (i, 0))]
                 + [const_spec(w) for w in weights],
        out_specs=pl.BlockSpec((TG, Dp), lambda i: (i, 0)),
        compiler_params=pltpu.CompilerParams(
            dimension_semantics=("parallel",),            # megacore-shardable on v7x
            vmem_limit_bytes=64 * 1024 * 1024),           # re-derive on v7x (64 MiB phys)
    )(groups_flat.reshape(BG * K, Cin), *weights)
    return out[:, :D]


# ----------------------------------------------------------------------------
# Pallas kernel 2: fused Transformer stack — grid=(batch_splits, L)
# ----------------------------------------------------------------------------
def fused_transformer_kernel(x_ref, bias_ref, ln1g, ln1b, wqkv, wo, bo,
                             ln2g, ln2b, wf1, bf1, wf2, bf2, out_ref,
                             *, batch_per_block, seq, num_heads, scale):
    Bb, Np, H = batch_per_block, seq, num_heads
    BNb, C = out_ref.shape
    hd = C // H

    # Layer 0 of this batch slice: load the initial tokens into the resident block.
    @pl.when(pl.program_id(1) == 0)
    def _():
        out_ref[...] = x_ref[...]

    x = out_ref[...]                                                   # (BNb, C) f32

    # ---- LayerNorm 1 (eps=1e-5, biased variance, matches nn.LayerNorm) ----
    mu = jnp.mean(x, axis=-1, keepdims=True)
    var = jnp.mean(jnp.square(x - mu), axis=-1, keepdims=True)
    xn = (x - mu) * jax.lax.rsqrt(var + 1e-5) * ln1g[0] + ln1b[0]

    # ---- Fused QKV projection: one (BNb, C) @ (C, 3C) bf16 matmul ----
    qkv = jnp.dot(xn.astype(jnp.bfloat16), wqkv[0],
                  preferred_element_type=jnp.float32)                  # (BNb, 3C) f32
    qkv3 = qkv.reshape(Bb, Np, 3 * C)                                  # leading split (Np % 8 == 0)
    bias = bias_ref[...].astype(jnp.float32)                           # (Bb, H, Np, Np)
    wo_h = wo[0]                                                       # (H, hd, C) bf16

    # ---- Attention: batch handled by batched einsums, small static head loop,
    #      head concat folded into per-head output projections, bf16 matmuls ----
    attn = None
    for h in range(H):
        c0 = h * hd
        q = qkv3[:, :, c0:c0 + hd].astype(jnp.bfloat16)                # (Bb, Np, hd)
        k = qkv3[:, :, C + c0:C + c0 + hd].astype(jnp.bfloat16)
        v = qkv3[:, :, 2 * C + c0:2 * C + c0 + hd].astype(jnp.bfloat16)
        s = jnp.einsum('bqd,bkd->bqk', q, k,
                       preferred_element_type=jnp.float32)             # (Bb, Np, Np)
        s = s * scale + bias[:, h]
        s = s - jnp.max(s, axis=-1, keepdims=True)
        e = jnp.exp(s)
        p_attn = e * pl.reciprocal(jnp.sum(e, axis=-1, keepdims=True),
                                   approx=True)
        ctx = jnp.einsum('bqk,bkd->bqd', p_attn.astype(jnp.bfloat16), v,
                         preferred_element_type=jnp.float32)           # (Bb, Np, hd)
        contrib = jnp.dot(ctx.reshape(BNb, hd).astype(jnp.bfloat16), wo_h[h],
                          preferred_element_type=jnp.float32)          # (BNb, C)
        attn = contrib if attn is None else attn + contrib
    x1 = x + attn + bo[0]                                              # residual (dropout = identity, eval)

    # ---- LayerNorm 2 + MLP ----
    mu2 = jnp.mean(x1, axis=-1, keepdims=True)
    var2 = jnp.mean(jnp.square(x1 - mu2), axis=-1, keepdims=True)
    xn2 = (x1 - mu2) * jax.lax.rsqrt(var2 + 1e-5) * ln2g[0] + ln2b[0]
    h1 = jnp.dot(xn2.astype(jnp.bfloat16), wf1[0],
                 preferred_element_type=jnp.float32) + bf1[0]
    # TODO(synk): PyTorch nn.GELU() uses exact erf GELU; tanh approximation used for Mosaic-safe lowering.
    cst = math.sqrt(2.0 / math.pi)
    h1 = 0.5 * h1 * (1.0 + jnp.tanh(cst * (h1 + 0.044715 * h1 * h1 * h1)))
    h2 = jnp.dot(h1.astype(jnp.bfloat16), wf2[0],
                 preferred_element_type=jnp.float32) + bf2[0]
    out_ref[...] = x1 + h2


def fused_transformer(x_flat, bias, bp, *, num_layers, batch, seq, num_heads,
                      num_batch_splits=None):
    BN, C = x_flat.shape
    hd = C // num_heads
    scale = hd ** (-0.5)
    nsplit = num_batch_splits
    if nsplit is None:
        nsplit = 2 if batch % 2 == 0 else 1    # v7x: one batch half per TensorCore
    if batch % nsplit != 0:
        nsplit = 1
    bb = batch // nsplit
    bn_blk = bb * seq

    names = ("ln1g", "ln1b", "wqkv", "wo", "bo",
             "ln2g", "ln2b", "wf1", "bf1", "wf2", "bf2")
    weights = [bp[n] for n in names]

    def layer_spec(a):
        # one layer of stacked weights per grid step; pipeline prefetches layer l+1
        return pl.BlockSpec((1,) + a.shape[1:],
                            lambda p, l, nd=a.ndim - 1: (l,) + (0,) * nd)

    kern = functools.partial(fused_transformer_kernel, batch_per_block=bb,
                             seq=seq, num_heads=num_heads, scale=scale)
    return pl.pallas_call(
        kern,
        out_shape=jax.ShapeDtypeStruct((BN, C), jnp.float32),
        grid=(nsplit, num_layers),
        in_specs=[pl.BlockSpec((bn_blk, C), lambda p, l: (p, 0)),
                  pl.BlockSpec((bb,) + bias.shape[1:],
                               lambda p, l: (p, 0, 0, 0))]
                 + [layer_spec(w) for w in weights],
        # constant block index across the layer axis -> tokens stay resident in VMEM
        out_specs=pl.BlockSpec((bn_blk, C), lambda p, l: (p, 0)),
        compiler_params=pltpu.CompilerParams(
            dimension_semantics=("parallel", "arbitrary"),
            vmem_limit_bytes=64 * 1024 * 1024),
    )(x_flat, bias, *weights)


# ----------------------------------------------------------------------------
# Plain-JAX glue: grouping (FPS + KNN gather) and ALiBi positional bias
# (data-dependent gathers -> kept outside Pallas)
# ----------------------------------------------------------------------------
def farthest_point_sampling(xyz, num_samples, start_idx):
    # xyz: (N, 3) -> indices (num_samples,)
    N = xyz.shape[0]

    def body(i, state):
        min_d2, idxs = state
        last = xyz[idxs[i - 1]]
        d2 = jnp.sum((xyz - last) ** 2, axis=-1)
        min_d2 = jnp.minimum(min_d2, d2)
        idxs = idxs.at[i].set(jnp.argmax(min_d2).astype(jnp.int32))
        return (min_d2, idxs)

    idxs0 = jnp.zeros((num_samples,), jnp.int32).at[0].set(start_idx)
    min_d2 = jnp.full((N,), jnp.inf, jnp.float32)
    _, idxs = jax.lax.fori_loop(1, num_samples, body, (min_d2, idxs0))
    return idxs


def group_points(points, num_groups, group_size, start_idx):
    # points: (B, N, C); first 3 channels are XYZ
    xyz = points[..., :3]
    fps_idx = jax.vmap(lambda p, s: farthest_point_sampling(p, num_groups, s))(xyz, start_idx)
    centers = jax.vmap(lambda p, i: p[i])(xyz, fps_idx)                       # (B, G, 3)
    d2 = jnp.sum((centers[:, :, None, :] - xyz[:, None, :, :]) ** 2, axis=-1)  # (B, G, N)
    _, knn_idx = jax.lax.top_k(-d2, group_size)                               # nearest first
    grouped = jax.vmap(lambda p, i: p[i])(points, knn_idx)                    # (B, G, K, C)
    grouped = grouped.at[..., :3].add(-centers[:, :, None, :])                # center groups
    return grouped, centers


def alibi_pos_bias(centers, num_heads, n_pad):
    # Returns (B, H, n_pad, n_pad) bf16: CLS row/col = 0 (matches F.pad), pad key
    # columns masked with a large negative bias so real tokens never attend to pads.
    B, G, _ = centers.shape
    # slope formula matches the reference module literally: 2 ** (-2 ** -(i + 3))
    slopes = jnp.array([2.0 ** (-(2.0 ** (-(i + 3)))) for i in range(num_heads)],
                       jnp.float32)
    diff = centers[:, :, None, :] - centers[:, None, :, :]
    dist = jnp.sqrt(jnp.maximum(jnp.sum(diff * diff, axis=-1), 0.0))          # (B, G, G)
    alibi = -dist[:, None, :, :] * slopes[None, :, None, None]                # (B, H, G, G)
    n_valid = G + 1
    bias = jnp.zeros((B, num_heads, n_pad, n_pad), jnp.float32)
    bias = bias.at[:, :, 1:n_valid, 1:n_valid].set(alibi)
    col = jnp.arange(n_pad)
    bias = jnp.where(col[None, None, None, :] >= n_valid, -1e9, bias)
    return bias.astype(jnp.bfloat16)            # streamed / resident in bf16


# ----------------------------------------------------------------------------
# Parameter init (deterministic, synthetic) and full forward pass
# ----------------------------------------------------------------------------
def init_params(key, input_dim, encoder_dim, num_heads, num_layers):
    keys = iter(jax.random.split(key, 64))
    bf16 = jnp.bfloat16

    def rnd(shape, scale=0.02):
        return scale * jax.random.normal(next(keys), shape, jnp.float32)

    mini = dict(
        w1=rnd((input_dim, 128), 0.2), b1=rnd((1, 128)),
        s1=1.0 + rnd((1, 128)), t1=rnd((1, 128)),          # folded eval BatchNorm affine
        w2=rnd((128, 256), 0.05).astype(bf16), b2=rnd((1, 256)),
        w3a=rnd((256, 512), 0.05).astype(bf16),            # rows acting on global feature
        w3b=rnd((256, 512), 0.05).astype(bf16),            # rows acting on local feature
        b3=rnd((1, 512)),
        s2=1.0 + rnd((1, 512)), t2=rnd((1, 512)),
        w4=rnd((512, encoder_dim), 0.05).astype(bf16), b4=rnd((1, encoder_dim)),
    )
    L, C = num_layers, encoder_dim
    hd = C // num_heads
    blocks = dict(                                           # per-layer weights stacked on L
        ln1g=jnp.ones((L, 1, C), jnp.float32),
        ln1b=jnp.zeros((L, 1, C), jnp.float32),
        wqkv=rnd((L, C, 3 * C), 0.05).astype(bf16),          # fused [Q|K|V], qkv_bias=False
        wo=rnd((L, C, C), 0.05).reshape(L, num_heads, hd, C).astype(bf16),  # per-head stacked
        bo=rnd((L, 1, C)),
        ln2g=jnp.ones((L, 1, C), jnp.float32),
        ln2b=jnp.zeros((L, 1, C), jnp.float32),
        wf1=rnd((L, C, 4 * C), 0.05).astype(bf16), bf1=rnd((L, 1, 4 * C)),
        wf2=rnd((L, 4 * C, C), 0.05).astype(bf16), bf2=rnd((L, 1, C)),
    )
    cls = 0.02 * jax.random.truncated_normal(next(keys), -2.0, 2.0,
                                             (1, 1, encoder_dim), jnp.float32)
    return dict(mini=mini, blocks=blocks, cls=cls)


def point_mae_encoder(points, params, *, num_groups, group_size, num_heads,
                      start_idx, group_tile=None, num_batch_splits=None):
    B, N, Cin = points.shape
    grouped, centers = group_points(points, num_groups, group_size, start_idx)
    G, K = num_groups, group_size

    tokens = mini_pointnet(grouped.reshape(B * G, K, Cin), params["mini"],
                           group_tile=group_tile)                         # (B*G, D)
    D = tokens.shape[-1]
    tokens = tokens.reshape(B, G, D)
    cls = jnp.broadcast_to(params["cls"], (B, 1, D))
    tokens = jnp.concatenate([cls, tokens], axis=1)                       # (B, G+1, D)

    n_valid = G + 1
    n_pad = ((n_valid + 7) // 8) * 8                                      # sublane-align seq
    tokens_p = jnp.zeros((B, n_pad, D), jnp.float32).at[:, :n_valid].set(tokens)
    bias = alibi_pos_bias(centers, num_heads, n_pad)                      # (B, H, Np, Np) bf16

    num_layers = params["blocks"]["wqkv"].shape[0]
    out = fused_transformer(
        tokens_p.reshape(B * n_pad, D), bias, params["blocks"],
        num_layers=num_layers, batch=B, seq=n_pad, num_heads=num_heads,
        num_batch_splits=num_batch_splits)

    tokens_out = out.reshape(B, n_pad, D)[:, :n_valid]
    # Eval mode: training-only random token masking branch is skipped.
    return tokens_out, grouped


if __name__ == "__main__":
    key = jax.random.PRNGKey(0)
    k_pts, k_start, k_par = jax.random.split(key, 3)

    B, N, C_in = 2, 128, 3
    num_groups, group_size = 8, 16
    num_heads, num_layers, encoder_dim = 4, 2, 64

    points = jax.random.normal(k_pts, (B, N, C_in), jnp.float32)
    start_idx = jax.random.randint(k_start, (B,), 0, N)   # random_start_point=True (deterministic key)
    params = init_params(k_par, C_in, encoder_dim, num_heads, num_layers)

    tokens, patches = point_mae_encoder(
        points, params,
        num_groups=num_groups, group_size=group_size,
        num_heads=num_heads, start_idx=start_idx,
        group_tile=8)            # toy: 16 groups -> grid=(2,) exercises the tiled pipeline
    jax.block_until_ready((tokens, patches))

    assert tokens.shape == (B, num_groups + 1, encoder_dim)
    assert patches.shape == (B, num_groups, group_size, C_in)
    assert bool(jnp.all(jnp.isfinite(tokens))) and bool(jnp.all(jnp.isfinite(patches)))
    print("KERNEL_OK")
</pallas_src>

<mosaic_0001>
module attributes {stable_mosaic.version = 11 : i64} {
  func.func @mini_pointnet_kernel(%arg0: i32, %arg1: memref<128x3xf32, #tpu.memory_space<vmem>>, %arg2: memref<3x128xf32, #tpu.memory_space<vmem>>, %arg3: memref<1x128xf32, #tpu.memory_space<vmem>>, %arg4: memref<1x128xf32, #tpu.memory_space<vmem>>, %arg5: memref<1x128xf32, #tpu.memory_space<vmem>>, %arg6: memref<128x256xbf16, #tpu.memory_space<vmem>>, %arg7: memref<1x256xf32, #tpu.memory_space<vmem>>, %arg8: memref<256x512xbf16, #tpu.memory_space<vmem>>, %arg9: memref<256x512xbf16, #tpu.memory_space<vmem>>, %arg10: memref<1x512xf32, #tpu.memory_space<vmem>>, %arg11: memref<1x512xf32, #tpu.memory_space<vmem>>, %arg12: memref<1x512xf32, #tpu.memory_space<vmem>>, %arg13: memref<512x128xbf16, #tpu.memory_space<vmem>>, %arg14: memref<1x128xf32, #tpu.memory_space<vmem>>, %arg15: memref<8x128xf32, #tpu.memory_space<vmem>>) attributes {dimension_semantics = [#tpu.dimension_semantics<parallel>], iteration_bounds = array<i64: 2>, scalar_prefetch = 0 : i64, scratch_operands = 0 : i64, tpu.core_type = #tpu.core_type<tc>, window_params = [{transform_indices = @transform_0, window_bounds = array<i64: 128, 3>}, {pipeline_mode = #tpu.pipeline_mode<synchronous>, transform_indices = @transform_1, window_bounds = array<i64: 3, 128>}, {pipeline_mode = #tpu.pipeline_mode<synchronous>, transform_indices = @transform_2, window_bounds = array<i64: 1, 128>}, {pipeline_mode = #tpu.pipeline_mode<synchronous>, transform_indices = @transform_3, window_bounds = array<i64: 1, 128>}, {pipeline_mode = #tpu.pipeline_mode<synchronous>, transform_indices = @transform_4, window_bounds = array<i64: 1, 128>}, {pipeline_mode = #tpu.pipeline_mode<synchronous>, transform_indices = @transform_5, window_bounds = array<i64: 128, 256>}, {pipeline_mode = #tpu.pipeline_mode<synchronous>, transform_indices = @transform_6, window_bounds = array<i64: 1, 256>}, {pipeline_mode = #tpu.pipeline_mode<synchronous>, transform_indices = @transform_7, window_bounds = array<i64: 256, 512>}, {pipeline_mode = #tpu.pipeline_mode<synchronous>, transform_indices = @transform_8, window_bounds = array<i64: 256, 512>}, {pipeline_mode = #tpu.pipeline_mode<synchronous>, transform_indices = @transform_9, window_bounds = array<i64: 1, 512>}, {pipeline_mode = #tpu.pipeline_mode<synchronous>, transform_indices = @transform_10, window_bounds = array<i64: 1, 512>}, {pipeline_mode = #tpu.pipeline_mode<synchronous>, transform_indices = @transform_11, window_bounds = array<i64: 1, 512>}, {pipeline_mode = #tpu.pipeline_mode<synchronous>, transform_indices = @transform_12, window_bounds = array<i64: 512, 128>}, {pipeline_mode = #tpu.pipeline_mode<synchronous>, transform_indices = @transform_13, window_bounds = array<i64: 1, 128>}, {transform_indices = @transform_14, window_bounds = array<i64: 8, 128>}]} {
    %c0 = arith.constant 0 : index
    %c0_0 = arith.constant 0 : index
    %0 = vector.load %arg1[%c0, %c0_0] : memref<128x3xf32, #tpu.memory_space<vmem>>, vector<128x3xf32>
    %c0_1 = arith.constant 0 : index
    %c0_2 = arith.constant 0 : index
    %1 = vector.load %arg2[%c0_1, %c0_2] : memref<3x128xf32, #tpu.memory_space<vmem>>, vector<3x128xf32>
    %c0_3 = arith.constant 0 : index
    %c0_4 = arith.constant 0 : index
    %2 = vector.load %arg3[%c0_3, %c0_4] : memref<1x128xf32, #tpu.memory_space<vmem>>, vector<1x128xf32>
    %3 = vector.extract_strided_slice %0 {offsets = [0, 0], sizes = [128, 1], strides = [1, 1]} : vector<128x3xf32> to vector<128x1xf32>
    %4 = vector.extract_strided_slice %1 {offsets = [0, 0], sizes = [1, 128], strides = [1, 1]} : vector<3x128xf32> to vector<1x128xf32>
    %5 = vector.broadcast %3 : vector<128x1xf32> to vector<128x128xf32>
    %6 = vector.broadcast %4 : vector<1x128xf32> to vector<128x128xf32>
    %7 = arith.mulf %5, %6 : vector<128x128xf32>
    %8 = vector.broadcast %2 : vector<1x128xf32> to vector<128x128xf32>
    %9 = arith.addf %8, %7 : vector<128x128xf32>
    %10 = vector.extract_strided_slice %0 {offsets = [0, 1], sizes = [128, 1], strides = [1, 1]} : vector<128x3xf32> to vector<128x1xf32>
    %11 = vector.extract_strided_slice %1 {offsets = [1, 0], sizes = [1, 128], strides = [1, 1]} : vector<3x128xf32> to vector<1x128xf32>
    %12 = vector.broadcast %10 : vector<128x1xf32> to vector<128x128xf32>
    %13 = vector.broadcast %11 : vector<1x128xf32> to vector<128x128xf32>
    %14 = arith.mulf %12, %13 : vector<128x128xf32>
    %15 = arith.addf %9, %14 : vector<128x128xf32>
    %16 = vector.extract_strided_slice %0 {offsets = [0, 2], sizes = [128, 1], strides = [1, 1]} : vector<128x3xf32> to vector<128x1xf32>
    %17 = vector.extract_strided_slice %1 {offsets = [2, 0], sizes = [1, 128], strides = [1, 1]} : vector<3x128xf32> to vector<1x128xf32>
    %18 = vector.broadcast %16 : vector<128x1xf32> to vector<128x128xf32>
    %19 = vector.broadcast %17 : vector<1x128xf32> to vector<128x128xf32>
    %20 = arith.mulf %18, %19 : vector<128x128xf32>
    %21 = arith.addf %15, %20 : vector<128x128xf32>
    %c0_5 = arith.constant 0 : index
    %c0_6 = arith.constant 0 : index
    %22 = vector.load %arg4[%c0_5, %c0_6] : memref<1x128xf32, #tpu.memory_space<vmem>>, vector<1x128xf32>
    %23 = vector.broadcast %22 : vector<1x128xf32> to vector<128x128xf32>
    %24 = arith.mulf %21, %23 : vector<128x128xf32>
    %c0_7 = arith.constant 0 : index
    %c0_8 = arith.constant 0 : index
    %25 = vector.load %arg5[%c0_7, %c0_8] : memref<1x128xf32, #tpu.memory_space<vmem>>, vector<1x128xf32>
    %26 = vector.broadcast %25 : vector<1x128xf32> to vector<128x128xf32>
    %27 = arith.addf %24, %26 : vector<128x128xf32>
    %cst = arith.constant 0.000000e+00 : f32
    %28 = vector.broadcast %cst : f32 to vector<128x128xf32>
    %29 = arith.maximumf %27, %28 : vector<128x128xf32>
    %30 = arith.truncf %29 : vector<128x128xf32> to vector<128x128xbf16>
    %c0_9 = arith.constant 0 : index
    %c0_10 = arith.constant 0 : index
    %31 = vector.load %arg6[%c0_9, %c0_10] : memref<128x256xbf16, #tpu.memory_space<vmem>>, vector<128x256xbf16>
    %cst_11 = arith.constant dense<0.000000e+00> : vector<128x256xf32>
    %32 = tpu.matmul %30, %31, %cst_11 {dimension_numbers = #tpu.dot_dimension_numbers<[1], [0], [0], [1], [0, 0, 1, 1], [], []>} : vector<128x128xbf16>, vector<128x256xbf16>, vector<128x256xf32> -> vector<128x256xf32>
    %c0_12 = arith.constant 0 : index
    %c0_13 = arith.constant 0 : index
    %33 = vector.load %arg7[%c0_12, %c0_13] : memref<1x256xf32, #tpu.memory_space<vmem>>, vector<1x256xf32>
    %34 = vector.broadcast %33 : vector<1x256xf32> to vector<128x256xf32>
    %35 = arith.addf %32, %34 : vector<128x256xf32>
    %36 = vector.shape_cast %35 : vector<128x256xf32> to vector<8x16x256xf32>
    %cst_14 = arith.constant dense<0xFF800000> : vector<8x256xf32>
    %37 = vector.multi_reduction <maximumf>, %36, %cst_14 [1] : vector<8x16x256xf32> to vector<8x256xf32>
    %38 = arith.truncf %37 : vector<8x256xf32> to vector<8x256xbf16>
    %c0_15 = arith.constant 0 : index
    %c0_16 = arith.constant 0 : index
    %39 = vector.load %arg8[%c0_15, %c0_16] : memref<256x512xbf16, #tpu.memory_space<vmem>>, vector<256x512xbf16>
    %cst_17 = arith.constant dense<0.000000e+00> : vector<8x512xf32>
    %40 = tpu.matmul %38, %39, %cst_17 {dimension_numbers = #tpu.dot_dimension_numbers<[1], [0], [0], [1], [0, 0, 1, 1], [], []>} : vector<8x256xbf16>, vector<256x512xbf16>, vector<8x512xf32> -> vector<8x512xf32>
    %41 = arith.truncf %35 : vector<128x256xf32> to vector<128x256xbf16>
    %c0_18 = arith.constant 0 : index
    %c0_19 = arith.constant 0 : index
    %42 = vector.load %arg9[%c0_18, %c0_19] : memref<256x512xbf16, #tpu.memory_space<vmem>>, vector<256x512xbf16>
    %cst_20 = arith.constant dense<0.000000e+00> : vector<128x512xf32>
    %43 = tpu.matmul %41, %42, %cst_20 {dimension_numbers = #tpu.dot_dimension_numbers<[1], [0], [0], [1], [0, 0, 1, 1], [], []>} : vector<128x256xbf16>, vector<256x512xbf16>, vector<128x512xf32> -> vector<128x512xf32>
    %44 = vector.shape_cast %43 : vector<128x512xf32> to vector<8x16x512xf32>
    %45 = vector.shape_cast %40 : vector<8x512xf32> to vector<8x1x512xf32>
    %46 = vector.broadcast %45 : vector<8x1x512xf32> to vector<8x16x512xf32>
    %47 = arith.addf %44, %46 : vector<8x16x512xf32>
    %c0_21 = arith.constant 0 : index
    %c0_22 = arith.constant 0 : index
    %48 = vector.load %arg10[%c0_21, %c0_22] : memref<1x512xf32, #tpu.memory_space<vmem>>, vector<1x512xf32>
    %49 = vector.shape_cast %48 : vector<1x512xf32> to vector<1x1x512xf32>
    %50 = vector.broadcast %49 : vector<1x1x512xf32> to vector<8x16x512xf32>
    %51 = arith.addf %47, %50 : vector<8x16x512xf32>
    %c0_23 = arith.constant 0 : index
    %c0_24 = arith.constant 0 : index
    %52 = vector.load %arg11[%c0_23, %c0_24] : memref<1x512xf32, #tpu.memory_space<vmem>>, vector<1x512xf32>
    %53 = vector.shape_cast %52 : vector<1x512xf32> to vector<1x1x512xf32>
    %54 = vector.broadcast %53 : vector<1x1x512xf32> to vector<8x16x512xf32>
    %55 = arith.mulf %51, %54 : vector<8x16x512xf32>
    %c0_25 = arith.constant 0 : index
    %c0_26 = arith.constant 0 : index
    %56 = vector.load %arg12[%c0_25, %c0_26] : memref<1x512xf32, #tpu.memory_space<vmem>>, vector<1x512xf32>
    %57 = vector.shape_cast %56 : vector<1x512xf32> to vector<1x1x512xf32>
    %58 = vector.broadcast %57 : vector<1x1x512xf32> to vector<8x16x512xf32>
    %59 = arith.addf %55, %58 : vector<8x16x512xf32>
    %cst_27 = arith.constant 0.000000e+00 : f32
    %60 = vector.broadcast %cst_27 : f32 to vector<8x16x512xf32>
    %61 = arith.maximumf %59, %60 : vector<8x16x512xf32>
    %62 = vector.shape_cast %61 : vector<8x16x512xf32> to vector<128x512xf32>
    %63 = arith.truncf %62 : vector<128x512xf32> to vector<128x512xbf16>
    %c0_28 = arith.constant 0 : index
    %c0_29 = arith.constant 0 : index
    %64 = vector.load %arg13[%c0_28, %c0_29] : memref<512x128xbf16, #tpu.memory_space<vmem>>, vector<512x128xbf16>
    %cst_30 = arith.constant dense<0.000000e+00> : vector<128x128xf32>
    %65 = tpu.matmul %63, %64, %cst_30 {dimension_numbers = #tpu.dot_dimension_numbers<[1], [0], [0], [1], [0, 0, 1, 1], [], []>} : vector<128x512xbf16>, vector<512x128xbf16>, vector<128x128xf32> -> vector<128x128xf32>
    %c0_31 = arith.constant 0 : index
    %c0_32 = arith.constant 0 : index
    %66 = vector.load %arg14[%c0_31, %c0_32] : memref<1x128xf32, #tpu.memory_space<vmem>>, vector<1x128xf32>
    %67 = vector.broadcast %66 : vector<1x128xf32> to vector<128x128xf32>
    %68 = arith.addf %65, %67 : vector<128x128xf32>
    %69 = vector.shape_cast %68 : vector<128x128xf32> to vector<8x16x128xf32>
    %cst_33 = arith.constant dense<0xFF800000> : vector<8x128xf32>
    %70 = vector.multi_reduction <maximumf>, %69, %cst_33 [1] : vector<8x16x128xf32> to vector<8x128xf32>
    %c0_34 = arith.constant 0 : index
    %c0_35 = arith.constant 0 : index
    %71 = vector.load %arg15[%c0_34, %c0_35] : memref<8x128xf32, #tpu.memory_space<vmem>>, vector<8x128xf32>
    tpu.vector_store %arg15[%c0_34, %c0_35], %70 {strides = array<i32>} : memref<8x128xf32, #tpu.memory_space<vmem>>, vector<8x128xf32>,
    return
  }
  func.func @transform_0(%arg0: i32) -> (i32, i32) {
    %c0_i32 = arith.constant 0 : i32
    %c0_i32_0 = arith.constant 0 : i32
    return %arg0, %c0_i32 : i32, i32
  }
  func.func @transform_1(%arg0: i32) -> (i32, i32) {
    %c0_i32 = arith.constant 0 : i32
    %c0_i32_0 = arith.constant 0 : i32
    %c0_i32_1 = arith.constant 0 : i32
    return %c0_i32, %c0_i32_0 : i32, i32
  }
  func.func @transform_2(%arg0: i32) -> (i32, i32) {
    %c0_i32 = arith.constant 0 : i32
    %c0_i32_0 = arith.constant 0 : i32
    %c0_i32_1 = arith.constant 0 : i32
    return %c0_i32, %c0_i32_0 : i32, i32
  }
  func.func @transform_3(%arg0: i32) -> (i32, i32) {
    %c0_i32 = arith.constant 0 : i32
    %c0_i32_0 = arith.constant 0 : i32
    %c0_i32_1 = arith.constant 0 : i32
    return %c0_i32, %c0_i32_0 : i32, i32
  }
  func.func @transform_4(%arg0: i32) -> (i32, i32) {
    %c0_i32 = arith.constant 0 : i32
    %c0_i32_0 = arith.constant 0 : i32
    %c0_i32_1 = arith.constant 0 : i32
    return %c0_i32, %c0_i32_0 : i32, i32
  }
  func.func @transform_5(%arg0: i32) -> (i32, i32) {
    %c0_i32 = arith.constant 0 : i32
    %c0_i32_0 = arith.constant 0 : i32
    %c0_i32_1 = arith.constant 0 : i32
    return %c0_i32, %c0_i32_0 : i32, i32
  }
  func.func @transform_6(%arg0: i32) -> (i32, i32) {
    %c0_i32 = arith.constant 0 : i32
    %c0_i32_0 = arith.constant 0 : i32
    %c0_i32_1 = arith.constant 0 : i32
    return %c0_i32, %c0_i32_0 : i32, i32
  }
  func.func @transform_7(%arg0: i32) -> (i32, i32) {
    %c0_i32 = arith.constant 0 : i32
    %c0_i32_0 = arith.constant 0 : i32
    %c0_i32_1 = arith.constant 0 : i32
    return %c0_i32, %c0_i32_0 : i32, i32
  }
  func.func @transform_8(%arg0: i32) -> (i32, i32) {
    %c0_i32 = arith.constant 0 : i32
    %c0_i32_0 = arith.constant 0 : i32
    %c0_i32_1 = arith.constant 0 : i32
    return %c0_i32, %c0_i32_0 : i32, i32
  }
  func.func @transform_9(%arg0: i32) -> (i32, i32) {
    %c0_i32 = arith.constant 0 : i32
    %c0_i32_0 = arith.constant 0 : i32
    %c0_i32_1 = arith.constant 0 : i32
    return %c0_i32, %c0_i32_0 : i32, i32
  }
  func.func @transform_10(%arg0: i32) -> (i32, i32) {
    %c0_i32 = arith.constant 0 : i32
    %c0_i32_0 = arith.constant 0 : i32
    %c0_i32_1 = arith.constant 0 : i32
    return %c0_i32, %c0_i32_0 : i32, i32
  }
  func.func @transform_11(%arg0: i32) -> (i32, i32) {
    %c0_i32 = arith.constant 0 : i32
    %c0_i32_0 = arith.constant 0 : i32
    %c0_i32_1 = arith.constant 0 : i32
    return %c0_i32, %c0_i32_0 : i32, i32
  }
  func.func @transform_12(%arg0: i32) -> (i32, i32) {
    %c0_i32 = arith.constant 0 : i32
    %c0_i32_0 = arith.constant 0 : i32
    %c0_i32_1 = arith.constant 0 : i32
    return %c0_i32, %c0_i32_0 : i32, i32
  }
  func.func @transform_13(%arg0: i32) -> (i32, i32) {
    %c0_i32 = arith.constant 0 : i32
    %c0_i32_0 = arith.constant 0 : i32
    %c0_i32_1 = arith.constant 0 : i32
    return %c0_i32, %c0_i32_0 : i32, i32
  }
  func.func @transform_14(%arg0: i32) -> (i32, i32) {
    %c0_i32 = arith.constant 0 : i32
    %c0_i32_0 = arith.constant 0 : i32
    return %arg0, %c0_i32 : i32, i32
  }
}

</mosaic_0001>

<llo_original>
// kernel: tpu_custom_call.1
$region0: #{tpu_custom_call.1}
  #allocation0 [shape = 'u32[]', space=smem, size = 0x4, offset = 0x4, fixed_abs, tag = 'smem constant byte address 0x4 - core index']
  #allocation1 [shape = 'u32[144,128]{1,0:T(1,128)}', space=vmem, size = 0x12000, scoped, tag = 'internal scratch']
  %s0 = inlined_call_operand.hbm [shape: f32[256,3], index: 0, kind: input, shape index: {}]
  %s1 = inlined_call_operand.hbm [shape: f32[3,128], index: 1, kind: input, shape index: {}]
  %s2 = inlined_call_operand.hbm [shape: f32[1,128], index: 2, kind: input, shape index: {}]
  %s3 = inlined_call_operand.hbm [shape: f32[1,128], index: 3, kind: input, shape index: {}]
  %s4 = inlined_call_operand.hbm [shape: f32[1,128], index: 4, kind: input, shape index: {}]
  %s5 = inlined_call_operand.hbm [shape: bf16[128,256], index: 5, kind: input, shape index: {}]
  %s6 = inlined_call_operand.hbm [shape: f32[1,256], index: 6, kind: input, shape index: {}]
  %s7 = inlined_call_operand.hbm [shape: bf16[256,512], index: 7, kind: input, shape index: {}]
  %s8 = inlined_call_operand.hbm [shape: bf16[256,512], index: 8, kind: input, shape index: {}]
  %s9 = inlined_call_operand.hbm [shape: f32[1,512], index: 9, kind: input, shape index: {}]
  %s10 = inlined_call_operand.hbm [shape: f32[1,512], index: 10, kind: input, shape index: {}]
  %s11 = inlined_call_operand.hbm [shape: f32[1,512], index: 11, kind: input, shape index: {}]
  %s12 = inlined_call_operand.hbm [shape: bf16[512,128], index: 12, kind: input, shape index: {}]
  %s13 = inlined_call_operand.hbm [shape: f32[1,128], index: 13, kind: input, shape index: {}]
  %s14 = inlined_call_operand.hbm [shape: f32[16,128], index: 14, kind: output, shape index: {}]
  %s15 = sld [smem:[#allocation0]]
  $region145: #{tpu_custom_call.1} parent=0
    _
  %s17 = ssub.s32 1, %s15
  %s18 = scalar_select 0, %s17, %s15
  $region1: #{tpu_custom_call.1} parent=0
    #allocation2 [shape = 'u8[131072]{0}', space=vmem, size = 0x20000, scoped, tag = 'input window, operand 0']
    #allocation3 [shape = 's32[2]{0}', space=sflag, size = 0x8, scoped, tag = 'scoped memory for tpu_custom_call.1']
    #allocation4 [shape = 's32[2]{0}', space=sflag, size = 0x8, scoped, tag = 'scoped memory for tpu_custom_call.1']
    #allocation5 [shape = 'u8[2048]{0}', space=vmem, size = 0x800, scoped, tag = 'input window, operand 1, single buffered']
    #allocation6 [shape = 's32[1]{0}', space=sflag, size = 0x4, scoped, tag = 'scoped memory for tpu_custom_call.1']
    #allocation7 [shape = 'u8[512]{0}', space=vmem, size = 0x400, scoped, tag = 'input window, operand 2, single buffered']
    #allocation8 [shape = 'u8[512]{0}', space=vmem, size = 0x400, scoped, tag = 'input window, operand 3, single buffered']
    #allocation9 [shape = 's32[1]{0}', space=sflag, size = 0x4, scoped, tag = 'scoped memory for tpu_custom_call.1']
    #allocation10 [shape = 'u8[512]{0}', space=vmem, size = 0x400, scoped, tag = 'input window, operand 4, single buffered']
    #allocation11 [shape = 'u8[65536]{0}', space=vmem, size = 0x10000, scoped, tag = 'input window, operand 5, single buffered']
    #allocation12 [shape = 's32[1]{0}', space=sflag, size = 0x4, scoped, tag = 'scoped memory for tpu_custom_call.1']
    #allocation13 [shape = 'u8[1024]{0}', space=vmem, size = 0x400, scoped, tag = 'input window, operand 6, single buffered']
    #allocation14 [shape = 'u8[262144]{0}', space=vmem, size = 0x40000, scoped, tag = 'input window, operand 7, single buffered']
    #allocation15 [shape = 's32[1]{0}', space=sflag, size = 0x4, scoped, tag = 'scoped memory for tpu_custom_call.1']
    #allocation16 [shape = 'u8[262144]{0}', space=vmem, size = 0x40000, scoped, tag = 'input window, operand 8, single buffered']
    #allocation17 [shape = 'u8[2048]{0}', space=vmem, size = 0x800, scoped, tag = 'input window, operand 9, single buffered']
    #allocation18 [shape = 's32[1]{0}', space=sflag, size = 0x4, scoped, tag = 'scoped memory for tpu_custom_call.1']
    #allocation19 [shape = 'u8[2048]{0}', space=vmem, size = 0x800, scoped, tag = 'input window, operand 10, single buffered']
    #allocation20 [shape = 'u8[2048]{0}', space=vmem, size = 0x800, scoped, tag = 'input window, operand 11, single buffered']
    #allocation21 [shape = 's32[1]{0}', space=sflag, size = 0x4, scoped, tag = 'scoped memory for tpu_custom_call.1']
    #allocation22 [shape = 'u8[131072]{0}', space=vmem, size = 0x20000, scoped, tag = 'input window, operand 12, single buffered']
    #allocation23 [shape = 'u8[512]{0}', space=vmem, size = 0x400, scoped, tag = 'input window, operand 13, single buffered']
    #allocation24 [shape = 's32[1]{0}', space=sflag, size = 0x4, scoped, tag = 'scoped memory for tpu_custom_call.1']
    #allocation25 [shape = 'u8[8192]{0}', space=vmem, size = 0x2000, scoped, tag = 'output window, operand 0']
    %19 = vsyncpa [#allocation3], 0
    %s20 = scalar_lea.sflag [#allocation3], 1
    %21 = vsyncpa %s20, 0
    %22 = vsyncpa [#allocation6], 0
    %23 = vsyncpa [#allocation9], 0
    %24 = vsyncpa [#allocation12], 0
    %25 = vsyncpa [#allocation15], 0
    %26 = vsyncpa [#allocation18], 0
    %27 = vsyncpa [#allocation21], 0
    %28 = vsyncpa [#allocation24], 0
    %29 = vsyncpa [#allocation4], 0
    %s30 = scalar_lea.sflag [#allocation4], 1
    %31 = vsyncpa %s30, 0
    loop: start=0, step=1, limit=4
    $region2: #{tpu_custom_call.1} parent=1 // loop_pre_header
      _
    $region3: #{tpu_custom_call.1} parent=1 // loop_header
      %s33 = sphi 0, %s37
      %p34 = scmp.ge.s32.totalorder %s33, 4
      %s43 = sphi 0, %s45
      %s46 = sphi 0, %s43
      %s47 = sphi 0, %s46
      %s63 = sphi 0, %s47
      %s67 = sphi 0, %s67
      %s69 = sphi 0, %s67
      %s70 = sphi 0, %s69
      %s84 = sphi 0, %s70
      %s88 = sphi 0, %s88
      %s90 = sphi 0, %s88
      %s91 = sphi 0, %s90
      %s105 = sphi 0, %s91
      %s109 = sphi 0, %s109
      %s111 = sphi 0, %s109
      %s112 = sphi 0, %s111
      %s126 = sphi 0, %s112
      %s130 = sphi 0, %s130
      %s132 = sphi 0, %s130
      %s133 = sphi 0, %s132
      %s147 = sphi 0, %s133
      %s151 = sphi 0, %s151
      %s153 = sphi 0, %s151
      %s154 = sphi 0, %s153
      %s168 = sphi 0, %s154
      %s172 = sphi 0, %s172
      %s174 = sphi 0, %s172
      %s175 = sphi 0, %s174
      %s189 = sphi 0, %s175
      %s193 = sphi 0, %s193
      %s195 = sphi 0, %s193
      %s196 = sphi 0, %s195
      %s210 = sphi 0, %s196
      %s214 = sphi 0, %s214
      %s216 = sphi 0, %s214
      %s217 = sphi 0, %s216
      %s231 = sphi 0, %s217
      %s235 = sphi 0, %s235
      %s237 = sphi 0, %s235
      %s238 = sphi 0, %s237
      %s252 = sphi 0, %s238
      %s256 = sphi 0, %s256
      %s258 = sphi 0, %s256
      %s259 = sphi 0, %s258
      %s273 = sphi 0, %s259
      %s277 = sphi 0, %s277
      %s279 = sphi 0, %s277
      %s280 = sphi 0, %s279
      %s294 = sphi 0, %s280
      %s298 = sphi 0, %s298
      %s300 = sphi 0, %s298
      %s301 = sphi 0, %s300
      %s315 = sphi 0, %s301
      %s319 = sphi 0, %s319
      %s321 = sphi 0, %s319
      %s322 = sphi 0, %s321
      %s336 = sphi 0, %s322
      %s342 = sphi 0, %s344
      %s345 = sphi 0, %s342
      %s346 = sphi 0, %s345
      %s362 = sphi 0, %s346
    $region4: #{tpu_custom_call.1} parent=1 // loop_header_branch
      %36 = sbr.rel (%p34) target = $region8
    $region5: #{tpu_custom_call.1} parent=1 // loop_body
      %s38 = ssub.s32 %s33, 1
      %s39 = ssub.s32 %s33, 2
      %s40 = sadd.s32 %s33, 1
      %s41 = ssub.s32 %s33, %s40
      %p42 = scmp.eq.s32.totalorder %s41, 0
      %s44 = sadd.s32 %s43, 1
      %s45 = scalar_select %p42, %s43, %s44
      %p48 = pneg %p42
      %p49 = scmp.eq.s32.totalorder %s33, 1
      %p50 = por %p48, %p49
      %p51 = scmp.ne.s32.totalorder %s43, %s46
      %p52 = scmp.eq.s32.totalorder %s33, 0
      %p53 = por %p51, %p52
      %p54 = scmp.ne.s32.totalorder %s43, %s46
      %p55 = scmp.eq.s32.totalorder %s38, 1
      %p56 = por %p54, %p55
      %p57 = scmp.ne.s32.totalorder %s46, %s47
      %p58 = scmp.eq.s32.totalorder %s38, 0
      %p59 = por %p57, %p58
      %p60 = scmp.ne.s32.totalorder %s46, %s47
      %p61 = scmp.eq.s32.totalorder %s39, 1
      %p62 = por %p60, %p61
      %p64 = scmp.ne.s32.totalorder %s47, %s63
      %p65 = scmp.eq.s32.totalorder %s39, 0
      %p66 = por %p64, %p65
      %s68 = sadd.s32 %s67, 1
      %p71 = scmp.eq.s32.totalorder %s33, 1
      %p72 = scmp.ne.s32.totalorder %s67, %s69
      %p73 = scmp.eq.s32.totalorder %s33, 0
      %p74 = por %p72, %p73
      %p75 = scmp.ne.s32.totalorder %s67, %s69
      %p76 = scmp.eq.s32.totalorder %s38, 1
      %p77 = por %p75, %p76
      %p78 = scmp.ne.s32.totalorder %s69, %s70
      %p79 = scmp.eq.s32.totalorder %s38, 0
      %p80 = por %p78, %p79
      %p81 = scmp.ne.s32.totalorder %s69, %s70
      %p82 = scmp.eq.s32.totalorder %s39, 1
      %p83 = por %p81, %p82
      %p85 = scmp.ne.s32.totalorder %s70, %s84
      %p86 = scmp.eq.s32.totalorder %s39, 0
      %p87 = por %p85, %p86
      %s89 = sadd.s32 %s88, 1
      %p92 = scmp.eq.s32.totalorder %s33, 1
      %p93 = scmp.ne.s32.totalorder %s88, %s90
      %p94 = scmp.eq.s32.totalorder %s33, 0
      %p95 = por %p93, %p94
      %p96 = scmp.ne.s32.totalorder %s88, %s90
      %p97 = scmp.eq.s32.totalorder %s38, 1
      %p98 = por %p96, %p97
      %p99 = scmp.ne.s32.totalorder %s90, %s91
      %p100 = scmp.eq.s32.totalorder %s38, 0
      %p101 = por %p99, %p100
      %p102 = scmp.ne.s32.totalorder %s90, %s91
      %p103 = scmp.eq.s32.totalorder %s39, 1
      %p104 = por %p102, %p103
      %p106 = scmp.ne.s32.totalorder %s91, %s105
      %p107 = scmp.eq.s32.totalorder %s39, 0
      %p108 = por %p106, %p107
      %s110 = sadd.s32 %s109, 1
      %p113 = scmp.eq.s32.totalorder %s33, 1
      %p114 = scmp.ne.s32.totalorder %s109, %s111
      %p115 = scmp.eq.s32.totalorder %s33, 0
      %p116 = por %p114, %p115
      %p117 = scmp.ne.s32.totalorder %s109, %s111
      %p118 = scmp.eq.s32.totalorder %s38, 1
      %p119 = por %p117, %p118
      %p120 = scmp.ne.s32.totalorder %s111, %s112
      %p121 = scmp.eq.s32.totalorder %s38, 0
      %p122 = por %p120, %p121
      %p123 = scmp.ne.s32.totalorder %s111, %s112
      %p124 = scmp.eq.s32.totalorder %s39, 1
      %p125 = por %p123, %p124
      %p127 = scmp.ne.s32.totalorder %s112, %s126
      %p128 = scmp.eq.s32.totalorder %s39, 0
      %p129 = por %p127, %p128
      %s131 = sadd.s32 %s130, 1
      %p134 = scmp.eq.s32.totalorder %s33, 1
      %p135 = scmp.ne.s32.totalorder %s130, %s132
      %p136 = scmp.eq.s32.totalorder %s33, 0
      %p137 = por %p135, %p136
      %p138 = scmp.ne.s32.totalorder %s130, %s132
      %p139 = scmp.eq.s32.totalorder %s38, 1
      %p140 = por %p138, %p139
      %p141 = scmp.ne.s32.totalorder %s132, %s133
      %p142 = scmp.eq.s32.totalorder %s38, 0
      %p143 = por %p141, %p142
      %p144 = scmp.ne.s32.totalorder %s132, %s133
      %p145 = scmp.eq.s32.totalorder %s39, 1
      %p146 = por %p144, %p145
      %p148 = scmp.ne.s32.totalorder %s133, %s147
      %p149 = scmp.eq.s32.totalorder %s39, 0
      %p150 = por %p148, %p149
      %s152 = sadd.s32 %s151, 1
      %p155 = scmp.eq.s32.totalorder %s33, 1
      %p156 = scmp.ne.s32.totalorder %s151, %s153
      %p157 = scmp.eq.s32.totalorder %s33, 0
      %p158 = por %p156, %p157
      %p159 = scmp.ne.s32.totalorder %s151, %s153
      %p160 = scmp.eq.s32.totalorder %s38, 1
      %p161 = por %p159, %p160
      %p162 = scmp.ne.s32.totalorder %s153, %s154
      %p163 = scmp.eq.s32.totalorder %s38, 0
      %p164 = por %p162, %p163
      %p165 = scmp.ne.s32.totalorder %s153, %s154
      %p166 = scmp.eq.s32.totalorder %s39, 1
      %p167 = por %p165, %p166
      %p169 = scmp.ne.s32.totalorder %s154, %s168
      %p170 = scmp.eq.s32.totalorder %s39, 0
      %p171 = por %p169, %p170
      %s173 = sadd.s32 %s172, 1
      %p176 = scmp.eq.s32.totalorder %s33, 1
      %p177 = scmp.ne.s32.totalorder %s172, %s174
      %p178 = scmp.eq.s32.totalorder %s33, 0
      %p179 = por %p177, %p178
      %p180 = scmp.ne.s32.totalorder %s172, %s174
      %p181 = scmp.eq.s32.totalorder %s38, 1
      %p182 = por %p180, %p181
      %p183 = scmp.ne.s32.totalorder %s174, %s175
      %p184 = scmp.eq.s32.totalorder %s38, 0
      %p185 = por %p183, %p184
      %p186 = scmp.ne.s32.totalorder %s174, %s175
      %p187 = scmp.eq.s32.totalorder %s39, 1
      %p188 = por %p186, %p187
      %p190 = scmp.ne.s32.totalorder %s175, %s189
      %p191 = scmp.eq.s32.totalorder %s39, 0
      %p192 = por %p190, %p191
      %s194 = sadd.s32 %s193, 1
      %p197 = scmp.eq.s32.totalorder %s33, 1
      %p198 = scmp.ne.s32.totalorder %s193, %s195
      %p199 = scmp.eq.s32.totalorder %s33, 0
      %p200 = por %p198, %p199
      %p201 = scmp.ne.s32.totalorder %s193, %s195
      %p202 = scmp.eq.s32.totalorder %s38, 1
      %p203 = por %p201, %p202
      %p204 = scmp.ne.s32.totalorder %s195, %s196
      %p205 = scmp.eq.s32.totalorder %s38, 0
      %p206 = por %p204, %p205
      %p207 = scmp.ne.s32.totalorder %s195, %s196
      %p208 = scmp.eq.s32.totalorder %s39, 1
      %p209 = por %p207, %p208
      %p211 = scmp.ne.s32.totalorder %s196, %s210
      %p212 = scmp.eq.s32.totalorder %s39, 0
      %p213 = por %p211, %p212
      %s215 = sadd.s32 %s214, 1
      %p218 = scmp.eq.s32.totalorder %s33, 1
      %p219 = scmp.ne.s32.totalorder %s214, %s216
      %p220 = scmp.eq.s32.totalorder %s33, 0
      %p221 = por %p219, %p220
      %p222 = scmp.ne.s32.totalorder %s214, %s216
      %p223 = scmp.eq.s32.totalorder %s38, 1
      %p224 = por %p222, %p223
      %p225 = scmp.ne.s32.totalorder %s216, %s217
      %p226 = scmp.eq.s32.totalorder %s38, 0
      %p227 = por %p225, %p226
      %p228 = scmp.ne.s32.totalorder %s216, %s217
      %p229 = scmp.eq.s32.totalorder %s39, 1
      %p230 = por %p228, %p229
      %p232 = scmp.ne.s32.totalorder %s217, %s231
      %p233 = scmp.eq.s32.totalorder %s39, 0
      %p234 = por %p232, %p233
      %s236 = sadd.s32 %s235, 1
      %p239 = scmp.eq.s32.totalorder %s33, 1
      %p240 = scmp.ne.s32.totalorder %s235, %s237
      %p241 = scmp.eq.s32.totalorder %s33, 0
      %p242 = por %p240, %p241
      %p243 = scmp.ne.s32.totalorder %s235, %s237
      %p244 = scmp.eq.s32.totalorder %s38, 1
      %p245 = por %p243, %p244
      %p246 = scmp.ne.s32.totalorder %s237, %s238
      %p247 = scmp.eq.s32.totalorder %s38, 0
      %p248 = por %p246, %p247
      %p249 = scmp.ne.s32.totalorder %s237, %s238
      %p250 = scmp.eq.s32.totalorder %s39, 1
      %p251 = por %p249, %p250
      %p253 = scmp.ne.s32.totalorder %s238, %s252
      %p254 = scmp.eq.s32.totalorder %s39, 0
      %p255 = por %p253, %p254
      %s257 = sadd.s32 %s256, 1
      %p260 = scmp.eq.s32.totalorder %s33, 1
      %p261 = scmp.ne.s32.totalorder %s256, %s258
      %p262 = scmp.eq.s32.totalorder %s33, 0
      %p263 = por %p261, %p262
      %p264 = scmp.ne.s32.totalorder %s256, %s258
      %p265 = scmp.eq.s32.totalorder %s38, 1
      %p266 = por %p264, %p265
      %p267 = scmp.ne.s32.totalorder %s258, %s259
      %p268 = scmp.eq.s32.totalorder %s38, 0
      %p269 = por %p267, %p268
      %p270 = scmp.ne.s32.totalorder %s258, %s259
      %p271 = scmp.eq.s32.totalorder %s39, 1
      %p272 = por %p270, %p271
      %p274 = scmp.ne.s32.totalorder %s259, %s273
      %p275 = scmp.eq.s32.totalorder %s39, 0
      %p276 = por %p274, %p275
      %s278 = sadd.s32 %s277, 1
      %p281 = scmp.eq.s32.totalorder %s33, 1
      %p282 = scmp.ne.s32.totalorder %s277, %s279
      %p283 = scmp.eq.s32.totalorder %s33, 0
      %p284 = por %p282, %p283
      %p285 = scmp.ne.s32.totalorder %s277, %s279
      %p286 = scmp.eq.s32.totalorder %s38, 1
      %p287 = por %p285, %p286
      %p288 = scmp.ne.s32.totalorder %s279, %s280
      %p289 = scmp.eq.s32.totalorder %s38, 0
      %p290 = por %p288, %p289
      %p291 = scmp.ne.s32.totalorder %s279, %s280
      %p292 = scmp.eq.s32.totalorder %s39, 1
      %p293 = por %p291, %p292
      %p295 = scmp.ne.s32.totalorder %s280, %s294
      %p296 = scmp.eq.s32.totalorder %s39, 0
      %p297 = por %p295, %p296
      %s299 = sadd.s32 %s298, 1
      %p302 = scmp.eq.s32.totalorder %s33, 1
      %p303 = scmp.ne.s32.totalorder %s298, %s300
      %p304 = scmp.eq.s32.totalorder %s33, 0
      %p305 = por %p303, %p304
      %p306 = scmp.ne.s32.totalorder %s298, %s300
      %p307 = scmp.eq.s32.totalorder %s38, 1
      %p308 = por %p306, %p307
      %p309 = scmp.ne.s32.totalorder %s300, %s301
      %p310 = scmp.eq.s32.totalorder %s38, 0
      %p311 = por %p309, %p310
      %p312 = scmp.ne.s32.totalorder %s300, %s301
      %p313 = scmp.eq.s32.totalorder %s39, 1
      %p314 = por %p312, %p313
      %p316 = scmp.ne.s32.totalorder %s301, %s315
      %p317 = scmp.eq.s32.totalorder %s39, 0
      %p318 = por %p316, %p317
      %s320 = sadd.s32 %s319, 1
      %p323 = scmp.eq.s32.totalorder %s33, 1
      %p324 = scmp.ne.s32.totalorder %s319, %s321
      %p325 = scmp.eq.s32.totalorder %s33, 0
      %p326 = por %p324, %p325
      %p327 = scmp.ne.s32.totalorder %s319, %s321
      %p328 = scmp.eq.s32.totalorder %s38, 1
      %p329 = por %p327, %p328
      %p330 = scmp.ne.s32.totalorder %s321, %s322
      %p331 = scmp.eq.s32.totalorder %s38, 0
      %p332 = por %p330, %p331
      %p333 = scmp.ne.s32.totalorder %s321, %s322
      %p334 = scmp.eq.s32.totalorder %s39, 1
      %p335 = por %p333, %p334
      %p337 = scmp.ne.s32.totalorder %s322, %s336
      %p338 = scmp.eq.s32.totalorder %s39, 0
      %p339 = por %p337, %p338
      %s340 = ssub.s32 %s33, %s40
      %p341 = scmp.eq.s32.totalorder %s340, 0
      %s343 = sadd.s32 %s342, 1
      %s344 = scalar_select %p341, %s342, %s343
      %p347 = pneg %p341
      %p348 = scmp.eq.s32.totalorder %s33, 1
      %p349 = por %p347, %p348
      %p350 = scmp.ne.s32.totalorder %s342, %s345
      %p351 = scmp.eq.s32.totalorder %s33, 0
      %p352 = por %p350, %p351
      %p353 = scmp.ne.s32.totalorder %s342, %s345
      %p354 = scmp.eq.s32.totalorder %s38, 1
      %p355 = por %p353, %p354
      %p356 = scmp.ne.s32.totalorder %s345, %s346
      %p357 = scmp.eq.s32.totalorder %s38, 0
      %p358 = por %p356, %p357
      %p359 = scmp.ne.s32.totalorder %s345, %s346
      %p360 = scmp.eq.s32.totalorder %s39, 1
      %p361 = por %p359, %p360
      %p363 = scmp.ne.s32.totalorder %s346, %s362
      %p364 = scmp.eq.s32.totalorder %s39, 0
      %p365 = por %p363, %p364
      %p366 = scmp.le.s32.totalorder 1, %s33
      %p367 = scmp.lt.s32.totalorder %s33, 3
      %p368 = pnand %p366, %p367
      %p369 = pneg %p368
      // Predicated region
      $region9: #{tpu_custom_call.1} parent=5 // pred_check
        _
      $region10: #{tpu_custom_call.1} parent=5 // pred_check_branch
        %371 = sbr.rel (%p368) target = $region12
      $region11: #{tpu_custom_call.1} parent=5 // pred_region
        %s372 = ssub.s32 %s33, 1
        // Predicated region
        $region13: #{tpu_custom_call.1} parent=11 // pred_check
          %p373 = pneg %p80
        $region14: #{tpu_custom_call.1} parent=11 // pred_check_branch
          %375 = sbr.rel (%p373) target = $region16
        $region15: #{tpu_custom_call.1} parent=11 // pred_region
          %s377 = ssub.s32 64, 64
          %378 = vsyncadd [#allocation6], %s377
          %s380 = sshll.u32 [#allocation5], 4
          %s381 = int_to_ptr.vmem [resolvable:$true] %s380
          %383 = dma.hbm_to_vmem [thread:$0]  %s1, 64, %s381, [#allocation6]
        $region16: #{tpu_custom_call.1} parent=11 // pred_fallthru
          _
        // Predicated region
        $region17: #{tpu_custom_call.1} parent=11 // pred_check
          %p384 = pneg %p101
        $region18: #{tpu_custom_call.1} parent=11 // pred_check_branch
          %386 = sbr.rel (%p384) target = $region20
        $region19: #{tpu_custom_call.1} parent=11 // pred_region
          %s388 = ssub.s32 16, 16
          %389 = vsyncadd [#allocation6], %s388
          %s391 = sshll.u32 [#allocation7], 4
          %s392 = int_to_ptr.vmem [resolvable:$true] %s391
          %394 = dma.hbm_to_vmem [thread:$0]  %s2, 16, %s392, [#allocation6]
        $region20: #{tpu_custom_call.1} parent=11 // pred_fallthru
          _
        // Predicated region
        $region21: #{tpu_custom_call.1} parent=11 // pred_check
          %p395 = pneg %p122
        $region22: #{tpu_custom_call.1} parent=11 // pred_check_branch
          %397 = sbr.rel (%p395) target = $region24
        $region23: #{tpu_custom_call.1} parent=11 // pred_region
          %s399 = ssub.s32 16, 16
          %400 = vsyncadd [#allocation9], %s399
          %s402 = sshll.u32 [#allocation8], 4
          %s403 = int_to_ptr.vmem [resolvable:$true] %s402
          %405 = dma.hbm_to_vmem [thread:$0]  %s3, 16, %s403, [#allocation9]
        $region24: #{tpu_custom_call.1} parent=11 // pred_fallthru
          _
        // Predicated region
        $region25: #{tpu_custom_call.1} parent=11 // pred_check
          %p406 = pneg %p143
        $region26: #{tpu_custom_call.1} parent=11 // pred_check_branch
          %408 = sbr.rel (%p406) target = $region28
        $region27: #{tpu_custom_call.1} parent=11 // pred_region
          %s410 = ssub.s32 16, 16
          %411 = vsyncadd [#allocation9], %s410
          %s413 = sshll.u32 [#allocation10], 4
          %s414 = int_to_ptr.vmem [resolvable:$true] %s413
          %416 = dma.hbm_to_vmem [thread:$0]  %s4, 16, %s414, [#allocation9]
        $region28: #{tpu_custom_call.1} parent=11 // pred_fallthru
          _
        // Predicated region
        $region29: #{tpu_custom_call.1} parent=11 // pred_check
          %p417 = pneg %p164
        $region30: #{tpu_custom_call.1} parent=11 // pred_check_branch
          %419 = sbr.rel (%p417) target = $region32
        $region31: #{tpu_custom_call.1} parent=11 // pred_region
          %s421 = ssub.s32 2048, 2048
          %422 = vsyncadd [#allocation12], %s421
          %s423 = sshll.u32 [#allocation11], 4
          %s424 = int_to_ptr.vmem [resolvable:$true] %s423
          %429 = dma.hbm_to_vmem [thread:$0]  %s5, 2048, %s424, [#allocation12], 128, 128, 8
        $region32: #{tpu_custom_call.1} parent=11 // pred_fallthru
          _
        // Predicated region
        $region33: #{tpu_custom_call.1} parent=11 // pred_check
          %p430 = pneg %p185
        $region34: #{tpu_custom_call.1} parent=11 // pred_check_branch
          %432 = sbr.rel (%p430) target = $region36
        $region35: #{tpu_custom_call.1} parent=11 // pred_region
          %s434 = ssub.s32 32, 32
          %435 = vsyncadd [#allocation12], %s434
          %s437 = sshll.u32 [#allocation13], 4
          %s438 = int_to_ptr.vmem [resolvable:$true] %s437
          %440 = dma.hbm_to_vmem [thread:$0]  %s6, 32, %s438, [#allocation12]
        $region36: #{tpu_custom_call.1} parent=11 // pred_fallthru
          _
        // Predicated region
        $region37: #{tpu_custom_call.1} parent=11 // pred_check
          %p441 = pneg %p206
        $region38: #{tpu_custom_call.1} parent=11 // pred_check_branch
          %443 = sbr.rel (%p441) target = $region40
        $region39: #{tpu_custom_call.1} parent=11 // pred_region
          %s445 = ssub.s32 8192, 8192
          %446 = vsyncadd [#allocation15], %s445
          %s447 = sshll.u32 [#allocation14], 4
          %s448 = int_to_ptr.vmem [resolvable:$true] %s447
          %453 = dma.hbm_to_vmem [thread:$0]  %s7, 8192, %s448, [#allocation15], 256, 256, 16
        $region40: #{tpu_custom_call.1} parent=11 // pred_fallthru
          _
        // Predicated region
        $region41: #{tpu_custom_call.1} parent=11 // pred_check
          %p454 = pneg %p227
        $region42: #{tpu_custom_call.1} parent=11 // pred_check_branch
          %456 = sbr.rel (%p454) target = $region44
        $region43: #{tpu_custom_call.1} parent=11 // pred_region
          %s458 = ssub.s32 8192, 8192
          %459 = vsyncadd [#allocation15], %s458
          %s460 = sshll.u32 [#allocation16], 4
          %s461 = int_to_ptr.vmem [resolvable:$true] %s460
          %466 = dma.hbm_to_vmem [thread:$0]  %s8, 8192, %s461, [#allocation15], 256, 256, 16
        $region44: #{tpu_custom_call.1} parent=11 // pred_fallthru
          _
        // Predicated region
        $region45: #{tpu_custom_call.1} parent=11 // pred_check
          %p467 = pneg %p248
        $region46: #{tpu_custom_call.1} parent=11 // pred_check_branch
          %469 = sbr.rel (%p467) target = $region48
        $region47: #{tpu_custom_call.1} parent=11 // pred_region
          %s471 = ssub.s32 64, 64
          %472 = vsyncadd [#allocation18], %s471
          %s474 = sshll.u32 [#allocation17], 4
          %s475 = int_to_ptr.vmem [resolvable:$true] %s474
          %477 = dma.hbm_to_vmem [thread:$0]  %s9, 64, %s475, [#allocation18]
        $region48: #{tpu_custom_call.1} parent=11 // pred_fallthru
          _
        // Predicated region
        $region49: #{tpu_custom_call.1} parent=11 // pred_check
          %p478 = pneg %p269
        $region50: #{tpu_custom_call.1} parent=11 // pred_check_branch
          %480 = sbr.rel (%p478) target = $region52
        $region51: #{tpu_custom_call.1} parent=11 // pred_region
          %s482 = ssub.s32 64, 64
          %483 = vsyncadd [#allocation18], %s482
          %s485 = sshll.u32 [#allocation19], 4
          %s486 = int_to_ptr.vmem [resolvable:$true] %s485
          %488 = dma.hbm_to_vmem [thread:$0]  %s10, 64, %s486, [#allocation18]
        $region52: #{tpu_custom_call.1} parent=11 // pred_fallthru
          _
        // Predicated region
        $region53: #{tpu_custom_call.1} parent=11 // pred_check
          %p489 = pneg %p290
        $region54: #{tpu_custom_call.1} parent=11 // pred_check_branch
          %491 = sbr.rel (%p489) target = $region56
        $region55: #{tpu_custom_call.1} parent=11 // pred_region
          %s493 = ssub.s32 64, 64
          %494 = vsyncadd [#allocation21], %s493
          %s496 = sshll.u32 [#allocation20], 4
          %s497 = int_to_ptr.vmem [resolvable:$true] %s496
          %499 = dma.hbm_to_vmem [thread:$0]  %s11, 64, %s497, [#allocation21]
        $region56: #{tpu_custom_call.1} parent=11 // pred_fallthru
          _
        // Predicated region
        $region57: #{tpu_custom_call.1} parent=11 // pred_check
          %p500 = pneg %p311
        $region58: #{tpu_custom_call.1} parent=11 // pred_check_branch
          %502 = sbr.rel (%p500) target = $region60
        $region59: #{tpu_custom_call.1} parent=11 // pred_region
          %s504 = ssub.s32 4096, 4096
          %505 = vsyncadd [#allocation21], %s504
          %s506 = sshll.u32 [#allocation22], 4
          %s507 = int_to_ptr.vmem [resolvable:$true] %s506
          %512 = dma.hbm_to_vmem [thread:$0]  %s12, 4096, %s507, [#allocation21], 64, 64, 4
        $region60: #{tpu_custom_call.1} parent=11 // pred_fallthru
          _
        // Predicated region
        $region61: #{tpu_custom_call.1} parent=11 // pred_check
          %p513 = pneg %p332
        $region62: #{tpu_custom_call.1} parent=11 // pred_check_branch
          %515 = sbr.rel (%p513) target = $region64
        $region63: #{tpu_custom_call.1} parent=11 // pred_region
          %s517 = ssub.s32 16, 16
          %518 = vsyncadd [#allocation24], %s517
          %s520 = sshll.u32 [#allocation23], 4
          %s521 = int_to_ptr.vmem [resolvable:$true] %s520
          %523 = dma.hbm_to_vmem [thread:$0]  %s13, 16, %s521, [#allocation24]
        $region64: #{tpu_custom_call.1} parent=11 // pred_fallthru
          _
      $region12: #{tpu_custom_call.1} parent=5 // pred_fallthru
        _
      %p524 = scmp.lt.s32.totalorder %s33, 2
      // Predicated region
      $region65: #{tpu_custom_call.1} parent=5 // pred_check
        %p525 = pneg %p524
      $region66: #{tpu_custom_call.1} parent=5 // pred_check_branch
        %527 = sbr.rel (%p525) target = $region68
      $region67: #{tpu_custom_call.1} parent=5 // pred_region
        // Predicated region
        $region69: #{tpu_custom_call.1} parent=67 // pred_check
          %p528 = pneg %p53
        $region70: #{tpu_custom_call.1} parent=67 // pred_check_branch
          %530 = sbr.rel (%p528) target = $region72
        $region71: #{tpu_custom_call.1} parent=67 // pred_region
          %s531 = sand.u32 %s43, 1
          %s532 = scalar_lea.sflag [#allocation3], %s531
          %s533 = sand.u32 %s43, 1
          %s534 = smul.addr %s533, 128
          %s535 = scalar_lea.vmem [#allocation2], %s534
          %s536 = smul.u32 16, %s33
          %s538 = ssub.s32 2048, 2048
          %539 = vsyncadd %s532, %s538
          %s540 = smul.addr %s536, 128
          %s541 = scalar_lea.hbm %s0, %s540
          %s542 = sshll.u32 %s535, 4
          %s543 = int_to_ptr.vmem [resolvable:$true] %s542
          %548 = dma.hbm_to_vmem [thread:$0]  %s541, 2048, %s543, %s532, 128, 128, 8
        $region72: #{tpu_custom_call.1} parent=67 // pred_fallthru
          _
      $region68: #{tpu_custom_call.1} parent=5 // pred_fallthru
        _
      %p549 = scmp.le.s32.totalorder 1, %s33
      %p550 = scmp.lt.s32.totalorder %s33, 3
      %p551 = pnand %p549, %p550
      %p552 = pneg %p551
      // Predicated region
      $region73: #{tpu_custom_call.1} parent=5 // pred_check
        _
      $region74: #{tpu_custom_call.1} parent=5 // pred_check_branch
        %554 = sbr.rel (%p551) target = $region76
      $region75: #{tpu_custom_call.1} parent=5 // pred_region
        %s555 = ssub.s32 %s33, 1
        %s556 = sand.u32 %s46, 1
        %s557 = scalar_lea.sflag [#allocation3], %s556
        %s558 = sand.u32 %s46, 1
        %s559 = smul.addr %s558, 128
        %s560 = scalar_lea.vmem [#allocation2], %s559
        // Predicated region
        $region77: #{tpu_custom_call.1} parent=75 // pred_check
          %p561 = pneg %p59
        $region78: #{tpu_custom_call.1} parent=75 // pred_check_branch
          %563 = sbr.rel (%p561) target = $region80
        $region79: #{tpu_custom_call.1} parent=75 // pred_region
          %564 = dma.done %s557, 2048
        $region80: #{tpu_custom_call.1} parent=75 // pred_fallthru
          _
        // Predicated region
        $region81: #{tpu_custom_call.1} parent=75 // pred_check
          %p565 = pneg %p80
        $region82: #{tpu_custom_call.1} parent=75 // pred_check_branch
          %567 = sbr.rel (%p565) target = $region84
        $region83: #{tpu_custom_call.1} parent=75 // pred_region
          %568 = dma.done [#allocation6], 64
        $region84: #{tpu_custom_call.1} parent=75 // pred_fallthru
          _
        // Predicated region
        $region85: #{tpu_custom_call.1} parent=75 // pred_check
          %p569 = pneg %p101
        $region86: #{tpu_custom_call.1} parent=75 // pred_check_branch
          %571 = sbr.rel (%p569) target = $region88
        $region87: #{tpu_custom_call.1} parent=75 // pred_region
          %572 = dma.done [#allocation6], 16
        $region88: #{tpu_custom_call.1} parent=75 // pred_fallthru
          _
        // Predicated region
        $region89: #{tpu_custom_call.1} parent=75 // pred_check
          %p573 = pneg %p122
        $region90: #{tpu_custom_call.1} parent=75 // pred_check_branch
          %575 = sbr.rel (%p573) target = $region92
        $region91: #{tpu_custom_call.1} parent=75 // pred_region
          %576 = dma.done [#allocation9], 16
        $region92: #{tpu_custom_call.1} parent=75 // pred_fallthru
          _
        // Predicated region
        $region93: #{tpu_custom_call.1} parent=75 // pred_check
          %p577 = pneg %p143
        $region94: #{tpu_custom_call.1} parent=75 // pred_check_branch
          %579 = sbr.rel (%p577) target = $region96
        $region95: #{tpu_custom_call.1} parent=75 // pred_region
          %580 = dma.done [#allocation9], 16
        $region96: #{tpu_custom_call.1} parent=75 // pred_fallthru
          _
        // Predicated region
        $region97: #{tpu_custom_call.1} parent=75 // pred_check
          %p581 = pneg %p164
        $region98: #{tpu_custom_call.1} parent=75 // pred_check_branch
          %583 = sbr.rel (%p581) target = $region100
        $region99: #{tpu_custom_call.1} parent=75 // pred_region
          %584 = dma.done [#allocation12], 2048
        $region100: #{tpu_custom_call.1} parent=75 // pred_fallthru
          _
        // Predicated region
        $region101: #{tpu_custom_call.1} parent=75 // pred_check
          %p585 = pneg %p185
        $region102: #{tpu_custom_call.1} parent=75 // pred_check_branch
          %587 = sbr.rel (%p585) target = $region104
        $region103: #{tpu_custom_call.1} parent=75 // pred_region
          %588 = dma.done [#allocation12], 32
        $region104: #{tpu_custom_call.1} parent=75 // pred_fallthru
          _
        // Predicated region
        $region105: #{tpu_custom_call.1} parent=75 // pred_check
          %p589 = pneg %p206
        $region106: #{tpu_custom_call.1} parent=75 // pred_check_branch
          %591 = sbr.rel (%p589) target = $region108
        $region107: #{tpu_custom_call.1} parent=75 // pred_region
          %592 = dma.done [#allocation15], 8192
        $region108: #{tpu_custom_call.1} parent=75 // pred_fallthru
          _
        // Predicated region
        $region109: #{tpu_custom_call.1} parent=75 // pred_check
          %p593 = pneg %p227
        $region110: #{tpu_custom_call.1} parent=75 // pred_check_branch
          %595 = sbr.rel (%p593) target = $region112
        $region111: #{tpu_custom_call.1} parent=75 // pred_region
          %596 = dma.done [#allocation15], 8192
        $region112: #{tpu_custom_call.1} parent=75 // pred_fallthru
          _
        // Predicated region
        $region113: #{tpu_custom_call.1} parent=75 // pred_check
          %p597 = pneg %p248
        $region114: #{tpu_custom_call.1} parent=75 // pred_check_branch
          %599 = sbr.rel (%p597) target = $region116
        $region115: #{tpu_custom_call.1} parent=75 // pred_region
          %600 = dma.done [#allocation18], 64
        $region116: #{tpu_custom_call.1} parent=75 // pred_fallthru
          _
        // Predicated region
        $region117: #{tpu_custom_call.1} parent=75 // pred_check
          %p601 = pneg %p269
        $region118: #{tpu_custom_call.1} parent=75 // pred_check_branch
          %603 = sbr.rel (%p601) target = $region120
        $region119: #{tpu_custom_call.1} parent=75 // pred_region
          %604 = dma.done [#allocation18], 64
        $region120: #{tpu_custom_call.1} parent=75 // pred_fallthru
          _
        // Predicated region
        $region121: #{tpu_custom_call.1} parent=75 // pred_check
          %p605 = pneg %p290
        $region122: #{tpu_custom_call.1} parent=75 // pred_check_branch
          %607 = sbr.rel (%p605) target = $region124
        $region123: #{tpu_custom_call.1} parent=75 // pred_region
          %608 = dma.done [#allocation21], 64
        $region124: #{tpu_custom_call.1} parent=75 // pred_fallthru
          _
        // Predicated region
        $region125: #{tpu_custom_call.1} parent=75 // pred_check
          %p609 = pneg %p311
        $region126: #{tpu_custom_call.1} parent=75 // pred_check_branch
          %611 = sbr.rel (%p609) target = $region128
        $region127: #{tpu_custom_call.1} parent=75 // pred_region
          %612 = dma.done [#allocation21], 4096
        $region128: #{tpu_custom_call.1} parent=75 // pred_fallthru
          _
        // Predicated region
        $region129: #{tpu_custom_call.1} parent=75 // pred_check
          %p613 = pneg %p332
        $region130: #{tpu_custom_call.1} parent=75 // pred_check_branch
          %615 = sbr.rel (%p613) target = $region132
        $region131: #{tpu_custom_call.1} parent=75 // pred_region
          %616 = dma.done [#allocation24], 16
        $region132: #{tpu_custom_call.1} parent=75 // pred_fallthru
          _
        %s617 = sand.u32 %s46, 1
        %s618 = scalar_lea.sflag [#allocation3], %s617
        %s619 = sand.u32 %s46, 1
        %s620 = smul.addr %s619, 128
        %s621 = scalar_lea.vmem [#allocation2], %s620
        %p622 = pneg %p59
        %p623 = pneg %p56
        %p624 = pneg %p80
        %p625 = pneg %p77
        %p626 = pneg %p101
        %p627 = pneg %p98
        %p628 = pneg %p122
        %p629 = pneg %p119
        %p630 = pneg %p143
        %p631 = pneg %p140
        %p632 = pneg %p164
        %p633 = pneg %p161
        %p634 = pneg %p185
        %p635 = pneg %p182
        %p636 = pneg %p206
        %p637 = pneg %p203
        %p638 = pneg %p227
        %p639 = pneg %p224
        %p640 = pneg %p248
        %p641 = pneg %p245
        %p642 = pneg %p269
        %p643 = pneg %p266
        %p644 = pneg %p290
        %p645 = pneg %p287
        %p646 = pneg %p311
        %p647 = pneg %p308
        %p648 = pneg %p332
        %p649 = pneg %p329
        %p650 = pneg %p358
        %p651 = pneg %p355
        %s652 = sand.u32 %s345, 1
        %s653 = scalar_lea.sflag [#allocation4], %s652
        %s654 = sand.u32 %s345, 1
        %s655 = smul.addr %s654, 8
        %s656 = scalar_lea.vmem [#allocation25], %s655
        %s657 = smul.u32 16, %s38
        %v659 = vld [vmem:[%s560] sm:$0xff]
        %v660 = vld [vmem:[%s560 + $0x8] sm:$0xff]
        %v661 = vld [vmem:[%s560 + $0x10] sm:$0xff]
        %v662 = vld [vmem:[%s560 + $0x18] sm:$0xff]
        %v663 = vld [vmem:[%s560 + $0x20] sm:$0xff]
        %v664 = vld [vmem:[%s560 + $0x28] sm:$0xff]
        %v665 = vld [vmem:[%s560 + $0x30] sm:$0xff]
        %v666 = vld [vmem:[%s560 + $0x38] sm:$0xff]
        %v667 = vld [vmem:[%s560 + $0x40] sm:$0xff]
        %v668 = vld [vmem:[%s560 + $0x48] sm:$0xff]
        %v669 = vld [vmem:[%s560 + $0x50] sm:$0xff]
        %v670 = vld [vmem:[%s560 + $0x58] sm:$0xff]
        %v671 = vld [vmem:[%s560 + $0x60] sm:$0xff]
        %v672 = vld [vmem:[%s560 + $0x68] sm:$0xff]
        %v673 = vld [vmem:[%s560 + $0x70] sm:$0xff]
        %v674 = vld [vmem:[%s560 + $0x78] sm:$0xff]
        %v675 = vld [vmem:[#allocation5] sm:$0x7]
        %v676 = vld [vmem:[#allocation7] sm:$0x1]
        %678 = vset.pattern.permute.xlu0 0
        %679 = vperm.xlu0 %678, %v659
        %v680 = vpop.permute.xlu0 %679
        %683 = vset.pattern.permute.xlu0 0
        %684 = vperm.xlu0 %683, %v660
        %v685 = vpop.permute.xlu0 %684
        %688 = vset.pattern.permute.xlu0 0
        %689 = vperm.xlu0 %688, %v661
        %v690 = vpop.permute.xlu0 %689
        %693 = vset.pattern.permute.xlu0 0
        %694 = vperm.xlu0 %693, %v662
        %v695 = vpop.permute.xlu0 %694
        %698 = vset.pattern.permute.xlu0 0
        %699 = vperm.xlu0 %698, %v663
        %v700 = vpop.permute.xlu0 %699
        %703 = vset.pattern.permute.xlu0 0
        %704 = vperm.xlu0 %703, %v664
        %v705 = vpop.permute.xlu0 %704
        %708 = vset.pattern.permute.xlu0 0
        %709 = vperm.xlu0 %708, %v665
        %v710 = vpop.permute.xlu0 %709
        %713 = vset.pattern.permute.xlu0 0
        %714 = vperm.xlu0 %713, %v666
        %v715 = vpop.permute.xlu0 %714
        %718 = vset.pattern.permute.xlu0 0
        %719 = vperm.xlu0 %718, %v667
        %v720 = vpop.permute.xlu0 %719
        %723 = vset.pattern.permute.xlu0 0
        %724 = vperm.xlu0 %723, %v668
        %v725 = vpop.permute.xlu0 %724
        %728 = vset.pattern.permute.xlu0 0
        %729 = vperm.xlu0 %728, %v669
        %v730 = vpop.permute.xlu0 %729
        %733 = vset.pattern.permute.xlu0 0
        %734 = vperm.xlu0 %733, %v670
        %v735 = vpop.permute.xlu0 %734
        %738 = vset.pattern.permute.xlu0 0
        %739 = vperm.xlu0 %738, %v671
        %v740 = vpop.permute.xlu0 %739
        %743 = vset.pattern.permute.xlu0 0
        %744 = vperm.xlu0 %743, %v672
        %v745 = vpop.permute.xlu0 %744
        %748 = vset.pattern.permute.xlu0 0
        %749 = vperm.xlu0 %748, %v673
        %v750 = vpop.permute.xlu0 %749
        %753 = vset.pattern.permute.xlu0 0
        %754 = vperm.xlu0 %753, %v674
        %v755 = vpop.permute.xlu0 %754
        %v757 = vlaneseq
        %v758 = vshrl.u32 %v757, 7
        %v759 = vsub.s32 0, %v758
        %v760 = vrot.slane %v675, %v759
        %v761 = vmul.f32 %v680, %v760
        %v762 = vmul.f32 %v685, %v760
        %v763 = vmul.f32 %v690, %v760
        %v764 = vmul.f32 %v695, %v760
        %v765 = vmul.f32 %v700, %v760
        %v766 = vmul.f32 %v705, %v760
        %v767 = vmul.f32 %v710, %v760
        %v768 = vmul.f32 %v715, %v760
        %v769 = vmul.f32 %v720, %v760
        %v770 = vmul.f32 %v725, %v760
        %v771 = vmul.f32 %v730, %v760
        %v772 = vmul.f32 %v735, %v760
        %v773 = vmul.f32 %v740, %v760
        %v774 = vmul.f32 %v745, %v760
        %v775 = vmul.f32 %v750, %v760
        %v776 = vmul.f32 %v755, %v760
        %v778 = vlaneseq
        %v779 = vshrl.u32 %v778, 7
        %v780 = vsub.s32 0, %v779
        %v781 = vrot.slane %v676, %v780
        %v783 = vadd.f32 %v781, %v761
        %v784 = vadd.f32 %v781, %v762
        %v785 = vadd.f32 %v781, %v763
        %v786 = vadd.f32 %v781, %v764
        %v787 = vadd.f32 %v781, %v765
        %v788 = vadd.f32 %v781, %v766
        %v789 = vadd.f32 %v781, %v767
        %v790 = vadd.f32 %v781, %v768
        %v791 = vadd.f32 %v781, %v769
        %v792 = vadd.f32 %v781, %v770
        %v793 = vadd.f32 %v781, %v771
        %v794 = vadd.f32 %v781, %v772
        %v795 = vadd.f32 %v781, %v773
        %v796 = vadd.f32 %v781, %v774
        %v797 = vadd.f32 %v781, %v775
        %v798 = vadd.f32 %v781, %v776
        %799 = vset.pattern.permute.xlu0 1
        %800 = vperm.xlu0 %799, %v659
        %v801 = vpop.permute.xlu0 %800
        %803 = vset.pattern.permute.xlu0 1
        %804 = vperm.xlu0 %803, %v660
        %v805 = vpop.permute.xlu0 %804
        %807 = vset.pattern.permute.xlu0 1
        %808 = vperm.xlu0 %807, %v661
        %v809 = vpop.permute.xlu0 %808
        %811 = vset.pattern.permute.xlu0 1
        %812 = vperm.xlu0 %811, %v662
        %v813 = vpop.permute.xlu0 %812
        %815 = vset.pattern.permute.xlu0 1
        %816 = vperm.xlu0 %815, %v663
        %v817 = vpop.permute.xlu0 %816
        %819 = vset.pattern.permute.xlu0 1
        %820 = vperm.xlu0 %819, %v664
        %v821 = vpop.permute.xlu0 %820
        %823 = vset.pattern.permute.xlu0 1
        %824 = vperm.xlu0 %823, %v665
        %v825 = vpop.permute.xlu0 %824
        %827 = vset.pattern.permute.xlu0 1
        %828 = vperm.xlu0 %827, %v666
        %v829 = vpop.permute.xlu0 %828
        %831 = vset.pattern.permute.xlu0 1
        %832 = vperm.xlu0 %831, %v667
        %v833 = vpop.permute.xlu0 %832
        %835 = vset.pattern.permute.xlu0 1
        %836 = vperm.xlu0 %835, %v668
        %v837 = vpop.permute.xlu0 %836
        %839 = vset.pattern.permute.xlu0 1
        %840 = vperm.xlu0 %839, %v669
        %v841 = vpop.permute.xlu0 %840
        %843 = vset.pattern.permute.xlu0 1
        %844 = vperm.xlu0 %843, %v670
        %v845 = vpop.permute.xlu0 %844
        %847 = vset.pattern.permute.xlu0 1
        %848 = vperm.xlu0 %847, %v671
        %v849 = vpop.permute.xlu0 %848
        %851 = vset.pattern.permute.xlu0 1
        %852 = vperm.xlu0 %851, %v672
        %v853 = vpop.permute.xlu0 %852
        %855 = vset.pattern.permute.xlu0 1
        %856 = vperm.xlu0 %855, %v673
        %v857 = vpop.permute.xlu0 %856
        %859 = vset.pattern.permute.xlu0 1
        %860 = vperm.xlu0 %859, %v674
        %v861 = vpop.permute.xlu0 %860
        %v863 = vlaneseq
        %v864 = vshrl.u32 %v863, 7
        %v865 = vsub.s32 1, %v864
        %v866 = vrot.slane %v675, %v865
        %v867 = vmul.f32 %v801, %v866
        %v868 = vmul.f32 %v805, %v866
        %v869 = vmul.f32 %v809, %v866
        %v870 = vmul.f32 %v813, %v866
        %v871 = vmul.f32 %v817, %v866
        %v872 = vmul.f32 %v821, %v866
        %v873 = vmul.f32 %v825, %v866
        %v874 = vmul.f32 %v829, %v866
        %v875 = vmul.f32 %v833, %v866
        %v876 = vmul.f32 %v837, %v866
        %v877 = vmul.f32 %v841, %v866
        %v878 = vmul.f32 %v845, %v866
        %v879 = vmul.f32 %v849, %v866
        %v880 = vmul.f32 %v853, %v866
        %v881 = vmul.f32 %v857, %v866
        %v882 = vmul.f32 %v861, %v866
        %v883 = vadd.f32 %v783, %v867
        %v884 = vadd.f32 %v784, %v868
        %v885 = vadd.f32 %v785, %v869
        %v886 = vadd.f32 %v786, %v870
        %v887 = vadd.f32 %v787, %v871
        %v888 = vadd.f32 %v788, %v872
        %v889 = vadd.f32 %v789, %v873
        %v890 = vadd.f32 %v790, %v874
        %v891 = vadd.f32 %v791, %v875
        %v892 = vadd.f32 %v792, %v876
        %v893 = vadd.f32 %v793, %v877
        %v894 = vadd.f32 %v794, %v878
        %v895 = vadd.f32 %v795, %v879
        %v896 = vadd.f32 %v796, %v880
        %v897 = vadd.f32 %v797, %v881
        %v898 = vadd.f32 %v798, %v882
        %899 = vset.pattern.permute.xlu0 2
        %900 = vperm.xlu0 %899, %v659
        %v901 = vpop.permute.xlu0 %900
        %903 = vset.pattern.permute.xlu0 2
        %904 = vperm.xlu0 %903, %v660
        %v905 = vpop.permute.xlu0 %904
        %907 = vset.pattern.permute.xlu0 2
        %908 = vperm.xlu0 %907, %v661
        %v909 = vpop.permute.xlu0 %908
        %911 = vset.pattern.permute.xlu0 2
        %912 = vperm.xlu0 %911, %v662
        %v913 = vpop.permute.xlu0 %912
        %915 = vset.pattern.permute.xlu0 2
        %916 = vperm.xlu0 %915, %v663
        %v917 = vpop.permute.xlu0 %916
        %919 = vset.pattern.permute.xlu0 2
        %920 = vperm.xlu0 %919, %v664
        %v921 = vpop.permute.xlu0 %920
        %923 = vset.pattern.permute.xlu0 2
        %924 = vperm.xlu0 %923, %v665
        %v925 = vpop.permute.xlu0 %924
        %927 = vset.pattern.permute.xlu0 2
        %928 = vperm.xlu0 %927, %v666
        %v929 = vpop.permute.xlu0 %928
        %931 = vset.pattern.permute.xlu0 2
        %932 = vperm.xlu0 %931, %v667
        %v933 = vpop.permute.xlu0 %932
        %935 = vset.pattern.permute.xlu0 2
        %936 = vperm.xlu0 %935, %v668
        %v937 = vpop.permute.xlu0 %936
        %939 = vset.pattern.permute.xlu0 2
        %940 = vperm.xlu0 %939, %v669
        %v941 = vpop.permute.xlu0 %940
        %943 = vset.pattern.permute.xlu0 2
        %944 = vperm.xlu0 %943, %v670
        %v945 = vpop.permute.xlu0 %944
        %947 = vset.pattern.permute.xlu0 2
        %948 = vperm.xlu0 %947, %v671
        %v949 = vpop.permute.xlu0 %948
        %951 = vset.pattern.permute.xlu0 2
        %952 = vperm.xlu0 %951, %v672
        %v953 = vpop.permute.xlu0 %952
        %955 = vset.pattern.permute.xlu0 2
        %956 = vperm.xlu0 %955, %v673
        %v957 = vpop.permute.xlu0 %956
        %959 = vset.pattern.permute.xlu0 2
        %960 = vperm.xlu0 %959, %v674
        %v961 = vpop.permute.xlu0 %960
        %v963 = vlaneseq
        %v964 = vshrl.u32 %v963, 7
        %v965 = vsub.s32 2, %v964
        %v966 = vrot.slane %v675, %v965
        %v967 = vmul.f32 %v901, %v966
        %v968 = vmul.f32 %v905, %v966
        %v969 = vmul.f32 %v909, %v966
        %v970 = vmul.f32 %v913, %v966
        %v971 = vmul.f32 %v917, %v966
        %v972 = vmul.f32 %v921, %v966
        %v973 = vmul.f32 %v925, %v966
        %v974 = vmul.f32 %v929, %v966
        %v975 = vmul.f32 %v933, %v966
        %v976 = vmul.f32 %v937, %v966
        %v977 = vmul.f32 %v941, %v966
        %v978 = vmul.f32 %v945, %v966
        %v979 = vmul.f32 %v949, %v966
        %v980 = vmul.f32 %v953, %v966
        %v981 = vmul.f32 %v957, %v966
        %v982 = vmul.f32 %v961, %v966
        %v983 = vadd.f32 %v883, %v967
        %v984 = vadd.f32 %v884, %v968
        %v985 = vadd.f32 %v885, %v969
        %v986 = vadd.f32 %v886, %v970
        %v987 = vadd.f32 %v887, %v971
        %v988 = vadd.f32 %v888, %v972
        %v989 = vadd.f32 %v889, %v973
        %v990 = vadd.f32 %v890, %v974
        %v991 = vadd.f32 %v891, %v975
        %v992 = vadd.f32 %v892, %v976
        %v993 = vadd.f32 %v893, %v977
        %v994 = vadd.f32 %v894, %v978
        %v995 = vadd.f32 %v895, %v979
        %v996 = vadd.f32 %v896, %v980
        %v997 = vadd.f32 %v897, %v981
        %v998 = vadd.f32 %v898, %v982
        %v999 = vld [vmem:[#allocation8] sm:$0x1]
        %v1001 = vlaneseq
        %v1002 = vshrl.u32 %v1001, 7
        %v1003 = vsub.s32 0, %v1002
        %v1004 = vrot.slane %v999, %v1003
        %v1006 = vmul.f32 %v983, %v1004
        %v1007 = vmul.f32 %v984, %v1004
        %v1008 = vmul.f32 %v985, %v1004
        %v1009 = vmul.f32 %v986, %v1004
        %v1010 = vmul.f32 %v987, %v1004
        %v1011 = vmul.f32 %v988, %v1004
        %v1012 = vmul.f32 %v989, %v1004
        %v1013 = vmul.f32 %v990, %v1004
        %v1014 = vmul.f32 %v991, %v1004
        %v1015 = vmul.f32 %v992, %v1004
        %v1016 = vmul.f32 %v993, %v1004
        %v1017 = vmul.f32 %v994, %v1004
        %v1018 = vmul.f32 %v995, %v1004
        %v1019 = vmul.f32 %v996, %v1004
        %v1020 = vmul.f32 %v997, %v1004
        %v1021 = vmul.f32 %v998, %v1004
        %v1022 = vld [vmem:[#allocation10] sm:$0x1]
        %v1024 = vlaneseq
        %v1025 = vshrl.u32 %v1024, 7
        %v1026 = vsub.s32 0, %v1025
        %v1027 = vrot.slane %v1022, %v1026
        %v1029 = vadd.f32 %v1006, %v1027
        %v1030 = vadd.f32 %v1007, %v1027
        %v1031 = vadd.f32 %v1008, %v1027
        %v1032 = vadd.f32 %v1009, %v1027
        %v1033 = vadd.f32 %v1010, %v1027
        %v1034 = vadd.f32 %v1011, %v1027
        %v1035 = vadd.f32 %v1012, %v1027
        %v1036 = vadd.f32 %v1013, %v1027
        %v1037 = vadd.f32 %v1014, %v1027
        %v1038 = vadd.f32 %v1015, %v1027
        %v1039 = vadd.f32 %v1016, %v1027
        %v1040 = vadd.f32 %v1017, %v1027
        %v1041 = vadd.f32 %v1018, %v1027
        %v1042 = vadd.f32 %v1019, %v1027
        %v1043 = vadd.f32 %v1020, %v1027
        %v1044 = vadd.f32 %v1021, %v1027
        %v1045 = vmax.f32 %v1029, 0.0
        %v1046 = vmax.f32 %v1030, 0.0
        %v1047 = vmax.f32 %v1031, 0.0
        %v1048 = vmax.f32 %v1032, 0.0
        %v1049 = vmax.f32 %v1033, 0.0
        %v1050 = vmax.f32 %v1034, 0.0
        %v1051 = vmax.f32 %v1035, 0.0
        %v1052 = vmax.f32 %v1036, 0.0
        %v1053 = vmax.f32 %v1037, 0.0
        %v1054 = vmax.f32 %v1038, 0.0
        %v1055 = vmax.f32 %v1039, 0.0
        %v1056 = vmax.f32 %v1040, 0.0
        %v1057 = vmax.f32 %v1041, 0.0
        %v1058 = vmax.f32 %v1042, 0.0
        %v1059 = vmax.f32 %v1043, 0.0
        %v1060 = vmax.f32 %v1044, 0.0
        %v1061 = vpack.c.bf16 %v1046, %v1045
        %v1062 = vpack.c.bf16 %v1048, %v1047
        %v1063 = vpack.c.bf16 %v1050, %v1049
        %v1064 = vpack.c.bf16 %v1052, %v1051
        %v1065 = vpack.c.bf16 %v1054, %v1053
        %v1066 = vpack.c.bf16 %v1056, %v1055
        %v1067 = vpack.c.bf16 %v1058, %v1057
        %v1068 = vpack.c.bf16 %v1060, %v1059
        %v1069 = vld [vmem:[#allocation11] sm:$0xff]
        %v1070 = vld [vmem:[#allocation11 + $0x8] sm:$0xff]
        %v1071 = vld [vmem:[#allocation11 + $0x10] sm:$0xff]
        %v1072 = vld [vmem:[#allocation11 + $0x18] sm:$0xff]
        %v1073 = vld [vmem:[#allocation11 + $0x20] sm:$0xff]
        %v1074 = vld [vmem:[#allocation11 + $0x28] sm:$0xff]
        %v1075 = vld [vmem:[#allocation11 + $0x30] sm:$0xff]
        %v1076 = vld [vmem:[#allocation11 + $0x38] sm:$0xff]
        %v1077 = vld [vmem:[#allocation11 + $0x40] sm:$0xff]
        %v1078 = vld [vmem:[#allocation11 + $0x48] sm:$0xff]
        %v1079 = vld [vmem:[#allocation11 + $0x50] sm:$0xff]
        %v1080 = vld [vmem:[#allocation11 + $0x58] sm:$0xff]
        %v1081 = vld [vmem:[#allocation11 + $0x60] sm:$0xff]
        %v1082 = vld [vmem:[#allocation11 + $0x68] sm:$0xff]
        %v1083 = vld [vmem:[#allocation11 + $0x70] sm:$0xff]
        %v1084 = vld [vmem:[#allocation11 + $0x78] sm:$0xff]
        %v1085 = vld [vmem:[#allocation13] sm:$0x3]
        %v1087 = vlaneseq
        %v1088 = vshrl.u32 %v1087, 7
        %v1089 = vsub.s32 0, %v1088
        %v1090 = vrot.slane %v1085, %v1089
        %v1091 = vlaneseq
        %v1092 = vshrl.u32 %v1091, 7
        %v1093 = vsub.s32 1, %v1092
        %v1094 = vrot.slane %v1085, %v1093
        %v1113 = vunpack.c.l.b16 %v1069
        %v1114 = vunpack.c.h.b16 %v1069
        %v1115 = vunpack.c.l.b16 %v1070
        %v1116 = vunpack.c.h.b16 %v1070
        %v1117 = vunpack.c.l.b16 %v1071
        %v1118 = vunpack.c.h.b16 %v1071
        %v1119 = vunpack.c.l.b16 %v1072
        %v1120 = vunpack.c.h.b16 %v1072
        %v1121 = vunpack.c.l.b16 %v1073
        %v1122 = vunpack.c.h.b16 %v1073
        %v1123 = vunpack.c.l.b16 %v1074
        %v1124 = vunpack.c.h.b16 %v1074
        %v1125 = vunpack.c.l.b16 %v1075
        %v1126 = vunpack.c.h.b16 %v1075
        %v1127 = vunpack.c.l.b16 %v1076
        %v1128 = vunpack.c.h.b16 %v1076
        %v1129 = vunpack.c.l.b16 %v1077
        %v1130 = vunpack.c.h.b16 %v1077
        %v1131 = vunpack.c.l.b16 %v1078
        %v1132 = vunpack.c.h.b16 %v1078
        %v1133 = vunpack.c.l.b16 %v1079
        %v1134 = vunpack.c.h.b16 %v1079
        %v1135 = vunpack.c.l.b16 %v1080
        %v1136 = vunpack.c.h.b16 %v1080
        %v1137 = vunpack.c.l.b16 %v1081
        %v1138 = vunpack.c.h.b16 %v1081
        %v1139 = vunpack.c.l.b16 %v1082
        %v1140 = vunpack.c.h.b16 %v1082
        %v1141 = vunpack.c.l.b16 %v1083
        %v1142 = vunpack.c.h.b16 %v1083
        %v1143 = vunpack.c.l.b16 %v1084
        %v1144 = vunpack.c.h.b16 %v1084
        %v1145 = vpack.c.b16 %v1115, %v1113
        %v1146 = vpack.c.b16 %v1116, %v1114
        %v1147 = vpack.c.b16 %v1119, %v1117
        %v1148 = vpack.c.b16 %v1120, %v1118
        %v1149 = vpack.c.b16 %v1123, %v1121
        %v1150 = vpack.c.b16 %v1124, %v1122
        %v1151 = vpack.c.b16 %v1127, %v1125
        %v1152 = vpack.c.b16 %v1128, %v1126
        %v1153 = vpack.c.b16 %v1131, %v1129
        %v1154 = vpack.c.b16 %v1132, %v1130
        %v1155 = vpack.c.b16 %v1135, %v1133
        %v1156 = vpack.c.b16 %v1136, %v1134
        %v1157 = vpack.c.b16 %v1139, %v1137
        %v1158 = vpack.c.b16 %v1140, %v1138
        %v1159 = vpack.c.b16 %v1143, %v1141
        %v1160 = vpack.c.b16 %v1144, %v1142
        %1177 = vmatprep.subr.bf16.mxu0 %v1146
        %1178 = vmatpush1.bf16.msra.mxu0 %v1145
        %1179 = vmatprep.subr.bf16.mxu0 %v1148
        %1180 = vmatpush1.bf16.msra.mxu0 %v1147
        %1181 = vmatprep.subr.bf16.mxu0 %v1150
        %1182 = vmatpush1.bf16.msra.mxu0 %v1149
        %1183 = vmatprep.subr.bf16.mxu0 %v1152
        %1184 = vmatpush1.bf16.msra.mxu0 %v1151
        %1185 = vmatprep.subr.bf16.mxu0 %v1154
        %1186 = vmatpush1.bf16.msra.mxu0 %v1153
        %1187 = vmatprep.subr.bf16.mxu0 %v1156
        %1188 = vmatpush1.bf16.msra.mxu0 %v1155
        %1189 = vmatprep.subr.bf16.mxu0 %v1158
        %1190 = vmatpush1.bf16.msra.mxu0 %v1157
        %1191 = vmatprep.subr.bf16.mxu0 %v1160
        %1192 = vmatpush1.bf16.msra.mxu0 %v1159
        %1193 = vmatprep.subr.bf16.mxu0 0
        %1194 = vmatpush1.bf16.msra.mxu0 0
        %1195 = vmatprep.subr.bf16.mxu0 0
        %1196 = vmatpush1.bf16.msra.mxu0 0
        %1197 = vmatprep.subr.bf16.mxu0 0
        %1198 = vmatpush1.bf16.msra.mxu0 0
        %1199 = vmatprep.subr.bf16.mxu0 0
        %1200 = vmatpush1.bf16.msra.mxu0 0
        %1201 = vmatprep.subr.bf16.mxu0 0
        %1202 = vmatpush1.bf16.msra.mxu0 0
        %1203 = vmatprep.subr.bf16.mxu0 0
        %1204 = vmatpush1.bf16.msra.mxu0 0
        %1205 = vmatprep.subr.bf16.mxu0 0
        %1206 = vmatpush1.bf16.msra.mxu0 0
        %1207 = vmatprep.subr.bf16.mxu0 0
        %1208 = vmatpush1.bf16.msra.mxu0 0
        %1209 = vmatprep.mubr.bf16.mxu0 0
        %1210 = vmatmul.mubr.bf16.gmra.mrb[0].mxu0 %v1061
        %v1211 = vpop.f32.mrb[0].mxu0
        %v1212 = vadd.f32 %v1090, %v1211
        %v1213 = vpop.f32.mrb[0].mxu0
        %v1214 = vadd.f32 %v1094, %v1213
        %v1215 = vpop.f32.mrb[0].mxu0
        %v1216 = vadd.f32 %v1090, %v1215
        %v1217 = vpop.f32.mrb[0].mxu0
        %v1218 = vadd.f32 %v1094, %v1217
        %1219 = vmatprep.mubr.bf16.mxu0 0
        %1220 = vmatmul.mubr.bf16.gmra.mrb[0].mxu0 %v1062
        %v1221 = vpop.f32.mrb[0].mxu0
        %v1222 = vadd.f32 %v1090, %v1221
        %v1223 = vpop.f32.mrb[0].mxu0
        %v1224 = vadd.f32 %v1094, %v1223
        %v1225 = vpop.f32.mrb[0].mxu0
        %v1226 = vadd.f32 %v1090, %v1225
        %v1227 = vpop.f32.mrb[0].mxu0
        %v1228 = vadd.f32 %v1094, %v1227
        %1229 = vmatprep.mubr.bf16.mxu0 0
        %1230 = vmatmul.mubr.bf16.gmra.mrb[0].mxu0 %v1063
        %v1231 = vpop.f32.mrb[0].mxu0
        %v1232 = vadd.f32 %v1090, %v1231
        %v1233 = vpop.f32.mrb[0].mxu0
        %v1234 = vadd.f32 %v1094, %v1233
        %v1235 = vpop.f32.mrb[0].mxu0
        %v1236 = vadd.f32 %v1090, %v1235
        %v1237 = vpop.f32.mrb[0].mxu0
        %v1238 = vadd.f32 %v1094, %v1237
        %1239 = vmatprep.mubr.bf16.mxu0 0
        %1240 = vmatmul.mubr.bf16.gmra.mrb[0].mxu0 %v1064
        %v1241 = vpop.f32.mrb[0].mxu0
        %v1242 = vadd.f32 %v1090, %v1241
        %v1243 = vpop.f32.mrb[0].mxu0
        %v1244 = vadd.f32 %v1094, %v1243
        %v1245 = vpop.f32.mrb[0].mxu0
        %v1246 = vadd.f32 %v1090, %v1245
        %v1247 = vpop.f32.mrb[0].mxu0
        %v1248 = vadd.f32 %v1094, %v1247
        %1249 = vmatprep.mubr.bf16.mxu0 0
        %1250 = vmatmul.mubr.bf16.gmra.mrb[0].mxu0 %v1065
        %v1251 = vpop.f32.mrb[0].mxu0
        %v1252 = vadd.f32 %v1090, %v1251
        %v1253 = vpop.f32.mrb[0].mxu0
        %v1254 = vadd.f32 %v1094, %v1253
        %v1255 = vpop.f32.mrb[0].mxu0
        %v1256 = vadd.f32 %v1090, %v1255
        %v1257 = vpop.f32.mrb[0].mxu0
        %v1258 = vadd.f32 %v1094, %v1257
        %1259 = vmatprep.mubr.bf16.mxu0 0
        %1260 = vmatmul.mubr.bf16.gmra.mrb[0].mxu0 %v1066
        %v1261 = vpop.f32.mrb[0].mxu0
        %v1262 = vadd.f32 %v1090, %v1261
        %v1263 = vpop.f32.mrb[0].mxu0
        %v1264 = vadd.f32 %v1094, %v1263
        %v1265 = vpop.f32.mrb[0].mxu0
        %v1266 = vadd.f32 %v1090, %v1265
        %v1267 = vpop.f32.mrb[0].mxu0
        %v1268 = vadd.f32 %v1094, %v1267
        %1269 = vmatprep.mubr.bf16.mxu0 0
        %1270 = vmatmul.mubr.bf16.gmra.mrb[0].mxu0 %v1067
        %v1271 = vpop.f32.mrb[0].mxu0
        %v1272 = vadd.f32 %v1090, %v1271
        %v1273 = vpop.f32.mrb[0].mxu0
        %v1274 = vadd.f32 %v1094, %v1273
        %v1275 = vpop.f32.mrb[0].mxu0
        %v1276 = vadd.f32 %v1090, %v1275
        %v1277 = vpop.f32.mrb[0].mxu0
        %v1278 = vadd.f32 %v1094, %v1277
        %1279 = vmatprep.mubr.bf16.mxu0 0
        %1280 = vmatmul.mubr.bf16.gmra.mrb[0].mxu0 %v1068
        %v1281 = vpop.f32.mrb[0].mxu0
        %v1282 = vadd.f32 %v1090, %v1281
        %v1283 = vpop.f32.mrb[0].mxu0
        %v1284 = vadd.f32 %v1094, %v1283
        %v1285 = vpop.f32.mrb[0].mxu0
        %v1286 = vadd.f32 %v1090, %v1285
        %v1287 = vpop.f32.mrb[0].mxu0
        %v1288 = vadd.f32 %v1094, %v1287
        %1289 = vdwg.mxu0
        %v1290 = vmax.f32 %v1212, %v1216
        %v1291 = vrot.slane %v1290, 4
        %v1292 = vmax.f32 %v1290, %v1291
        %v1293 = vrot.slane %v1292, 2
        %v1294 = vmax.f32 %v1292, %v1293
        %v1295 = vrot.slane %v1294, 1
        %v1296 = vmax.f32 %v1294, %v1295
        %v1297 = vmax.f32 %v1214, %v1218
        %v1298 = vrot.slane %v1297, 4
        %v1299 = vmax.f32 %v1297, %v1298
        %v1300 = vrot.slane %v1299, 2
        %v1301 = vmax.f32 %v1299, %v1300
        %v1302 = vrot.slane %v1301, 1
        %v1303 = vmax.f32 %v1301, %v1302
        %v1304 = vmax.f32 %v1222, %v1226
        %v1305 = vrot.slane %v1304, 4
        %v1306 = vmax.f32 %v1304, %v1305
        %v1307 = vrot.slane %v1306, 2
        %v1308 = vmax.f32 %v1306, %v1307
        %v1309 = vrot.slane %v1308, 1
        %v1310 = vmax.f32 %v1308, %v1309
        %v1311 = vmax.f32 %v1224, %v1228
        %v1312 = vrot.slane %v1311, 4
        %v1313 = vmax.f32 %v1311, %v1312
        %v1314 = vrot.slane %v1313, 2
        %v1315 = vmax.f32 %v1313, %v1314
        %v1316 = vrot.slane %v1315, 1
        %v1317 = vmax.f32 %v1315, %v1316
        %v1318 = vmax.f32 %v1232, %v1236
        %v1319 = vrot.slane %v1318, 4
        %v1320 = vmax.f32 %v1318, %v1319
        %v1321 = vrot.slane %v1320, 2
        %v1322 = vmax.f32 %v1320, %v1321
        %v1323 = vrot.slane %v1322, 1
        %v1324 = vmax.f32 %v1322, %v1323
        %v1325 = vmax.f32 %v1234, %v1238
        %v1326 = vrot.slane %v1325, 4
        %v1327 = vmax.f32 %v1325, %v1326
        %v1328 = vrot.slane %v1327, 2
        %v1329 = vmax.f32 %v1327, %v1328
        %v1330 = vrot.slane %v1329, 1
        %v1331 = vmax.f32 %v1329, %v1330
        %v1332 = vmax.f32 %v1242, %v1246
        %v1333 = vrot.slane %v1332, 4
        %v1334 = vmax.f32 %v1332, %v1333
        %v1335 = vrot.slane %v1334, 2
        %v1336 = vmax.f32 %v1334, %v1335
        %v1337 = vrot.slane %v1336, 1
        %v1338 = vmax.f32 %v1336, %v1337
        %v1339 = vmax.f32 %v1244, %v1248
        %v1340 = vrot.slane %v1339, 4
        %v1341 = vmax.f32 %v1339, %v1340
        %v1342 = vrot.slane %v1341, 2
        %v1343 = vmax.f32 %v1341, %v1342
        %v1344 = vrot.slane %v1343, 1
        %v1345 = vmax.f32 %v1343, %v1344
        %v1346 = vmax.f32 %v1252, %v1256
        %v1347 = vrot.slane %v1346, 4
        %v1348 = vmax.f32 %v1346, %v1347
        %v1349 = vrot.slane %v1348, 2
        %v1350 = vmax.f32 %v1348, %v1349
        %v1351 = vrot.slane %v1350, 1
        %v1352 = vmax.f32 %v1350, %v1351
        %v1353 = vmax.f32 %v1254, %v1258
        %v1354 = vrot.slane %v1353, 4
        %v1355 = vmax.f32 %v1353, %v1354
        %v1356 = vrot.slane %v1355, 2
        %v1357 = vmax.f32 %v1355, %v1356
        %v1358 = vrot.slane %v1357, 1
        %v1359 = vmax.f32 %v1357, %v1358
        %v1360 = vmax.f32 %v1262, %v1266
        %v1361 = vrot.slane %v1360, 4
        %v1362 = vmax.f32 %v1360, %v1361
        %v1363 = vrot.slane %v1362, 2
        %v1364 = vmax.f32 %v1362, %v1363
        %v1365 = vrot.slane %v1364, 1
        %v1366 = vmax.f32 %v1364, %v1365
        %v1367 = vmax.f32 %v1264, %v1268
        %v1368 = vrot.slane %v1367, 4
        %v1369 = vmax.f32 %v1367, %v1368
        %v1370 = vrot.slane %v1369, 2
        %v1371 = vmax.f32 %v1369, %v1370
        %v1372 = vrot.slane %v1371, 1
        %v1373 = vmax.f32 %v1371, %v1372
        %v1374 = vmax.f32 %v1272, %v1276
        %v1375 = vrot.slane %v1374, 4
        %v1376 = vmax.f32 %v1374, %v1375
        %v1377 = vrot.slane %v1376, 2
        %v1378 = vmax.f32 %v1376, %v1377
        %v1379 = vrot.slane %v1378, 1
        %v1380 = vmax.f32 %v1378, %v1379
        %v1381 = vmax.f32 %v1274, %v1278
        %v1382 = vrot.slane %v1381, 4
        %v1383 = vmax.f32 %v1381, %v1382
        %v1384 = vrot.slane %v1383, 2
        %v1385 = vmax.f32 %v1383, %v1384
        %v1386 = vrot.slane %v1385, 1
        %v1387 = vmax.f32 %v1385, %v1386
        %v1388 = vmax.f32 %v1282, %v1286
        %v1389 = vrot.slane %v1388, 4
        %v1390 = vmax.f32 %v1388, %v1389
        %v1391 = vrot.slane %v1390, 2
        %v1392 = vmax.f32 %v1390, %v1391
        %v1393 = vrot.slane %v1392, 1
        %v1394 = vmax.f32 %v1392, %v1393
        %v1395 = vmax.f32 %v1284, %v1288
        %v1396 = vrot.slane %v1395, 4
        %v1397 = vmax.f32 %v1395, %v1396
        %v1398 = vrot.slane %v1397, 2
        %v1399 = vmax.f32 %v1397, %v1398
        %v1400 = vrot.slane %v1399, 1
        %v1401 = vmax.f32 %v1399, %v1400
        %v1402 = vpack.c.bf16 %v1296, %v1296
        %v1403 = vpack.c.bf16 %v1303, %v1303
        %v1404 = vpack.c.bf16 %v1310, %v1310
        %v1405 = vpack.c.bf16 %v1317, %v1317
        %v1406 = vpack.c.bf16 %v1324, %v1324
        %v1407 = vpack.c.bf16 %v1331, %v1331
        %v1408 = vpack.c.bf16 %v1338, %v1338
        %v1409 = vpack.c.bf16 %v1345, %v1345
        %v1410 = vpack.c.bf16 %v1352, %v1352
        %v1411 = vpack.c.bf16 %v1359, %v1359
        %v1412 = vpack.c.bf16 %v1366, %v1366
        %v1413 = vpack.c.bf16 %v1373, %v1373
        %v1414 = vpack.c.bf16 %v1380, %v1380
        %v1415 = vpack.c.bf16 %v1387, %v1387
        %v1416 = vpack.c.bf16 %v1394, %v1394
        %v1417 = vpack.c.bf16 %v1401, %v1401
        %v1418 = vld [vmem:[#allocation14] sm:$0xff]
        %v1419 = vld [vmem:[#allocation14 + $0x8] sm:$0xff]
        %v1420 = vld [vmem:[#allocation14 + $0x10] sm:$0xff]
        %v1421 = vld [vmem:[#allocation14 + $0x18] sm:$0xff]
        %v1422 = vld [vmem:[#allocation14 + $0x20] sm:$0xff]
        %v1423 = vld [vmem:[#allocation14 + $0x28] sm:$0xff]
        %v1424 = vld [vmem:[#allocation14 + $0x30] sm:$0xff]
        %v1425 = vld [vmem:[#allocation14 + $0x38] sm:$0xff]
        %v1426 = vld [vmem:[#allocation14 + $0x40] sm:$0xff]
        %v1427 = vld [vmem:[#allocation14 + $0x48] sm:$0xff]
        %v1428 = vld [vmem:[#allocation14 + $0x50] sm:$0xff]
        %v1429 = vld [vmem:[#allocation14 + $0x58] sm:$0xff]
        %v1430 = vld [vmem:[#allocation14 + $0x60] sm:$0xff]
        %v1431 = vld [vmem:[#allocation14 + $0x68] sm:$0xff]
        %v1432 = vld [vmem:[#allocation14 + $0x70] sm:$0xff]
        %v1433 = vld [vmem:[#allocation14 + $0x78] sm:$0xff]
        %v1434 = vld [vmem:[#allocation14 + $0x80] sm:$0xff]
        %v1435 = vld [vmem:[#allocation14 + $0x88] sm:$0xff]
        %v1436 = vld [vmem:[#allocation14 + $0x90] sm:$0xff]
        %v1437 = vld [vmem:[#allocation14 + $0x98] sm:$0xff]
        %v1438 = vld [vmem:[#allocation14 + $0xa0] sm:$0xff]
        %v1439 = vld [vmem:[#allocation14 + $0xa8] sm:$0xff]
        %v1440 = vld [vmem:[#allocation14 + $0xb0] sm:$0xff]
        %v1441 = vld [vmem:[#allocation14 + $0xb8] sm:$0xff]
        %v1442 = vld [vmem:[#allocation14 + $0xc0] sm:$0xff]
        %v1443 = vld [vmem:[#allocation14 + $0xc8] sm:$0xff]
        %v1444 = vld [vmem:[#allocation14 + $0xd0] sm:$0xff]
        %v1445 = vld [vmem:[#allocation14 + $0xd8] sm:$0xff]
        %v1446 = vld [vmem:[#allocation14 + $0xe0] sm:$0xff]
        %v1447 = vld [vmem:[#allocation14 + $0xe8] sm:$0xff]
        %v1448 = vld [vmem:[#allocation14 + $0xf0] sm:$0xff]
        %v1449 = vld [vmem:[#allocation14 + $0xf8] sm:$0xff]
        %v1450 = vld [vmem:[#allocation14 + $0x100] sm:$0xff]
        %v1451 = vld [vmem:[#allocation14 + $0x108] sm:$0xff]
        %v1452 = vld [vmem:[#allocation14 + $0x110] sm:$0xff]
        %v1453 = vld [vmem:[#allocation14 + $0x118] sm:$0xff]
        %v1454 = vld [vmem:[#allocation14 + $0x120] sm:$0xff]
        %v1455 = vld [vmem:[#allocation14 + $0x128] sm:$0xff]
        %v1456 = vld [vmem:[#allocation14 + $0x130] sm:$0xff]
        %v1457 = vld [vmem:[#allocation14 + $0x138] sm:$0xff]
        %v1458 = vld [vmem:[#allocation14 + $0x140] sm:$0xff]
        %v1459 = vld [vmem:[#allocation14 + $0x148] sm:$0xff]
        %v1460 = vld [vmem:[#allocation14 + $0x150] sm:$0xff]
        %v1461 = vld [vmem:[#allocation14 + $0x158] sm:$0xff]
        %v1462 = vld [vmem:[#allocation14 + $0x160] sm:$0xff]
        %v1463 = vld [vmem:[#allocation14 + $0x168] sm:$0xff]
        %v1464 = vld [vmem:[#allocation14 + $0x170] sm:$0xff]
        %v1465 = vld [vmem:[#allocation14 + $0x178] sm:$0xff]
        %v1466 = vld [vmem:[#allocation14 + $0x180] sm:$0xff]
        %v1467 = vld [vmem:[#allocation14 + $0x188] sm:$0xff]
        %v1468 = vld [vmem:[#allocation14 + $0x190] sm:$0xff]
        %v1469 = vld [vmem:[#allocation14 + $0x198] sm:$0xff]
        %v1470 = vld [vmem:[#allocation14 + $0x1a0] sm:$0xff]
        %v1471 = vld [vmem:[#allocation14 + $0x1a8] sm:$0xff]
        %v1472 = vld [vmem:[#allocation14 + $0x1b0] sm:$0xff]
        %v1473 = vld [vmem:[#allocation14 + $0x1b8] sm:$0xff]
        %v1474 = vld [vmem:[#allocation14 + $0x1c0] sm:$0xff]
        %v1475 = vld [vmem:[#allocation14 + $0x1c8] sm:$0xff]
        %v1476 = vld [vmem:[#allocation14 + $0x1d0] sm:$0xff]
        %v1477 = vld [vmem:[#allocation14 + $0x1d8] sm:$0xff]
        %v1478 = vld [vmem:[#allocation14 + $0x1e0] sm:$0xff]
        %v1479 = vld [vmem:[#allocation14 + $0x1e8] sm:$0xff]
        %v1480 = vld [vmem:[#allocation14 + $0x1f0] sm:$0xff]
        %v1481 = vld [vmem:[#allocation14 + $0x1f8] sm:$0xff]
        %v1498 = vunpack.c.l.b16 %v1402
        %v1499 = vunpack.c.l.b16 %v1403
        %v1500 = vunpack.c.l.b16 %v1404
        %v1501 = vunpack.c.l.b16 %v1405
        %v1502 = vunpack.c.l.b16 %v1406
        %v1503 = vunpack.c.l.b16 %v1407
        %v1504 = vunpack.c.l.b16 %v1408
        %v1505 = vunpack.c.l.b16 %v1409
        %v1506 = vunpack.c.l.b16 %v1410
        %v1507 = vunpack.c.l.b16 %v1411
        %v1508 = vunpack.c.l.b16 %v1412
        %v1509 = vunpack.c.l.b16 %v1413
        %v1510 = vunpack.c.l.b16 %v1414
        %v1511 = vunpack.c.l.b16 %v1415
        %v1512 = vunpack.c.l.b16 %v1416
        %v1513 = vunpack.c.l.b16 %v1417
        %vm1514 = vcmask 1041409
        %v1515 = vsel %vm1514, %v1500, %v1498
        %vm1516 = vcmask 1042434
        %v1517 = vsel %vm1516, %v1502, %v1515
        %vm1518 = vcmask 1043459
        %v1519 = vsel %vm1518, %v1504, %v1517
        %vm1520 = vcmask 1044484
        %v1521 = vsel %vm1520, %v1506, %v1519
        %vm1522 = vcmask 1045509
        %v1523 = vsel %vm1522, %v1508, %v1521
        %vm1524 = vcmask 1046534
        %v1525 = vsel %vm1524, %v1510, %v1523
        %vm1526 = vcmask 1047559
        %v1527 = vsel %vm1526, %v1512, %v1525
        %v1528 = vsel %vm1514, %v1501, %v1499
        %v1529 = vsel %vm1516, %v1503, %v1528
        %v1530 = vsel %vm1518, %v1505, %v1529
        %v1531 = vsel %vm1520, %v1507, %v1530
        %v1532 = vsel %vm1522, %v1509, %v1531
        %v1533 = vsel %vm1524, %v1511, %v1532
        %v1534 = vsel %vm1526, %v1513, %v1533
        %v1535 = vpack.c.b16 %v1527, %v1527
        %v1536 = vpack.c.b16 %v1534, %v1534
        %v1603 = vunpack.c.l.b16 %v1418
        %v1604 = vunpack.c.h.b16 %v1418
        %v1605 = vunpack.c.l.b16 %v1419
        %v1606 = vunpack.c.h.b16 %v1419
        %v1607 = vunpack.c.l.b16 %v1420
        %v1608 = vunpack.c.h.b16 %v1420
        %v1609 = vunpack.c.l.b16 %v1421
        %v1610 = vunpack.c.h.b16 %v1421
        %v1611 = vunpack.c.l.b16 %v1422
        %v1612 = vunpack.c.h.b16 %v1422
        %v1613 = vunpack.c.l.b16 %v1423
        %v1614 = vunpack.c.h.b16 %v1423
        %v1615 = vunpack.c.l.b16 %v1424
        %v1616 = vunpack.c.h.b16 %v1424
        %v1617 = vunpack.c.l.b16 %v1425
        %v1618 = vunpack.c.h.b16 %v1425
        %v1619 = vunpack.c.l.b16 %v1426
        %v1620 = vunpack.c.h.b16 %v1426
        %v1621 = vunpack.c.l.b16 %v1427
        %v1622 = vunpack.c.h.b16 %v1427
        %v1623 = vunpack.c.l.b16 %v1428
        %v1624 = vunpack.c.h.b16 %v1428
        %v1625 = vunpack.c.l.b16 %v1429
        %v1626 = vunpack.c.h.b16 %v1429
        %v1627 = vunpack.c.l.b16 %v1430
        %v1628 = vunpack.c.h.b16 %v1430
        %v1629 = vunpack.c.l.b16 %v1431
        %v1630 = vunpack.c.h.b16 %v1431
        %v1631 = vunpack.c.l.b16 %v1432
        %v1632 = vunpack.c.h.b16 %v1432
        %v1633 = vunpack.c.l.b16 %v1433
        %v1634 = vunpack.c.h.b16 %v1433
        %v1635 = vunpack.c.l.b16 %v1434
        %v1636 = vunpack.c.h.b16 %v1434
        %v1637 = vunpack.c.l.b16 %v1435
        %v1638 = vunpack.c.h.b16 %v1435
        %v1639 = vunpack.c.l.b16 %v1436
        %v1640 = vunpack.c.h.b16 %v1436
        %v1641 = vunpack.c.l.b16 %v1437
        %v1642 = vunpack.c.h.b16 %v1437
        %v1643 = vunpack.c.l.b16 %v1438
        %v1644 = vunpack.c.h.b16 %v1438
        %v1645 = vunpack.c.l.b16 %v1439
        %v1646 = vunpack.c.h.b16 %v1439
        %v1647 = vunpack.c.l.b16 %v1440
        %v1648 = vunpack.c.h.b16 %v1440
        %v1649 = vunpack.c.l.b16 %v1441
        %v1650 = vunpack.c.h.b16 %v1441
        %v1651 = vunpack.c.l.b16 %v1442
        %v1652 = vunpack.c.h.b16 %v1442
        %v1653 = vunpack.c.l.b16 %v1443
        %v1654 = vunpack.c.h.b16 %v1443
        %v1655 = vunpack.c.l.b16 %v1444
        %v1656 = vunpack.c.h.b16 %v1444
        %v1657 = vunpack.c.l.b16 %v1445
        %v1658 = vunpack.c.h.b16 %v1445
        %v1659 = vunpack.c.l.b16 %v1446
        %v1660 = vunpack.c.h.b16 %v1446
        %v1661 = vunpack.c.l.b16 %v1447
        %v1662 = vunpack.c.h.b16 %v1447
        %v1663 = vunpack.c.l.b16 %v1448
        %v1664 = vunpack.c.h.b16 %v1448
        %v1665 = vunpack.c.l.b16 %v1449
        %v1666 = vunpack.c.h.b16 %v1449
        %v1667 = vunpack.c.l.b16 %v1450
        %v1668 = vunpack.c.h.b16 %v1450
        %v1669 = vunpack.c.l.b16 %v1451
        %v1670 = vunpack.c.h.b16 %v1451
        %v1671 = vunpack.c.l.b16 %v1452
        %v1672 = vunpack.c.h.b16 %v1452
        %v1673 = vunpack.c.l.b16 %v1453
        %v1674 = vunpack.c.h.b16 %v1453
        %v1675 = vunpack.c.l.b16 %v1454
        %v1676 = vunpack.c.h.b16 %v1454
        %v1677 = vunpack.c.l.b16 %v1455
        %v1678 = vunpack.c.h.b16 %v1455
        %v1679 = vunpack.c.l.b16 %v1456
        %v1680 = vunpack.c.h.b16 %v1456
        %v1681 = vunpack.c.l.b16 %v1457
        %v1682 = vunpack.c.h.b16 %v1457
        %v1683 = vunpack.c.l.b16 %v1458
        %v1684 = vunpack.c.h.b16 %v1458
        %v1685 = vunpack.c.l.b16 %v1459
        %v1686 = vunpack.c.h.b16 %v1459
        %v1687 = vunpack.c.l.b16 %v1460
        %v1688 = vunpack.c.h.b16 %v1460
        %v1689 = vunpack.c.l.b16 %v1461
        %v1690 = vunpack.c.h.b16 %v1461
        %v1691 = vunpack.c.l.b16 %v1462
        %v1692 = vunpack.c.h.b16 %v1462
        %v1693 = vunpack.c.l.b16 %v1463
        %v1694 = vunpack.c.h.b16 %v1463
        %v1695 = vunpack.c.l.b16 %v1464
        %v1696 = vunpack.c.h.b16 %v1464
        %v1697 = vunpack.c.l.b16 %v1465
        %v1698 = vunpack.c.h.b16 %v1465
        %v1699 = vunpack.c.l.b16 %v1466
        %v1700 = vunpack.c.h.b16 %v1466
        %v1701 = vunpack.c.l.b16 %v1467
        %v1702 = vunpack.c.h.b16 %v1467
        %v1703 = vunpack.c.l.b16 %v1468
        %v1704 = vunpack.c.h.b16 %v1468
        %v1705 = vunpack.c.l.b16 %v1469
        %v1706 = vunpack.c.h.b16 %v1469
        %v1707 = vunpack.c.l.b16 %v1470
        %v1708 = vunpack.c.h.b16 %v1470
        %v1709 = vunpack.c.l.b16 %v1471
        %v1710 = vunpack.c.h.b16 %v1471
        %v1711 = vunpack.c.l.b16 %v1472
        %v1712 = vunpack.c.h.b16 %v1472
        %v1713 = vunpack.c.l.b16 %v1473
        %v1714 = vunpack.c.h.b16 %v1473
        %v1715 = vunpack.c.l.b16 %v1474
        %v1716 = vunpack.c.h.b16 %v1474
        %v1717 = vunpack.c.l.b16 %v1475
        %v1718 = vunpack.c.h.b16 %v1475
        %v1719 = vunpack.c.l.b16 %v1476
        %v1720 = vunpack.c.h.b16 %v1476
        %v1721 = vunpack.c.l.b16 %v1477
        %v1722 = vunpack.c.h.b16 %v1477
        %v1723 = vunpack.c.l.b16 %v1478
        %v1724 = vunpack.c.h.b16 %v1478
        %v1725 = vunpack.c.l.b16 %v1479
        %v1726 = vunpack.c.h.b16 %v1479
        %v1727 = vunpack.c.l.b16 %v1480
        %v1728 = vunpack.c.h.b16 %v1480
        %v1729 = vunpack.c.l.b16 %v1481
        %v1730 = vunpack.c.h.b16 %v1481
        %v1731 = vpack.c.b16 %v1607, %v1603
        %v1732 = vpack.c.b16 %v1608, %v1604
        %v1733 = vpack.c.b16 %v1609, %v1605
        %v1734 = vpack.c.b16 %v1610, %v1606
        %v1735 = vpack.c.b16 %v1615, %v1611
        %v1736 = vpack.c.b16 %v1616, %v1612
        %v1737 = vpack.c.b16 %v1617, %v1613
        %v1738 = vpack.c.b16 %v1618, %v1614
        %v1739 = vpack.c.b16 %v1623, %v1619
        %v1740 = vpack.c.b16 %v1624, %v1620
        %v1741 = vpack.c.b16 %v1625, %v1621
        %v1742 = vpack.c.b16 %v1626, %v1622
        %v1743 = vpack.c.b16 %v1631, %v1627
        %v1744 = vpack.c.b16 %v1632, %v1628
        %v1745 = vpack.c.b16 %v1633, %v1629
        %v1746 = vpack.c.b16 %v1634, %v1630
        %v1747 = vpack.c.b16 %v1639, %v1635
        %v1748 = vpack.c.b16 %v1640, %v1636
        %v1749 = vpack.c.b16 %v1641, %v1637
        %v1750 = vpack.c.b16 %v1642, %v1638
        %v1751 = vpack.c.b16 %v1647, %v1643
        %v1752 = vpack.c.b16 %v1648, %v1644
        %v1753 = vpack.c.b16 %v1649, %v1645
        %v1754 = vpack.c.b16 %v1650, %v1646
        %v1755 = vpack.c.b16 %v1655, %v1651
        %v1756 = vpack.c.b16 %v1656, %v1652
        %v1757 = vpack.c.b16 %v1657, %v1653
        %v1758 = vpack.c.b16 %v1658, %v1654
        %v1759 = vpack.c.b16 %v1663, %v1659
        %v1760 = vpack.c.b16 %v1664, %v1660
        %v1761 = vpack.c.b16 %v1665, %v1661
        %v1762 = vpack.c.b16 %v1666, %v1662
        %v1763 = vpack.c.b16 %v1671, %v1667
        %v1764 = vpack.c.b16 %v1672, %v1668
        %v1765 = vpack.c.b16 %v1673, %v1669
        %v1766 = vpack.c.b16 %v1674, %v1670
        %v1767 = vpack.c.b16 %v1679, %v1675
        %v1768 = vpack.c.b16 %v1680, %v1676
        %v1769 = vpack.c.b16 %v1681, %v1677
        %v1770 = vpack.c.b16 %v1682, %v1678
        %v1771 = vpack.c.b16 %v1687, %v1683
        %v1772 = vpack.c.b16 %v1688, %v1684
        %v1773 = vpack.c.b16 %v1689, %v1685
        %v1774 = vpack.c.b16 %v1690, %v1686
        %v1775 = vpack.c.b16 %v1695, %v1691
        %v1776 = vpack.c.b16 %v1696, %v1692
        %v1777 = vpack.c.b16 %v1697, %v1693
        %v1778 = vpack.c.b16 %v1698, %v1694
        %v1779 = vpack.c.b16 %v1703, %v1699
        %v1780 = vpack.c.b16 %v1704, %v1700
        %v1781 = vpack.c.b16 %v1705, %v1701
        %v1782 = vpack.c.b16 %v1706, %v1702
        %v1783 = vpack.c.b16 %v1711, %v1707
        %v1784 = vpack.c.b16 %v1712, %v1708
        %v1785 = vpack.c.b16 %v1713, %v1709
        %v1786 = vpack.c.b16 %v1714, %v1710
        %v1787 = vpack.c.b16 %v1719, %v1715
        %v1788 = vpack.c.b16 %v1720, %v1716
        %v1789 = vpack.c.b16 %v1721, %v1717
        %v1790 = vpack.c.b16 %v1722, %v1718
        %v1791 = vpack.c.b16 %v1727, %v1723
        %v1792 = vpack.c.b16 %v1728, %v1724
        %v1793 = vpack.c.b16 %v1729, %v1725
        %v1794 = vpack.c.b16 %v1730, %v1726
        %1859 = vmatprep.subr.bf16.mxu0 %v1732
        %1860 = vmatpush1.bf16.msra.mxu0 %v1731
        %1861 = vmatprep.subr.bf16.mxu0 %v1736
        %1862 = vmatpush1.bf16.msra.mxu0 %v1735
        %1863 = vmatprep.subr.bf16.mxu0 %v1740
        %1864 = vmatpush1.bf16.msra.mxu0 %v1739
        %1865 = vmatprep.subr.bf16.mxu0 %v1744
        %1866 = vmatpush1.bf16.msra.mxu0 %v1743
        %1867 = vmatprep.subr.bf16.mxu0 %v1748
        %1868 = vmatpush1.bf16.msra.mxu0 %v1747
        %1869 = vmatprep.subr.bf16.mxu0 %v1752
        %1870 = vmatpush1.bf16.msra.mxu0 %v1751
        %1871 = vmatprep.subr.bf16.mxu0 %v1756
        %1872 = vmatpush1.bf16.msra.mxu0 %v1755
        %1873 = vmatprep.subr.bf16.mxu0 %v1760
        %1874 = vmatpush1.bf16.msra.mxu0 %v1759
        %1875 = vmatprep.subr.bf16.mxu0 %v1764
        %1876 = vmatpush1.bf16.msra.mxu0 %v1763
        %1877 = vmatprep.subr.bf16.mxu0 %v1768
        %1878 = vmatpush1.bf16.msra.mxu0 %v1767
        %1879 = vmatprep.subr.bf16.mxu0 %v1772
        %1880 = vmatpush1.bf16.msra.mxu0 %v1771
        %1881 = vmatprep.subr.bf16.mxu0 %v1776
        %1882 = vmatpush1.bf16.msra.mxu0 %v1775
        %1883 = vmatprep.subr.bf16.mxu0 %v1780
        %1884 = vmatpush1.bf16.msra.mxu0 %v1779
        %1885 = vmatprep.subr.bf16.mxu0 %v1784
        %1886 = vmatpush1.bf16.msra.mxu0 %v1783
        %1887 = vmatprep.subr.bf16.mxu0 %v1788
        %1888 = vmatpush1.bf16.msra.mxu0 %v1787
        %1889 = vmatprep.subr.bf16.mxu0 %v1792
        %1890 = vmatpush1.bf16.msra.mxu0 %v1791
        %1891 = vmatprep.mubr.bf16.mxu0 %v1536
        %1892 = vmatmul.mubr.bf16.gmra.mrb[0].mxu0 %v1535
        %v1893 = vpop.f32.mrb[0].mxu0
        %v1894 = vadd.f32 0.0, %v1893
        %v1895 = vpop.f32.mrb[0].mxu0
        %v1896 = vadd.f32 0.0, %v1895
        %v1897 = vpop.f32.mrb[0].mxu0
        %v1898 = vpop.f32.mrb[0].mxu0
        %1899 = vdwg.mxu0
        %1900 = vmatprep.subr.bf16.mxu0 %v1734
        %1901 = vmatpush1.bf16.msra.mxu0 %v1733
        %1902 = vmatprep.subr.bf16.mxu0 %v1738
        %1903 = vmatpush1.bf16.msra.mxu0 %v1737
        %1904 = vmatprep.subr.bf16.mxu0 %v1742
        %1905 = vmatpush1.bf16.msra.mxu0 %v1741
        %1906 = vmatprep.subr.bf16.mxu0 %v1746
        %1907 = vmatpush1.bf16.msra.mxu0 %v1745
        %1908 = vmatprep.subr.bf16.mxu0 %v1750
        %1909 = vmatpush1.bf16.msra.mxu0 %v1749
        %1910 = vmatprep.subr.bf16.mxu0 %v1754
        %1911 = vmatpush1.bf16.msra.mxu0 %v1753
        %1912 = vmatprep.subr.bf16.mxu0 %v1758
        %1913 = vmatpush1.bf16.msra.mxu0 %v1757
        %1914 = vmatprep.subr.bf16.mxu0 %v1762
        %1915 = vmatpush1.bf16.msra.mxu0 %v1761
        %1916 = vmatprep.subr.bf16.mxu0 %v1766
        %1917 = vmatpush1.bf16.msra.mxu0 %v1765
        %1918 = vmatprep.subr.bf16.mxu0 %v1770
        %1919 = vmatpush1.bf16.msra.mxu0 %v1769
        %1920 = vmatprep.subr.bf16.mxu0 %v1774
        %1921 = vmatpush1.bf16.msra.mxu0 %v1773
        %1922 = vmatprep.subr.bf16.mxu0 %v1778
        %1923 = vmatpush1.bf16.msra.mxu0 %v1777
        %1924 = vmatprep.subr.bf16.mxu0 %v1782
        %1925 = vmatpush1.bf16.msra.mxu0 %v1781
        %1926 = vmatprep.subr.bf16.mxu0 %v1786
        %1927 = vmatpush1.bf16.msra.mxu0 %v1785
        %1928 = vmatprep.subr.bf16.mxu0 %v1790
        %1929 = vmatpush1.bf16.msra.mxu0 %v1789
        %1930 = vmatprep.subr.bf16.mxu0 %v1794
        %1931 = vmatpush1.bf16.msra.mxu0 %v1793
        %1932 = vmatprep.mubr.bf16.mxu0 %v1536
        %1933 = vmatmul.mubr.bf16.gmra.mrb[0].mxu0 %v1535
        %v1934 = vpop.f32.mrb[0].mxu0
        %v1935 = vadd.f32 0.0, %v1934
        %v1936 = vpop.f32.mrb[0].mxu0
        %v1937 = vadd.f32 0.0, %v1936
        %v1938 = vpop.f32.mrb[0].mxu0
        %v1939 = vpop.f32.mrb[0].mxu0
        %1940 = vdwg.mxu0
        %v1941 = vpack.c.bf16 %v1216, %v1212
        %v1942 = vpack.c.bf16 %v1218, %v1214
        %v1943 = vpack.c.bf16 %v1226, %v1222
        %v1944 = vpack.c.bf16 %v1228, %v1224
        %v1945 = vpack.c.bf16 %v1236, %v1232
        %v1946 = vpack.c.bf16 %v1238, %v1234
        %v1947 = vpack.c.bf16 %v1246, %v1242
        %v1948 = vpack.c.bf16 %v1248, %v1244
        %v1949 = vpack.c.bf16 %v1256, %v1252
        %v1950 = vpack.c.bf16 %v1258, %v1254
        %v1951 = vpack.c.bf16 %v1266, %v1262
        %v1952 = vpack.c.bf16 %v1268, %v1264
        %v1953 = vpack.c.bf16 %v1276, %v1272
        %v1954 = vpack.c.bf16 %v1278, %v1274
        %v1955 = vpack.c.bf16 %v1286, %v1282
        %v1956 = vpack.c.bf16 %v1288, %v1284
        %v1957 = vld [vmem:[#allocation16] sm:$0xff]
        %v1958 = vld [vmem:[#allocation16 + $0x8] sm:$0xff]
        %v1959 = vld [vmem:[#allocation16 + $0x10] sm:$0xff]
        %v1960 = vld [vmem:[#allocation16 + $0x18] sm:$0xff]
        %v1961 = vld [vmem:[#allocation16 + $0x20] sm:$0xff]
        %v1962 = vld [vmem:[#allocation16 + $0x28] sm:$0xff]
        %v1963 = vld [vmem:[#allocation16 + $0x30] sm:$0xff]
        %v1964 = vld [vmem:[#allocation16 + $0x38] sm:$0xff]
        %v1965 = vld [vmem:[#allocation16 + $0x40] sm:$0xff]
        %v1966 = vld [vmem:[#allocation16 + $0x48] sm:$0xff]
        %v1967 = vld [vmem:[#allocation16 + $0x50] sm:$0xff]
        %v1968 = vld [vmem:[#allocation16 + $0x58] sm:$0xff]
        %v1969 = vld [vmem:[#allocation16 + $0x60] sm:$0xff]
        %v1970 = vld [vmem:[#allocation16 + $0x68] sm:$0xff]
        %v1971 = vld [vmem:[#allocation16 + $0x70] sm:$0xff]
        %v1972 = vld [vmem:[#allocation16 + $0x78] sm:$0xff]
        %v1973 = vld [vmem:[#allocation16 + $0x80] sm:$0xff]
        %v1974 = vld [vmem:[#allocation16 + $0x88] sm:$0xff]
        %v1975 = vld [vmem:[#allocation16 + $0x90] sm:$0xff]
        %v1976 = vld [vmem:[#allocation16 + $0x98] sm:$0xff]
        %v1977 = vld [vmem:[#allocation16 + $0xa0] sm:$0xff]
        %v1978 = vld [vmem:[#allocation16 + $0xa8] sm:$0xff]
        %v1979 = vld [vmem:[#allocation16 + $0xb0] sm:$0xff]
        %v1980 = vld [vmem:[#allocation16 + $0xb8] sm:$0xff]
        %v1981 = vld [vmem:[#allocation16 + $0xc0] sm:$0xff]
        %v1982 = vld [vmem:[#allocation16 + $0xc8] sm:$0xff]
        %v1983 = vld [vmem:[#allocation16 + $0xd0] sm:$0xff]
        %v1984 = vld [vmem:[#allocation16 + $0xd8] sm:$0xff]
        %v1985 = vld [vmem:[#allocation16 + $0xe0] sm:$0xff]
        %v1986 = vld [vmem:[#allocation16 + $0xe8] sm:$0xff]
        %v1987 = vld [vmem:[#allocation16 + $0xf0] sm:$0xff]
        %v1988 = vld [vmem:[#allocation16 + $0xf8] sm:$0xff]
        %v1989 = vld [vmem:[#allocation16 + $0x100] sm:$0xff]
        %v1990 = vld [vmem:[#allocation16 + $0x108] sm:$0xff]
        %v1991 = vld [vmem:[#allocation16 + $0x110] sm:$0xff]
        %v1992 = vld [vmem:[#allocation16 + $0x118] sm:$0xff]
        %v1993 = vld [vmem:[#allocation16 + $0x120] sm:$0xff]
        %v1994 = vld [vmem:[#allocation16 + $0x128] sm:$0xff]
        %v1995 = vld [vmem:[#allocation16 + $0x130] sm:$0xff]
        %v1996 = vld [vmem:[#allocation16 + $0x138] sm:$0xff]
        %v1997 = vld [vmem:[#allocation16 + $0x140] sm:$0xff]
        %v1998 = vld [vmem:[#allocation16 + $0x148] sm:$0xff]
        %v1999 = vld [vmem:[#allocation16 + $0x150] sm:$0xff]
        %v2000 = vld [vmem:[#allocation16 + $0x158] sm:$0xff]
        %v2001 = vld [vmem:[#allocation16 + $0x160] sm:$0xff]
        %v2002 = vld [vmem:[#allocation16 + $0x168] sm:$0xff]
        %v2003 = vld [vmem:[#allocation16 + $0x170] sm:$0xff]
        %v2004 = vld [vmem:[#allocation16 + $0x178] sm:$0xff]
        %v2005 = vld [vmem:[#allocation16 + $0x180] sm:$0xff]
        %v2006 = vld [vmem:[#allocation16 + $0x188] sm:$0xff]
        %v2007 = vld [vmem:[#allocation16 + $0x190] sm:$0xff]
        %v2008 = vld [vmem:[#allocation16 + $0x198] sm:$0xff]
        %v2009 = vld [vmem:[#allocation16 + $0x1a0] sm:$0xff]
        %v2010 = vld [vmem:[#allocation16 + $0x1a8] sm:$0xff]
        %v2011 = vld [vmem:[#allocation16 + $0x1b0] sm:$0xff]
        %v2012 = vld [vmem:[#allocation16 + $0x1b8] sm:$0xff]
        %v2013 = vld [vmem:[#allocation16 + $0x1c0] sm:$0xff]
        %v2014 = vld [vmem:[#allocation16 + $0x1c8] sm:$0xff]
        %v2015 = vld [vmem:[#allocation16 + $0x1d0] sm:$0xff]
        %v2016 = vld [vmem:[#allocation16 + $0x1d8] sm:$0xff]
        %v2017 = vld [vmem:[#allocation16 + $0x1e0] sm:$0xff]
        %v2018 = vld [vmem:[#allocation16 + $0x1e8] sm:$0xff]
        %v2019 = vld [vmem:[#allocation16 + $0x1f0] sm:$0xff]
        %v2020 = vld [vmem:[#allocation16 + $0x1f8] sm:$0xff]
        %v2085 = vunpack.c.l.b16 %v1957
        %v2086 = vunpack.c.h.b16 %v1957
        %v2087 = vunpack.c.l.b16 %v1958
        %v2088 = vunpack.c.h.b16 %v1958
        %v2089 = vunpack.c.l.b16 %v1959
        %v2090 = vunpack.c.h.b16 %v1959
        %v2091 = vunpack.c.l.b16 %v1960
        %v2092 = vunpack.c.h.b16 %v1960
        %v2093 = vunpack.c.l.b16 %v1961
        %v2094 = vunpack.c.h.b16 %v1961
        %v2095 = vunpack.c.l.b16 %v1962
        %v2096 = vunpack.c.h.b16 %v1962
        %v2097 = vunpack.c.l.b16 %v1963
        %v2098 = vunpack.c.h.b16 %v1963
        %v2099 = vunpack.c.l.b16 %v1964
        %v2100 = vunpack.c.h.b16 %v1964
        %v2101 = vunpack.c.l.b16 %v1965
        %v2102 = vunpack.c.h.b16 %v1965
        %v2103 = vunpack.c.l.b16 %v1966
        %v2104 = vunpack.c.h.b16 %v1966
        %v2105 = vunpack.c.l.b16 %v1967
        %v2106 = vunpack.c.h.b16 %v1967
        %v2107 = vunpack.c.l.b16 %v1968
        %v2108 = vunpack.c.h.b16 %v1968
        %v2109 = vunpack.c.l.b16 %v1969
        %v2110 = vunpack.c.h.b16 %v1969
        %v2111 = vunpack.c.l.b16 %v1970
        %v2112 = vunpack.c.h.b16 %v1970
        %v2113 = vunpack.c.l.b16 %v1971
        %v2114 = vunpack.c.h.b16 %v1971
        %v2115 = vunpack.c.l.b16 %v1972
        %v2116 = vunpack.c.h.b16 %v1972
        %v2117 = vunpack.c.l.b16 %v1973
        %v2118 = vunpack.c.h.b16 %v1973
        %v2119 = vunpack.c.l.b16 %v1974
        %v2120 = vunpack.c.h.b16 %v1974
        %v2121 = vunpack.c.l.b16 %v1975
        %v2122 = vunpack.c.h.b16 %v1975
        %v2123 = vunpack.c.l.b16 %v1976
        %v2124 = vunpack.c.h.b16 %v1976
        %v2125 = vunpack.c.l.b16 %v1977
        %v2126 = vunpack.c.h.b16 %v1977
        %v2127 = vunpack.c.l.b16 %v1978
        %v2128 = vunpack.c.h.b16 %v1978
        %v2129 = vunpack.c.l.b16 %v1979
        %v2130 = vunpack.c.h.b16 %v1979
        %v2131 = vunpack.c.l.b16 %v1980
        %v2132 = vunpack.c.h.b16 %v1980
        %v2133 = vunpack.c.l.b16 %v1981
        %v2134 = vunpack.c.h.b16 %v1981
        %v2135 = vunpack.c.l.b16 %v1982
        %v2136 = vunpack.c.h.b16 %v1982
        %v2137 = vunpack.c.l.b16 %v1983
        %v2138 = vunpack.c.h.b16 %v1983
        %v2139 = vunpack.c.l.b16 %v1984
        %v2140 = vunpack.c.h.b16 %v1984
        %v2141 = vunpack.c.l.b16 %v1985
        %v2142 = vunpack.c.h.b16 %v1985
        %v2143 = vunpack.c.l.b16 %v1986
        %v2144 = vunpack.c.h.b16 %v1986
        %v2145 = vunpack.c.l.b16 %v1987
        %v2146 = vunpack.c.h.b16 %v1987
        %v2147 = vunpack.c.l.b16 %v1988
        %v2148 = vunpack.c.h.b16 %v1988
        %v2149 = vunpack.c.l.b16 %v1989
        %v2150 = vunpack.c.h.b16 %v1989
        %v2151 = vunpack.c.l.b16 %v1990
        %v2152 = vunpack.c.h.b16 %v1990
        %v2153 = vunpack.c.l.b16 %v1991
        %v2154 = vunpack.c.h.b16 %v1991
        %v2155 = vunpack.c.l.b16 %v1992
        %v2156 = vunpack.c.h.b16 %v1992
        %v2157 = vunpack.c.l.b16 %v1993
        %v2158 = vunpack.c.h.b16 %v1993
        %v2159 = vunpack.c.l.b16 %v1994
        %v2160 = vunpack.c.h.b16 %v1994
        %v2161 = vunpack.c.l.b16 %v1995
        %v2162 = vunpack.c.h.b16 %v1995
        %v2163 = vunpack.c.l.b16 %v1996
        %v2164 = vunpack.c.h.b16 %v1996
        %v2165 = vunpack.c.l.b16 %v1997
        %v2166 = vunpack.c.h.b16 %v1997
        %v2167 = vunpack.c.l.b16 %v1998
        %v2168 = vunpack.c.h.b16 %v1998
        %v2169 = vunpack.c.l.b16 %v1999
        %v2170 = vunpack.c.h.b16 %v1999
        %v2171 = vunpack.c.l.b16 %v2000
        %v2172 = vunpack.c.h.b16 %v2000
        %v2173 = vunpack.c.l.b16 %v2001
        %v2174 = vunpack.c.h.b16 %v2001
        %v2175 = vunpack.c.l.b16 %v2002
        %v2176 = vunpack.c.h.b16 %v2002
        %v2177 = vunpack.c.l.b16 %v2003
        %v2178 = vunpack.c.h.b16 %v2003
        %v2179 = vunpack.c.l.b16 %v2004
        %v2180 = vunpack.c.h.b16 %v2004
        %v2181 = vunpack.c.l.b16 %v2005
        %v2182 = vunpack.c.h.b16 %v2005
        %v2183 = vunpack.c.l.b16 %v2006
        %v2184 = vunpack.c.h.b16 %v2006
        %v2185 = vunpack.c.l.b16 %v2007
        %v2186 = vunpack.c.h.b16 %v2007
        %v2187 = vunpack.c.l.b16 %v2008
        %v2188 = vunpack.c.h.b16 %v2008
        %v2189 = vunpack.c.l.b16 %v2009
        %v2190 = vunpack.c.h.b16 %v2009
        %v2191 = vunpack.c.l.b16 %v2010
        %v2192 = vunpack.c.h.b16 %v2010
        %v2193 = vunpack.c.l.b16 %v2011
        %v2194 = vunpack.c.h.b16 %v2011
        %v2195 = vunpack.c.l.b16 %v2012
        %v2196 = vunpack.c.h.b16 %v2012
        %v2197 = vunpack.c.l.b16 %v2013
        %v2198 = vunpack.c.h.b16 %v2013
        %v2199 = vunpack.c.l.b16 %v2014
        %v2200 = vunpack.c.h.b16 %v2014
        %v2201 = vunpack.c.l.b16 %v2015
        %v2202 = vunpack.c.h.b16 %v2015
        %v2203 = vunpack.c.l.b16 %v2016
        %v2204 = vunpack.c.h.b16 %v2016
        %v2205 = vunpack.c.l.b16 %v2017
        %v2206 = vunpack.c.h.b16 %v2017
        %v2207 = vunpack.c.l.b16 %v2018
        %v2208 = vunpack.c.h.b16 %v2018
        %v2209 = vunpack.c.l.b16 %v2019
        %v2210 = vunpack.c.h.b16 %v2019
        %v2211 = vunpack.c.l.b16 %v2020
        %v2212 = vunpack.c.h.b16 %v2020
        %v2213 = vpack.c.b16 %v2089, %v2085
        %v2214 = vpack.c.b16 %v2090, %v2086
        %v2215 = vpack.c.b16 %v2091, %v2087
        %v2216 = vpack.c.b16 %v2092, %v2088
        %v2217 = vpack.c.b16 %v2097, %v2093
        %v2218 = vpack.c.b16 %v2098, %v2094
        %v2219 = vpack.c.b16 %v2099, %v2095
        %v2220 = vpack.c.b16 %v2100, %v2096
        %v2221 = vpack.c.b16 %v2105, %v2101
        %v2222 = vpack.c.b16 %v2106, %v2102
        %v2223 = vpack.c.b16 %v2107, %v2103
        %v2224 = vpack.c.b16 %v2108, %v2104
        %v2225 = vpack.c.b16 %v2113, %v2109
        %v2226 = vpack.c.b16 %v2114, %v2110
        %v2227 = vpack.c.b16 %v2115, %v2111
        %v2228 = vpack.c.b16 %v2116, %v2112
        %v2229 = vpack.c.b16 %v2121, %v2117
        %v2230 = vpack.c.b16 %v2122, %v2118
        %v2231 = vpack.c.b16 %v2123, %v2119
        %v2232 = vpack.c.b16 %v2124, %v2120
        %v2233 = vpack.c.b16 %v2129, %v2125
        %v2234 = vpack.c.b16 %v2130, %v2126
        %v2235 = vpack.c.b16 %v2131, %v2127
        %v2236 = vpack.c.b16 %v2132, %v2128
        %v2237 = vpack.c.b16 %v2137, %v2133
        %v2238 = vpack.c.b16 %v2138, %v2134
        %v2239 = vpack.c.b16 %v2139, %v2135
        %v2240 = vpack.c.b16 %v2140, %v2136
        %v2241 = vpack.c.b16 %v2145, %v2141
        %v2242 = vpack.c.b16 %v2146, %v2142
        %v2243 = vpack.c.b16 %v2147, %v2143
        %v2244 = vpack.c.b16 %v2148, %v2144
        %v2245 = vpack.c.b16 %v2153, %v2149
        %v2246 = vpack.c.b16 %v2154, %v2150
        %v2247 = vpack.c.b16 %v2155, %v2151
        %v2248 = vpack.c.b16 %v2156, %v2152
        %v2249 = vpack.c.b16 %v2161, %v2157
        %v2250 = vpack.c.b16 %v2162, %v2158
        %v2251 = vpack.c.b16 %v2163, %v2159
        %v2252 = vpack.c.b16 %v2164, %v2160
        %v2253 = vpack.c.b16 %v2169, %v2165
        %v2254 = vpack.c.b16 %v2170, %v2166
        %v2255 = vpack.c.b16 %v2171, %v2167
        %v2256 = vpack.c.b16 %v2172, %v2168
        %v2257 = vpack.c.b16 %v2177, %v2173
        %v2258 = vpack.c.b16 %v2178, %v2174
        %v2259 = vpack.c.b16 %v2179, %v2175
        %v2260 = vpack.c.b16 %v2180, %v2176
        %v2261 = vpack.c.b16 %v2185, %v2181
        %v2262 = vpack.c.b16 %v2186, %v2182
        %v2263 = vpack.c.b16 %v2187, %v2183
        %v2264 = vpack.c.b16 %v2188, %v2184
        %v2265 = vpack.c.b16 %v2193, %v2189
        %v2266 = vpack.c.b16 %v2194, %v2190
        %v2267 = vpack.c.b16 %v2195, %v2191
        %v2268 = vpack.c.b16 %v2196, %v2192
        %v2269 = vpack.c.b16 %v2201, %v2197
        %v2270 = vpack.c.b16 %v2202, %v2198
        %v2271 = vpack.c.b16 %v2203, %v2199
        %v2272 = vpack.c.b16 %v2204, %v2200
        %v2273 = vpack.c.b16 %v2209, %v2205
        %v2274 = vpack.c.b16 %v2210, %v2206
        %v2275 = vpack.c.b16 %v2211, %v2207
        %v2276 = vpack.c.b16 %v2212, %v2208
        %2341 = vmatprep.subr.bf16.mxu0 %v2214
        %2342 = vmatpush1.bf16.msra.mxu0 %v2213
        %2343 = vmatprep.subr.bf16.mxu0 %v2218
        %2344 = vmatpush1.bf16.msra.mxu0 %v2217
        %2345 = vmatprep.subr.bf16.mxu0 %v2222
        %2346 = vmatpush1.bf16.msra.mxu0 %v2221
        %2347 = vmatprep.subr.bf16.mxu0 %v2226
        %2348 = vmatpush1.bf16.msra.mxu0 %v2225
        %2349 = vmatprep.subr.bf16.mxu0 %v2230
        %2350 = vmatpush1.bf16.msra.mxu0 %v2229
        %2351 = vmatprep.subr.bf16.mxu0 %v2234
        %2352 = vmatpush1.bf16.msra.mxu0 %v2233
        %2353 = vmatprep.subr.bf16.mxu0 %v2238
        %2354 = vmatpush1.bf16.msra.mxu0 %v2237
        %2355 = vmatprep.subr.bf16.mxu0 %v2242
        %2356 = vmatpush1.bf16.msra.mxu0 %v2241
        %2357 = vmatprep.subr.bf16.mxu0 %v2246
        %2358 = vmatpush1.bf16.msra.mxu0 %v2245
        %2359 = vmatprep.subr.bf16.mxu0 %v2250
        %2360 = vmatpush1.bf16.msra.mxu0 %v2249
        %2361 = vmatprep.subr.bf16.mxu0 %v2254
        %2362 = vmatpush1.bf16.msra.mxu0 %v2253
        %2363 = vmatprep.subr.bf16.mxu0 %v2258
        %2364 = vmatpush1.bf16.msra.mxu0 %v2257
        %2365 = vmatprep.subr.bf16.mxu0 %v2262
        %2366 = vmatpush1.bf16.msra.mxu0 %v2261
        %2367 = vmatprep.subr.bf16.mxu0 %v2266
        %2368 = vmatpush1.bf16.msra.mxu0 %v2265
        %2369 = vmatprep.subr.bf16.mxu0 %v2270
        %2370 = vmatpush1.bf16.msra.mxu0 %v2269
        %2371 = vmatprep.subr.bf16.mxu0 %v2274
        %2372 = vmatpush1.bf16.msra.mxu0 %v2273
        %2373 = vmatprep.mubr.bf16.mxu0 %v1942
        %2374 = vmatmul.mubr.bf16.gmra.mrb[0].mxu0 %v1941
        %v2375 = vpop.f32.mrb[0].mxu0
        %v2376 = vadd.f32 0.0, %v2375
        %v2377 = vpop.f32.mrb[0].mxu0
        %v2378 = vadd.f32 0.0, %v2377
        %v2379 = vpop.f32.mrb[0].mxu0
        %v2380 = vadd.f32 0.0, %v2379
        %v2381 = vpop.f32.mrb[0].mxu0
        %v2382 = vadd.f32 0.0, %v2381
        %2383 = vmatprep.mubr.bf16.mxu0 %v1944
        %2384 = vmatmul.mubr.bf16.gmra.mrb[0].mxu0 %v1943
        %v2385 = vpop.f32.mrb[0].mxu0
        %v2386 = vadd.f32 0.0, %v2385
        %v2387 = vpop.f32.mrb[0].mxu0
        %v2388 = vadd.f32 0.0, %v2387
        %v2389 = vpop.f32.mrb[0].mxu0
        %v2390 = vadd.f32 0.0, %v2389
        %v2391 = vpop.f32.mrb[0].mxu0
        %v2392 = vadd.f32 0.0, %v2391
        %2393 = vmatprep.mubr.bf16.mxu0 %v1946
        %2394 = vmatmul.mubr.bf16.gmra.mrb[0].mxu0 %v1945
        %v2395 = vpop.f32.mrb[0].mxu0
        %v2396 = vadd.f32 0.0, %v2395
        %v2397 = vpop.f32.mrb[0].mxu0
        %v2398 = vadd.f32 0.0, %v2397
        %v2399 = vpop.f32.mrb[0].mxu0
        %v2400 = vadd.f32 0.0, %v2399
        %v2401 = vpop.f32.mrb[0].mxu0
        %v2402 = vadd.f32 0.0, %v2401
        %2403 = vmatprep.mubr.bf16.mxu0 %v1948
        %2404 = vmatmul.mubr.bf16.gmra.mrb[0].mxu0 %v1947
        %v2405 = vpop.f32.mrb[0].mxu0
        %v2406 = vadd.f32 0.0, %v2405
        %v2407 = vpop.f32.mrb[0].mxu0
        %v2408 = vadd.f32 0.0, %v2407
        %v2409 = vpop.f32.mrb[0].mxu0
        %v2410 = vadd.f32 0.0, %v2409
        %v2411 = vpop.f32.mrb[0].mxu0
        %v2412 = vadd.f32 0.0, %v2411
        %2413 = vmatprep.mubr.bf16.mxu0 %v1950
        %2414 = vmatmul.mubr.bf16.gmra.mrb[0].mxu0 %v1949
        %v2415 = vpop.f32.mrb[0].mxu0
        %v2416 = vadd.f32 0.0, %v2415
        %v2417 = vpop.f32.mrb[0].mxu0
        %v2418 = vadd.f32 0.0, %v2417
        %v2419 = vpop.f32.mrb[0].mxu0
        %v2420 = vadd.f32 0.0, %v2419
        %v2421 = vpop.f32.mrb[0].mxu0
        %v2422 = vadd.f32 0.0, %v2421
        %2423 = vmatprep.mubr.bf16.mxu0 %v1952
        %2424 = vmatmul.mubr.bf16.gmra.mrb[0].mxu0 %v1951
        %v2425 = vpop.f32.mrb[0].mxu0
        %v2426 = vadd.f32 0.0, %v2425
        %v2427 = vpop.f32.mrb[0].mxu0
        %v2428 = vadd.f32 0.0, %v2427
        %v2429 = vpop.f32.mrb[0].mxu0
        %v2430 = vadd.f32 0.0, %v2429
        %v2431 = vpop.f32.mrb[0].mxu0
        %v2432 = vadd.f32 0.0, %v2431
        %2433 = vmatprep.mubr.bf16.mxu0 %v1954
        %2434 = vmatmul.mubr.bf16.gmra.mrb[0].mxu0 %v1953
        %v2435 = vpop.f32.mrb[0].mxu0
        %v2436 = vadd.f32 0.0, %v2435
        %v2437 = vpop.f32.mrb[0].mxu0
        %v2438 = vadd.f32 0.0, %v2437
        %v2439 = vpop.f32.mrb[0].mxu0
        %v2440 = vadd.f32 0.0, %v2439
        %v2441 = vpop.f32.mrb[0].mxu0
        %v2442 = vadd.f32 0.0, %v2441
        %2443 = vmatprep.mubr.bf16.mxu0 %v1956
        %2444 = vmatmul.mubr.bf16.gmra.mrb[0].mxu0 %v1955
        %v2445 = vpop.f32.mrb[0].mxu0
        %v2446 = vadd.f32 0.0, %v2445
        %v2447 = vpop.f32.mrb[0].mxu0
        %v2448 = vadd.f32 0.0, %v2447
        %v2449 = vpop.f32.mrb[0].mxu0
        %v2450 = vadd.f32 0.0, %v2449
        %v2451 = vpop.f32.mrb[0].mxu0
        %v2452 = vadd.f32 0.0, %v2451
        %2453 = vdwg.mxu0
        %2454 = vmatprep.subr.bf16.mxu0 %v2216
        %2455 = vmatpush1.bf16.msra.mxu0 %v2215
        %2456 = vmatprep.subr.bf16.mxu0 %v2220
        %2457 = vmatpush1.bf16.msra.mxu0 %v2219
        %2458 = vmatprep.subr.bf16.mxu0 %v2224
        %2459 = vmatpush1.bf16.msra.mxu0 %v2223
        %2460 = vmatprep.subr.bf16.mxu0 %v2228
        %2461 = vmatpush1.bf16.msra.mxu0 %v2227
        %2462 = vmatprep.subr.bf16.mxu0 %v2232
        %2463 = vmatpush1.bf16.msra.mxu0 %v2231
        %2464 = vmatprep.subr.bf16.mxu0 %v2236
        %2465 = vmatpush1.bf16.msra.mxu0 %v2235
        %2466 = vmatprep.subr.bf16.mxu0 %v2240
        %2467 = vmatpush1.bf16.msra.mxu0 %v2239
        %2468 = vmatprep.subr.bf16.mxu0 %v2244
        %2469 = vmatpush1.bf16.msra.mxu0 %v2243
        %2470 = vmatprep.subr.bf16.mxu0 %v2248
        %2471 = vmatpush1.bf16.msra.mxu0 %v2247
        %2472 = vmatprep.subr.bf16.mxu0 %v2252
        %2473 = vmatpush1.bf16.msra.mxu0 %v2251
        %2474 = vmatprep.subr.bf16.mxu0 %v2256
        %2475 = vmatpush1.bf16.msra.mxu0 %v2255
        %2476 = vmatprep.subr.bf16.mxu0 %v2260
        %2477 = vmatpush1.bf16.msra.mxu0 %v2259
        %2478 = vmatprep.subr.bf16.mxu0 %v2264
        %2479 = vmatpush1.bf16.msra.mxu0 %v2263
        %2480 = vmatprep.subr.bf16.mxu0 %v2268
        %2481 = vmatpush1.bf16.msra.mxu0 %v2267
        %2482 = vmatprep.subr.bf16.mxu0 %v2272
        %2483 = vmatpush1.bf16.msra.mxu0 %v2271
        %2484 = vmatprep.subr.bf16.mxu0 %v2276
        %2485 = vmatpush1.bf16.msra.mxu0 %v2275
        %2486 = vmatprep.mubr.bf16.mxu0 %v1942
        %2487 = vmatmul.mubr.bf16.gmra.mrb[0].mxu0 %v1941
        %v2488 = vpop.f32.mrb[0].mxu0
        %v2489 = vadd.f32 0.0, %v2488
        %v2490 = vpop.f32.mrb[0].mxu0
        %v2491 = vadd.f32 0.0, %v2490
        %v2492 = vpop.f32.mrb[0].mxu0
        %v2493 = vadd.f32 0.0, %v2492
        %v2494 = vpop.f32.mrb[0].mxu0
        %v2495 = vadd.f32 0.0, %v2494
        %2496 = vmatprep.mubr.bf16.mxu0 %v1944
        %2497 = vmatmul.mubr.bf16.gmra.mrb[0].mxu0 %v1943
        %v2498 = vpop.f32.mrb[0].mxu0
        %v2499 = vadd.f32 0.0, %v2498
        %v2500 = vpop.f32.mrb[0].mxu0
        %v2501 = vadd.f32 0.0, %v2500
        %v2502 = vpop.f32.mrb[0].mxu0
        %v2503 = vadd.f32 0.0, %v2502
        %v2504 = vpop.f32.mrb[0].mxu0
        %v2505 = vadd.f32 0.0, %v2504
        %2506 = vmatprep.mubr.bf16.mxu0 %v1946
        %2507 = vmatmul.mubr.bf16.gmra.mrb[0].mxu0 %v1945
        %v2508 = vpop.f32.mrb[0].mxu0
        %v2509 = vadd.f32 0.0, %v2508
        %v2510 = vpop.f32.mrb[0].mxu0
        %v2511 = vadd.f32 0.0, %v2510
        %v2512 = vpop.f32.mrb[0].mxu0
        %v2513 = vadd.f32 0.0, %v2512
        %v2514 = vpop.f32.mrb[0].mxu0
        %v2515 = vadd.f32 0.0, %v2514
        %2516 = vmatprep.mubr.bf16.mxu0 %v1948
        %2517 = vmatmul.mubr.bf16.gmra.mrb[0].mxu0 %v1947
        %v2518 = vpop.f32.mrb[0].mxu0
        %v2519 = vadd.f32 0.0, %v2518
        %v2520 = vpop.f32.mrb[0].mxu0
        %v2521 = vadd.f32 0.0, %v2520
        %v2522 = vpop.f32.mrb[0].mxu0
        %v2523 = vadd.f32 0.0, %v2522
        %v2524 = vpop.f32.mrb[0].mxu0
        %v2525 = vadd.f32 0.0, %v2524
        %2526 = vmatprep.mubr.bf16.mxu0 %v1950
        %2527 = vmatmul.mubr.bf16.gmra.mrb[0].mxu0 %v1949
        %v2528 = vpop.f32.mrb[0].mxu0
        %v2529 = vadd.f32 0.0, %v2528
        %v2530 = vpop.f32.mrb[0].mxu0
        %v2531 = vadd.f32 0.0, %v2530
        %v2532 = vpop.f32.mrb[0].mxu0
        %v2533 = vadd.f32 0.0, %v2532
        %v2534 = vpop.f32.mrb[0].mxu0
        %v2535 = vadd.f32 0.0, %v2534
        %2536 = vmatprep.mubr.bf16.mxu0 %v1952
        %2537 = vmatmul.mubr.bf16.gmra.mrb[0].mxu0 %v1951
        %v2538 = vpop.f32.mrb[0].mxu0
        %v2539 = vadd.f32 0.0, %v2538
        %v2540 = vpop.f32.mrb[0].mxu0
        %v2541 = vadd.f32 0.0, %v2540
        %v2542 = vpop.f32.mrb[0].mxu0
        %v2543 = vadd.f32 0.0, %v2542
        %v2544 = vpop.f32.mrb[0].mxu0
        %v2545 = vadd.f32 0.0, %v2544
        %2546 = vmatprep.mubr.bf16.mxu0 %v1954
        %2547 = vmatmul.mubr.bf16.gmra.mrb[0].mxu0 %v1953
        %v2548 = vpop.f32.mrb[0].mxu0
        %v2549 = vadd.f32 0.0, %v2548
        %v2550 = vpop.f32.mrb[0].mxu0
        %v2551 = vadd.f32 0.0, %v2550
        %v2552 = vpop.f32.mrb[0].mxu0
        %v2553 = vadd.f32 0.0, %v2552
        %v2554 = vpop.f32.mrb[0].mxu0
        %v2555 = vadd.f32 0.0, %v2554
        %2556 = vmatprep.mubr.bf16.mxu0 %v1956
        %2557 = vmatmul.mubr.bf16.gmra.mrb[0].mxu0 %v1955
        %v2558 = vpop.f32.mrb[0].mxu0
        %v2559 = vadd.f32 0.0, %v2558
        %v2560 = vpop.f32.mrb[0].mxu0
        %v2561 = vadd.f32 0.0, %v2560
        %v2562 = vpop.f32.mrb[0].mxu0
        %v2563 = vadd.f32 0.0, %v2562
        %v2564 = vpop.f32.mrb[0].mxu0
        %v2565 = vadd.f32 0.0, %v2564
        %2566 = vdwg.mxu0
        %v2571 = vcombine.low %v1894, %v1896
        %v2572 = vcombine.high %v1894, %v1896
        %v2573 = vcombine.low %v1935, %v1937
        %v2574 = vcombine.high %v1935, %v1937
        %v2576 = vunpack.c.l.s4 1966171168
        %v2577 = vunpack.c.0.s8 %v2576
        %v2578 = vlaneseq
        %v2579 = vshrl.u32 %v2578, 7
        %v2580 = vsub.s32 %v2577, %v2579
        %v2581 = vrot.slane %v2571, %v2580
        %v2583 = vunpack.c.l.s4 1966171168
        %v2584 = vunpack.c.0.s8 %v2583
        %v2585 = vlaneseq
        %v2586 = vshrl.u32 %v2585, 7
        %v2587 = vsub.s32 %v2584, %v2586
        %v2588 = vrot.slane %v2572, %v2587
        %v2590 = vunpack.c.l.s4 1966171168
        %v2591 = vunpack.c.0.s8 %v2590
        %v2592 = vlaneseq
        %v2593 = vshrl.u32 %v2592, 7
        %v2594 = vsub.s32 %v2591, %v2593
        %v2595 = vrot.slane %v2573, %v2594
        %v2597 = vunpack.c.l.s4 1966171168
        %v2598 = vunpack.c.0.s8 %v2597
        %v2599 = vlaneseq
        %v2600 = vshrl.u32 %v2599, 7
        %v2601 = vsub.s32 %v2598, %v2600
        %v2602 = vrot.slane %v2574, %v2601
        %v2603 = vcombine.low %v2581, %v2595
        %v2604 = vcombine.high %v2581, %v2595
        %v2605 = vcombine.low %v2588, %v2602
        %v2606 = vcombine.high %v2588, %v2602
        %v2608 = vunpack.c.l.s4 1966171168
        %v2609 = vunpack.c.0.s8 %v2608
        %v2610 = vlaneseq
        %v2611 = vshrl.u32 %v2610, 7
        %v2612 = vsub.s32 %v2609, %v2611
        %v2613 = vrot.slane %v2603, %v2612
        %v2615 = vunpack.c.l.s4 1966171168
        %v2616 = vunpack.c.0.s8 %v2615
        %v2617 = vlaneseq
        %v2618 = vshrl.u32 %v2617, 7
        %v2619 = vsub.s32 %v2616, %v2618
        %v2620 = vrot.slane %v2605, %v2619
        %v2622 = vunpack.c.l.s4 1966171168
        %v2623 = vunpack.c.0.s8 %v2622
        %v2624 = vlaneseq
        %v2625 = vshrl.u32 %v2624, 7
        %v2626 = vsub.s32 %v2623, %v2625
        %v2627 = vrot.slane %v2604, %v2626
        %v2629 = vunpack.c.l.s4 1966171168
        %v2630 = vunpack.c.0.s8 %v2629
        %v2631 = vlaneseq
        %v2632 = vshrl.u32 %v2631, 7
        %v2633 = vsub.s32 %v2630, %v2632
        %v2634 = vrot.slane %v2606, %v2633
        %v2635 = vcombine.high %v2613, %v2613
        %v2636 = vcombine.high %v2620, %v2620
        %v2637 = vcombine.high %v2627, %v2627
        %v2638 = vcombine.high %v2634, %v2634
        %v2639 = vlaneseq
        %v2640 = vshrl.u32 %v2639, 7
        %v2641 = vsub.s32 0, %v2640
        %v2642 = vrot.slane %v2613, %v2641
        %v2643 = vlaneseq
        %v2644 = vshrl.u32 %v2643, 7
        %v2645 = vsub.s32 1, %v2644
        %v2646 = vrot.slane %v2613, %v2645
        %v2647 = vlaneseq
        %v2648 = vshrl.u32 %v2647, 7
        %v2649 = vsub.s32 2, %v2648
        %v2650 = vrot.slane %v2613, %v2649
        %v2651 = vlaneseq
        %v2652 = vshrl.u32 %v2651, 7
        %v2653 = vsub.s32 3, %v2652
        %v2654 = vrot.slane %v2613, %v2653
        %v2655 = vlaneseq
        %v2656 = vshrl.u32 %v2655, 7
        %v2657 = vsub.s32 0, %v2656
        %v2658 = vrot.slane %v2627, %v2657
        %v2659 = vlaneseq
        %v2660 = vshrl.u32 %v2659, 7
        %v2661 = vsub.s32 1, %v2660
        %v2662 = vrot.slane %v2627, %v2661
        %v2663 = vlaneseq
        %v2664 = vshrl.u32 %v2663, 7
        %v2665 = vsub.s32 2, %v2664
        %v2666 = vrot.slane %v2627, %v2665
        %v2667 = vlaneseq
        %v2668 = vshrl.u32 %v2667, 7
        %v2669 = vsub.s32 3, %v2668
        %v2670 = vrot.slane %v2627, %v2669
        %v2671 = vlaneseq
        %v2672 = vshrl.u32 %v2671, 7
        %v2673 = vsub.s32 0, %v2672
        %v2674 = vrot.slane %v2635, %v2673
        %v2675 = vlaneseq
        %v2676 = vshrl.u32 %v2675, 7
        %v2677 = vsub.s32 1, %v2676
        %v2678 = vrot.slane %v2635, %v2677
        %v2679 = vlaneseq
        %v2680 = vshrl.u32 %v2679, 7
        %v2681 = vsub.s32 2, %v2680
        %v2682 = vrot.slane %v2635, %v2681
        %v2683 = vlaneseq
        %v2684 = vshrl.u32 %v2683, 7
        %v2685 = vsub.s32 3, %v2684
        %v2686 = vrot.slane %v2635, %v2685
        %v2687 = vlaneseq
        %v2688 = vshrl.u32 %v2687, 7
        %v2689 = vsub.s32 0, %v2688
        %v2690 = vrot.slane %v2637, %v2689
        %v2691 = vlaneseq
        %v2692 = vshrl.u32 %v2691, 7
        %v2693 = vsub.s32 1, %v2692
        %v2694 = vrot.slane %v2637, %v2693
        %v2695 = vlaneseq
        %v2696 = vshrl.u32 %v2695, 7
        %v2697 = vsub.s32 2, %v2696
        %v2698 = vrot.slane %v2637, %v2697
        %v2699 = vlaneseq
        %v2700 = vshrl.u32 %v2699, 7
        %v2701 = vsub.s32 3, %v2700
        %v2702 = vrot.slane %v2637, %v2701
        %v2703 = vlaneseq
        %v2704 = vshrl.u32 %v2703, 7
        %v2705 = vsub.s32 0, %v2704
        %v2706 = vrot.slane %v2620, %v2705
        %v2707 = vlaneseq
        %v2708 = vshrl.u32 %v2707, 7
        %v2709 = vsub.s32 1, %v2708
        %v2710 = vrot.slane %v2620, %v2709
        %v2711 = vlaneseq
        %v2712 = vshrl.u32 %v2711, 7
        %v2713 = vsub.s32 2, %v2712
        %v2714 = vrot.slane %v2620, %v2713
        %v2715 = vlaneseq
        %v2716 = vshrl.u32 %v2715, 7
        %v2717 = vsub.s32 3, %v2716
        %v2718 = vrot.slane %v2620, %v2717
        %v2719 = vlaneseq
        %v2720 = vshrl.u32 %v2719, 7
        %v2721 = vsub.s32 0, %v2720
        %v2722 = vrot.slane %v2634, %v2721
        %v2723 = vlaneseq
        %v2724 = vshrl.u32 %v2723, 7
        %v2725 = vsub.s32 1, %v2724
        %v2726 = vrot.slane %v2634, %v2725
        %v2727 = vlaneseq
        %v2728 = vshrl.u32 %v2727, 7
        %v2729 = vsub.s32 2, %v2728
        %v2730 = vrot.slane %v2634, %v2729
        %v2731 = vlaneseq
        %v2732 = vshrl.u32 %v2731, 7
        %v2733 = vsub.s32 3, %v2732
        %v2734 = vrot.slane %v2634, %v2733
        %v2735 = vlaneseq
        %v2736 = vshrl.u32 %v2735, 7
        %v2737 = vsub.s32 0, %v2736
        %v2738 = vrot.slane %v2636, %v2737
        %v2739 = vlaneseq
        %v2740 = vshrl.u32 %v2739, 7
        %v2741 = vsub.s32 1, %v2740
        %v2742 = vrot.slane %v2636, %v2741
        %v2743 = vlaneseq
        %v2744 = vshrl.u32 %v2743, 7
        %v2745 = vsub.s32 2, %v2744
        %v2746 = vrot.slane %v2636, %v2745
        %v2747 = vlaneseq
        %v2748 = vshrl.u32 %v2747, 7
        %v2749 = vsub.s32 3, %v2748
        %v2750 = vrot.slane %v2636, %v2749
        %v2751 = vlaneseq
        %v2752 = vshrl.u32 %v2751, 7
        %v2753 = vsub.s32 0, %v2752
        %v2754 = vrot.slane %v2638, %v2753
        %v2755 = vlaneseq
        %v2756 = vshrl.u32 %v2755, 7
        %v2757 = vsub.s32 1, %v2756
        %v2758 = vrot.slane %v2638, %v2757
        %v2759 = vlaneseq
        %v2760 = vshrl.u32 %v2759, 7
        %v2761 = vsub.s32 2, %v2760
        %v2762 = vrot.slane %v2638, %v2761
        %v2763 = vlaneseq
        %v2764 = vshrl.u32 %v2763, 7
        %v2765 = vsub.s32 3, %v2764
        %v2766 = vrot.slane %v2638, %v2765
        %v2799 = vadd.f32 %v2376, %v2642
        %v2800 = vadd.f32 %v2378, %v2646
        %v2801 = vadd.f32 %v2489, %v2650
        %v2802 = vadd.f32 %v2491, %v2654
        %v2803 = vadd.f32 %v2380, %v2642
        %v2804 = vadd.f32 %v2382, %v2646
        %v2805 = vadd.f32 %v2493, %v2650
        %v2806 = vadd.f32 %v2495, %v2654
        %v2807 = vadd.f32 %v2386, %v2658
        %v2808 = vadd.f32 %v2388, %v2662
        %v2809 = vadd.f32 %v2499, %v2666
        %v2810 = vadd.f32 %v2501, %v2670
        %v2811 = vadd.f32 %v2390, %v2658
        %v2812 = vadd.f32 %v2392, %v2662
        %v2813 = vadd.f32 %v2503, %v2666
        %v2814 = vadd.f32 %v2505, %v2670
        %v2815 = vadd.f32 %v2396, %v2674
        %v2816 = vadd.f32 %v2398, %v2678
        %v2817 = vadd.f32 %v2509, %v2682
        %v2818 = vadd.f32 %v2511, %v2686
        %v2819 = vadd.f32 %v2400, %v2674
        %v2820 = vadd.f32 %v2402, %v2678
        %v2821 = vadd.f32 %v2513, %v2682
        %v2822 = vadd.f32 %v2515, %v2686
        %v2823 = vadd.f32 %v2406, %v2690
        %v2824 = vadd.f32 %v2408, %v2694
        %v2825 = vadd.f32 %v2519, %v2698
        %v2826 = vadd.f32 %v2521, %v2702
        %v2827 = vadd.f32 %v2410, %v2690
        %v2828 = vadd.f32 %v2412, %v2694
        %v2829 = vadd.f32 %v2523, %v2698
        %v2830 = vadd.f32 %v2525, %v2702
        %v2831 = vadd.f32 %v2416, %v2706
        %v2832 = vadd.f32 %v2418, %v2710
        %v2833 = vadd.f32 %v2529, %v2714
        %v2834 = vadd.f32 %v2531, %v2718
        %v2835 = vadd.f32 %v2420, %v2706
        %v2836 = vadd.f32 %v2422, %v2710
        %v2837 = vadd.f32 %v2533, %v2714
        %v2838 = vadd.f32 %v2535, %v2718
        %v2839 = vadd.f32 %v2426, %v2722
        %v2840 = vadd.f32 %v2428, %v2726
        %v2841 = vadd.f32 %v2539, %v2730
        %v2842 = vadd.f32 %v2541, %v2734
        %v2843 = vadd.f32 %v2430, %v2722
        %v2844 = vadd.f32 %v2432, %v2726
        %v2845 = vadd.f32 %v2543, %v2730
        %v2846 = vadd.f32 %v2545, %v2734
        %v2847 = vadd.f32 %v2436, %v2738
        %v2848 = vadd.f32 %v2438, %v2742
        %v2849 = vadd.f32 %v2549, %v2746
        %v2850 = vadd.f32 %v2551, %v2750
        %v2851 = vadd.f32 %v2440, %v2738
        %v2852 = vadd.f32 %v2442, %v2742
        %v2853 = vadd.f32 %v2553, %v2746
        %v2854 = vadd.f32 %v2555, %v2750
        %v2855 = vadd.f32 %v2446, %v2754
        %v2856 = vadd.f32 %v2448, %v2758
        %v2857 = vadd.f32 %v2559, %v2762
        %v2858 = vadd.f32 %v2561, %v2766
        %v2859 = vadd.f32 %v2450, %v2754
        %v2860 = vadd.f32 %v2452, %v2758
        %v2861 = vadd.f32 %v2563, %v2762
        %v2862 = vadd.f32 %v2565, %v2766
        %v2863 = vld [vmem:[#allocation17] sm:$0xf]
        %v2865 = vlaneseq
        %v2866 = vshrl.u32 %v2865, 7
        %v2867 = vsub.s32 0, %v2866
        %v2868 = vrot.slane %v2863, %v2867
        %v2869 = vlaneseq
        %v2870 = vshrl.u32 %v2869, 7
        %v2871 = vsub.s32 1, %v2870
        %v2872 = vrot.slane %v2863, %v2871
        %v2873 = vlaneseq
        %v2874 = vshrl.u32 %v2873, 7
        %v2875 = vsub.s32 2, %v2874
        %v2876 = vrot.slane %v2863, %v2875
        %v2877 = vlaneseq
        %v2878 = vshrl.u32 %v2877, 7
        %v2879 = vsub.s32 3, %v2878
        %v2880 = vrot.slane %v2863, %v2879
        %v2885 = vadd.f32 %v2799, %v2868
        %v2886 = vadd.f32 %v2800, %v2872
        %v2887 = vadd.f32 %v2801, %v2876
        %v2888 = vadd.f32 %v2802, %v2880
        %v2889 = vadd.f32 %v2803, %v2868
        %v2890 = vadd.f32 %v2804, %v2872
        %v2891 = vadd.f32 %v2805, %v2876
        %v2892 = vadd.f32 %v2806, %v2880
        %v2893 = vadd.f32 %v2807, %v2868
        %v2894 = vadd.f32 %v2808, %v2872
        %v2895 = vadd.f32 %v2809, %v2876
        %v2896 = vadd.f32 %v2810, %v2880
        %v2897 = vadd.f32 %v2811, %v2868
        %v2898 = vadd.f32 %v2812, %v2872
        %v2899 = vadd.f32 %v2813, %v2876
        %v2900 = vadd.f32 %v2814, %v2880
        %v2901 = vadd.f32 %v2815, %v2868
        %v2902 = vadd.f32 %v2816, %v2872
        %v2903 = vadd.f32 %v2817, %v2876
        %v2904 = vadd.f32 %v2818, %v2880
        %v2905 = vadd.f32 %v2819, %v2868
        %v2906 = vadd.f32 %v2820, %v2872
        %v2907 = vadd.f32 %v2821, %v2876
        %v2908 = vadd.f32 %v2822, %v2880
        %v2909 = vadd.f32 %v2823, %v2868
        %v2910 = vadd.f32 %v2824, %v2872
        %v2911 = vadd.f32 %v2825, %v2876
        %v2912 = vadd.f32 %v2826, %v2880
        %v2913 = vadd.f32 %v2827, %v2868
        %v2914 = vadd.f32 %v2828, %v2872
        %v2915 = vadd.f32 %v2829, %v2876
        %v2916 = vadd.f32 %v2830, %v2880
        %v2917 = vadd.f32 %v2831, %v2868
        %v2918 = vadd.f32 %v2832, %v2872
        %v2919 = vadd.f32 %v2833, %v2876
        %v2920 = vadd.f32 %v2834, %v2880
        %v2921 = vadd.f32 %v2835, %v2868
        %v2922 = vadd.f32 %v2836, %v2872
        %v2923 = vadd.f32 %v2837, %v2876
        %v2924 = vadd.f32 %v2838, %v2880
        %v2925 = vadd.f32 %v2839, %v2868
        %v2926 = vadd.f32 %v2840, %v2872
        %v2927 = vadd.f32 %v2841, %v2876
        %v2928 = vadd.f32 %v2842, %v2880
        %v2929 = vadd.f32 %v2843, %v2868
        %v2930 = vadd.f32 %v2844, %v2872
        %v2931 = vadd.f32 %v2845, %v2876
        %v2932 = vadd.f32 %v2846, %v2880
        %v2933 = vadd.f32 %v2847, %v2868
        %v2934 = vadd.f32 %v2848, %v2872
        %v2935 = vadd.f32 %v2849, %v2876
        %v2936 = vadd.f32 %v2850, %v2880
        %v2937 = vadd.f32 %v2851, %v2868
        %v2938 = vadd.f32 %v2852, %v2872
        %v2939 = vadd.f32 %v2853, %v2876
        %v2940 = vadd.f32 %v2854, %v2880
        %v2941 = vadd.f32 %v2855, %v2868
        %v2942 = vadd.f32 %v2856, %v2872
        %v2943 = vadd.f32 %v2857, %v2876
        %v2944 = vadd.f32 %v2858, %v2880
        %v2945 = vadd.f32 %v2859, %v2868
        %v2946 = vadd.f32 %v2860, %v2872
        %v2947 = vadd.f32 %v2861, %v2876
        %v2948 = vadd.f32 %v2862, %v2880
        %v2949 = vld [vmem:[#allocation19] sm:$0xf]
        %v2951 = vlaneseq
        %v2952 = vshrl.u32 %v2951, 7
        %v2953 = vsub.s32 0, %v2952
        %v2954 = vrot.slane %v2949, %v2953
        %v2955 = vlaneseq
        %v2956 = vshrl.u32 %v2955, 7
        %v2957 = vsub.s32 1, %v2956
        %v2958 = vrot.slane %v2949, %v2957
        %v2959 = vlaneseq
        %v2960 = vshrl.u32 %v2959, 7
        %v2961 = vsub.s32 2, %v2960
        %v2962 = vrot.slane %v2949, %v2961
        %v2963 = vlaneseq
        %v2964 = vshrl.u32 %v2963, 7
        %v2965 = vsub.s32 3, %v2964
        %v2966 = vrot.slane %v2949, %v2965
        %v2971 = vmul.f32 %v2885, %v2954
        %v2972 = vmul.f32 %v2886, %v2958
        %v2973 = vmul.f32 %v2887, %v2962
        %v2974 = vmul.f32 %v2888, %v2966
        %v2975 = vmul.f32 %v2889, %v2954
        %v2976 = vmul.f32 %v2890, %v2958
        %v2977 = vmul.f32 %v2891, %v2962
        %v2978 = vmul.f32 %v2892, %v2966
        %v2979 = vmul.f32 %v2893, %v2954
        %v2980 = vmul.f32 %v2894, %v2958
        %v2981 = vmul.f32 %v2895, %v2962
        %v2982 = vmul.f32 %v2896, %v2966
        %v2983 = vmul.f32 %v2897, %v2954
        %v2984 = vmul.f32 %v2898, %v2958
        %v2985 = vmul.f32 %v2899, %v2962
        %v2986 = vmul.f32 %v2900, %v2966
        %v2987 = vmul.f32 %v2901, %v2954
        %v2988 = vmul.f32 %v2902, %v2958
        %v2989 = vmul.f32 %v2903, %v2962
        %v2990 = vmul.f32 %v2904, %v2966
        %v2991 = vmul.f32 %v2905, %v2954
        %v2992 = vmul.f32 %v2906, %v2958
        %v2993 = vmul.f32 %v2907, %v2962
        %v2994 = vmul.f32 %v2908, %v2966
        %v2995 = vmul.f32 %v2909, %v2954
        %v2996 = vmul.f32 %v2910, %v2958
        %v2997 = vmul.f32 %v2911, %v2962
        %v2998 = vmul.f32 %v2912, %v2966
        %v2999 = vmul.f32 %v2913, %v2954
        %v3000 = vmul.f32 %v2914, %v2958
        %v3001 = vmul.f32 %v2915, %v2962
        %v3002 = vmul.f32 %v2916, %v2966
        %v3003 = vmul.f32 %v2917, %v2954
        %v3004 = vmul.f32 %v2918, %v2958
        %v3005 = vmul.f32 %v2919, %v2962
        %v3006 = vmul.f32 %v2920, %v2966
        %v3007 = vmul.f32 %v2921, %v2954
        %v3008 = vmul.f32 %v2922, %v2958
        %v3009 = vmul.f32 %v2923, %v2962
        %v3010 = vmul.f32 %v2924, %v2966
        %v3011 = vmul.f32 %v2925, %v2954
        %v3012 = vmul.f32 %v2926, %v2958
        %v3013 = vmul.f32 %v2927, %v2962
        %v3014 = vmul.f32 %v2928, %v2966
        %v3015 = vmul.f32 %v2929, %v2954
        %v3016 = vmul.f32 %v2930, %v2958
        %v3017 = vmul.f32 %v2931, %v2962
        %v3018 = vmul.f32 %v2932, %v2966
        %v3019 = vmul.f32 %v2933, %v2954
        %v3020 = vmul.f32 %v2934, %v2958
        %v3021 = vmul.f32 %v2935, %v2962
        %v3022 = vmul.f32 %v2936, %v2966
        %v3023 = vmul.f32 %v2937, %v2954
        %v3024 = vmul.f32 %v2938, %v2958
        %v3025 = vmul.f32 %v2939, %v2962
        %v3026 = vmul.f32 %v2940, %v2966
        %v3027 = vmul.f32 %v2941, %v2954
        %v3028 = vmul.f32 %v2942, %v2958
        %v3029 = vmul.f32 %v2943, %v2962
        %v3030 = vmul.f32 %v2944, %v2966
        %v3031 = vmul.f32 %v2945, %v2954
        %v3032 = vmul.f32 %v2946, %v2958
        %v3033 = vmul.f32 %v2947, %v2962
        %v3034 = vmul.f32 %v2948, %v2966
        %v3035 = vld [vmem:[#allocation20] sm:$0xf]
        %v3037 = vlaneseq
        %v3038 = vshrl.u32 %v3037, 7
        %v3039 = vsub.s32 0, %v3038
        %v3040 = vrot.slane %v3035, %v3039
        %v3041 = vlaneseq
        %v3042 = vshrl.u32 %v3041, 7
        %v3043 = vsub.s32 1, %v3042
        %v3044 = vrot.slane %v3035, %v3043
        %v3045 = vlaneseq
        %v3046 = vshrl.u32 %v3045, 7
        %v3047 = vsub.s32 2, %v3046
        %v3048 = vrot.slane %v3035, %v3047
        %v3049 = vlaneseq
        %v3050 = vshrl.u32 %v3049, 7
        %v3051 = vsub.s32 3, %v3050
        %v3052 = vrot.slane %v3035, %v3051
        %v3057 = vadd.f32 %v2971, %v3040
        %v3058 = vadd.f32 %v2972, %v3044
        %v3059 = vadd.f32 %v2973, %v3048
        %v3060 = vadd.f32 %v2974, %v3052
        %v3061 = vadd.f32 %v2975, %v3040
        %v3062 = vadd.f32 %v2976, %v3044
        %v3063 = vadd.f32 %v2977, %v3048
        %v3064 = vadd.f32 %v2978, %v3052
        %v3065 = vadd.f32 %v2979, %v3040
        %v3066 = vadd.f32 %v2980, %v3044
        %v3067 = vadd.f32 %v2981, %v3048
        %v3068 = vadd.f32 %v2982, %v3052
        %v3069 = vadd.f32 %v2983, %v3040
        %v3070 = vadd.f32 %v2984, %v3044
        %v3071 = vadd.f32 %v2985, %v3048
        %v3072 = vadd.f32 %v2986, %v3052
        %v3073 = vadd.f32 %v2987, %v3040
        %v3074 = vadd.f32 %v2988, %v3044
        %v3075 = vadd.f32 %v2989, %v3048
        %v3076 = vadd.f32 %v2990, %v3052
        %v3077 = vadd.f32 %v2991, %v3040
        %v3078 = vadd.f32 %v2992, %v3044
        %v3079 = vadd.f32 %v2993, %v3048
        %v3080 = vadd.f32 %v2994, %v3052
        %v3081 = vadd.f32 %v2995, %v3040
        %v3082 = vadd.f32 %v2996, %v3044
        %v3083 = vadd.f32 %v2997, %v3048
        %v3084 = vadd.f32 %v2998, %v3052
        %v3085 = vadd.f32 %v2999, %v3040
        %v3086 = vadd.f32 %v3000, %v3044
        %v3087 = vadd.f32 %v3001, %v3048
        %v3088 = vadd.f32 %v3002, %v3052
        %v3089 = vadd.f32 %v3003, %v3040
        %v3090 = vadd.f32 %v3004, %v3044
        %v3091 = vadd.f32 %v3005, %v3048
        %v3092 = vadd.f32 %v3006, %v3052
        %v3093 = vadd.f32 %v3007, %v3040
        %v3094 = vadd.f32 %v3008, %v3044
        %v3095 = vadd.f32 %v3009, %v3048
        %v3096 = vadd.f32 %v3010, %v3052
        %v3097 = vadd.f32 %v3011, %v3040
        %v3098 = vadd.f32 %v3012, %v3044
        %v3099 = vadd.f32 %v3013, %v3048
        %v3100 = vadd.f32 %v3014, %v3052
        %v3101 = vadd.f32 %v3015, %v3040
        %v3102 = vadd.f32 %v3016, %v3044
        %v3103 = vadd.f32 %v3017, %v3048
        %v3104 = vadd.f32 %v3018, %v3052
        %v3105 = vadd.f32 %v3019, %v3040
        %v3106 = vadd.f32 %v3020, %v3044
        %v3107 = vadd.f32 %v3021, %v3048
        %v3108 = vadd.f32 %v3022, %v3052
        %v3109 = vadd.f32 %v3023, %v3040
        %v3110 = vadd.f32 %v3024, %v3044
        %v3111 = vadd.f32 %v3025, %v3048
        %v3112 = vadd.f32 %v3026, %v3052
        %v3113 = vadd.f32 %v3027, %v3040
        %v3114 = vadd.f32 %v3028, %v3044
        %v3115 = vadd.f32 %v3029, %v3048
        %v3116 = vadd.f32 %v3030, %v3052
        %v3117 = vadd.f32 %v3031, %v3040
        %v3118 = vadd.f32 %v3032, %v3044
        %v3119 = vadd.f32 %v3033, %v3048
        %v3120 = vadd.f32 %v3034, %v3052
        %v3121 = vmax.f32 %v3057, 0.0
        %v3122 = vmax.f32 %v3058, 0.0
        %v3123 = vmax.f32 %v3059, 0.0
        %v3124 = vmax.f32 %v3060, 0.0
        %v3125 = vmax.f32 %v3061, 0.0
        %v3126 = vmax.f32 %v3062, 0.0
        %v3127 = vmax.f32 %v3063, 0.0
        %v3128 = vmax.f32 %v3064, 0.0
        %v3129 = vmax.f32 %v3065, 0.0
        %v3130 = vmax.f32 %v3066, 0.0
        %v3131 = vmax.f32 %v3067, 0.0
        %v3132 = vmax.f32 %v3068, 0.0
        %v3133 = vmax.f32 %v3069, 0.0
        %v3134 = vmax.f32 %v3070, 0.0
        %v3135 = vmax.f32 %v3071, 0.0
        %v3136 = vmax.f32 %v3072, 0.0
        %v3137 = vmax.f32 %v3073, 0.0
        %v3138 = vmax.f32 %v3074, 0.0
        %v3139 = vmax.f32 %v3075, 0.0
        %v3140 = vmax.f32 %v3076, 0.0
        %v3141 = vmax.f32 %v3077, 0.0
        %v3142 = vmax.f32 %v3078, 0.0
        %v3143 = vmax.f32 %v3079, 0.0
        %v3144 = vmax.f32 %v3080, 0.0
        %v3145 = vmax.f32 %v3081, 0.0
        %v3146 = vmax.f32 %v3082, 0.0
        %v3147 = vmax.f32 %v3083, 0.0
        %v3148 = vmax.f32 %v3084, 0.0
        %v3149 = vmax.f32 %v3085, 0.0
        %v3150 = vmax.f32 %v3086, 0.0
        %v3151 = vmax.f32 %v3087, 0.0
        %v3152 = vmax.f32 %v3088, 0.0
        %v3153 = vmax.f32 %v3089, 0.0
        %v3154 = vmax.f32 %v3090, 0.0
        %v3155 = vmax.f32 %v3091, 0.0
        %v3156 = vmax.f32 %v3092, 0.0
        %v3157 = vmax.f32 %v3093, 0.0
        %v3158 = vmax.f32 %v3094, 0.0
        %v3159 = vmax.f32 %v3095, 0.0
        %v3160 = vmax.f32 %v3096, 0.0
        %v3161 = vmax.f32 %v3097, 0.0
        %v3162 = vmax.f32 %v3098, 0.0
        %v3163 = vmax.f32 %v3099, 0.0
        %v3164 = vmax.f32 %v3100, 0.0
        %v3165 = vmax.f32 %v3101, 0.0
        %v3166 = vmax.f32 %v3102, 0.0
        %v3167 = vmax.f32 %v3103, 0.0
        %v3168 = vmax.f32 %v3104, 0.0
        %v3169 = vmax.f32 %v3105, 0.0
        %v3170 = vmax.f32 %v3106, 0.0
        %v3171 = vmax.f32 %v3107, 0.0
        %v3172 = vmax.f32 %v3108, 0.0
        %v3173 = vmax.f32 %v3109, 0.0
        %v3174 = vmax.f32 %v3110, 0.0
        %v3175 = vmax.f32 %v3111, 0.0
        %v3176 = vmax.f32 %v3112, 0.0
        %v3177 = vmax.f32 %v3113, 0.0
        %v3178 = vmax.f32 %v3114, 0.0
        %v3179 = vmax.f32 %v3115, 0.0
        %v3180 = vmax.f32 %v3116, 0.0
        %v3181 = vmax.f32 %v3117, 0.0
        %v3182 = vmax.f32 %v3118, 0.0
        %v3183 = vmax.f32 %v3119, 0.0
        %v3184 = vmax.f32 %v3120, 0.0
        %v3185 = vpack.c.bf16 %v3125, %v3121
        %v3186 = vpack.c.bf16 %v3126, %v3122
        %v3187 = vpack.c.bf16 %v3127, %v3123
        %v3188 = vpack.c.bf16 %v3128, %v3124
        %v3189 = vpack.c.bf16 %v3133, %v3129
        %v3190 = vpack.c.bf16 %v3134, %v3130
        %v3191 = vpack.c.bf16 %v3135, %v3131
        %v3192 = vpack.c.bf16 %v3136, %v3132
        %v3193 = vpack.c.bf16 %v3141, %v3137
        %v3194 = vpack.c.bf16 %v3142, %v3138
        %v3195 = vpack.c.bf16 %v3143, %v3139
        %v3196 = vpack.c.bf16 %v3144, %v3140
        %v3197 = vpack.c.bf16 %v3149, %v3145
        %v3198 = vpack.c.bf16 %v3150, %v3146
        %v3199 = vpack.c.bf16 %v3151, %v3147
        %v3200 = vpack.c.bf16 %v3152, %v3148
        %v3201 = vpack.c.bf16 %v3157, %v3153
        %v3202 = vpack.c.bf16 %v3158, %v3154
        %v3203 = vpack.c.bf16 %v3159, %v3155
        %v3204 = vpack.c.bf16 %v3160, %v3156
        %v3205 = vpack.c.bf16 %v3165, %v3161
        %v3206 = vpack.c.bf16 %v3166, %v3162
        %v3207 = vpack.c.bf16 %v3167, %v3163
        %v3208 = vpack.c.bf16 %v3168, %v3164
        %v3209 = vpack.c.bf16 %v3173, %v3169
        %v3210 = vpack.c.bf16 %v3174, %v3170
        %v3211 = vpack.c.bf16 %v3175, %v3171
        %v3212 = vpack.c.bf16 %v3176, %v3172
        %v3213 = vpack.c.bf16 %v3181, %v3177
        %v3214 = vpack.c.bf16 %v3182, %v3178
        %v3215 = vpack.c.bf16 %v3183, %v3179
        %v3216 = vpack.c.bf16 %v3184, %v3180
        %v3217 = vld [vmem:[#allocation22] sm:$0xf]
        %v3218 = vld [vmem:[#allocation22 + $0x4] sm:$0xf]
        %v3219 = vld [vmem:[#allocation22 + $0x8] sm:$0xf]
        %v3220 = vld [vmem:[#allocation22 + $0xc] sm:$0xf]
        %v3221 = vld [vmem:[#allocation22 + $0x10] sm:$0xf]
        %v3222 = vld [vmem:[#allocation22 + $0x14] sm:$0xf]
        %v3223 = vld [vmem:[#allocation22 + $0x18] sm:$0xf]
        %v3224 = vld [vmem:[#allocation22 + $0x1c] sm:$0xf]
        %v3225 = vld [vmem:[#allocation22 + $0x20] sm:$0xf]
        %v3226 = vld [vmem:[#allocation22 + $0x24] sm:$0xf]
        %v3227 = vld [vmem:[#allocation22 + $0x28] sm:$0xf]
        %v3228 = vld [vmem:[#allocation22 + $0x2c] sm:$0xf]
        %v3229 = vld [vmem:[#allocation22 + $0x30] sm:$0xf]
        %v3230 = vld [vmem:[#allocation22 + $0x34] sm:$0xf]
        %v3231 = vld [vmem:[#allocation22 + $0x38] sm:$0xf]
        %v3232 = vld [vmem:[#allocation22 + $0x3c] sm:$0xf]
        %v3233 = vld [vmem:[#allocation22 + $0x40] sm:$0xf]
        %v3234 = vld [vmem:[#allocation22 + $0x44] sm:$0xf]
        %v3235 = vld [vmem:[#allocation22 + $0x48] sm:$0xf]
        %v3236 = vld [vmem:[#allocation22 + $0x4c] sm:$0xf]
        %v3237 = vld [vmem:[#allocation22 + $0x50] sm:$0xf]
        %v3238 = vld [vmem:[#allocation22 + $0x54] sm:$0xf]
        %v3239 = vld [vmem:[#allocation22 + $0x58] sm:$0xf]
        %v3240 = vld [vmem:[#allocation22 + $0x5c] sm:$0xf]
        %v3241 = vld [vmem:[#allocation22 + $0x60] sm:$0xf]
        %v3242 = vld [vmem:[#allocation22 + $0x64] sm:$0xf]
        %v3243 = vld [vmem:[#allocation22 + $0x68] sm:$0xf]
        %v3244 = vld [vmem:[#allocation22 + $0x6c] sm:$0xf]
        %v3245 = vld [vmem:[#allocation22 + $0x70] sm:$0xf]
        %v3246 = vld [vmem:[#allocation22 + $0x74] sm:$0xf]
        %v3247 = vld [vmem:[#allocation22 + $0x78] sm:$0xf]
        %v3248 = vld [vmem:[#allocation22 + $0x7c] sm:$0xf]
        %v3249 = vld [vmem:[#allocation22 + $0x80] sm:$0xf]
        %v3250 = vld [vmem:[#allocation22 + $0x84] sm:$0xf]
        %v3251 = vld [vmem:[#allocation22 + $0x88] sm:$0xf]
        %v3252 = vld [vmem:[#allocation22 + $0x8c] sm:$0xf]
        %v3253 = vld [vmem:[#allocation22 + $0x90] sm:$0xf]
        %v3254 = vld [vmem:[#allocation22 + $0x94] sm:$0xf]
        %v3255 = vld [vmem:[#allocation22 + $0x98] sm:$0xf]
        %v3256 = vld [vmem:[#allocation22 + $0x9c] sm:$0xf]
        %v3257 = vld [vmem:[#allocation22 + $0xa0] sm:$0xf]
        %v3258 = vld [vmem:[#allocation22 + $0xa4] sm:$0xf]
        %v3259 = vld [vmem:[#allocation22 + $0xa8] sm:$0xf]
        %v3260 = vld [vmem:[#allocation22 + $0xac] sm:$0xf]
        %v3261 = vld [vmem:[#allocation22 + $0xb0] sm:$0xf]
        %v3262 = vld [vmem:[#allocation22 + $0xb4] sm:$0xf]
        %v3263 = vld [vmem:[#allocation22 + $0xb8] sm:$0xf]
        %v3264 = vld [vmem:[#allocation22 + $0xbc] sm:$0xf]
        %v3265 = vld [vmem:[#allocation22 + $0xc0] sm:$0xf]
        %v3266 = vld [vmem:[#allocation22 + $0xc4] sm:$0xf]
        %v3267 = vld [vmem:[#allocation22 + $0xc8] sm:$0xf]
        %v3268 = vld [vmem:[#allocation22 + $0xcc] sm:$0xf]
        %v3269 = vld [vmem:[#allocation22 + $0xd0] sm:$0xf]
        %v3270 = vld [vmem:[#allocation22 + $0xd4] sm:$0xf]
        %v3271 = vld [vmem:[#allocation22 + $0xd8] sm:$0xf]
        %v3272 = vld [vmem:[#allocation22 + $0xdc] sm:$0xf]
        %v3273 = vld [vmem:[#allocation22 + $0xe0] sm:$0xf]
        %v3274 = vld [vmem:[#allocation22 + $0xe4] sm:$0xf]
        %v3275 = vld [vmem:[#allocation22 + $0xe8] sm:$0xf]
        %v3276 = vld [vmem:[#allocation22 + $0xec] sm:$0xf]
        %v3277 = vld [vmem:[#allocation22 + $0xf0] sm:$0xf]
        %v3278 = vld [vmem:[#allocation22 + $0xf4] sm:$0xf]
        %v3279 = vld [vmem:[#allocation22 + $0xf8] sm:$0xf]
        %v3280 = vld [vmem:[#allocation22 + $0xfc] sm:$0xf]
        %v3281 = vld [vmem:[#allocation23] sm:$0x1]
        %v3283 = vlaneseq
        %v3284 = vshrl.u32 %v3283, 7
        %v3285 = vsub.s32 0, %v3284
        %v3286 = vrot.slane %v3281, %v3285
        %v3352 = vunpack.c.l.b16 %v3217
        %v3353 = vunpack.c.l.b16 %v3218
        %v3354 = vunpack.c.l.b16 %v3219
        %v3355 = vunpack.c.l.b16 %v3220
        %v3356 = vunpack.c.l.b16 %v3221
        %v3357 = vunpack.c.l.b16 %v3222
        %v3358 = vunpack.c.l.b16 %v3223
        %v3359 = vunpack.c.l.b16 %v3224
        %v3360 = vunpack.c.l.b16 %v3225
        %v3361 = vunpack.c.l.b16 %v3226
        %v3362 = vunpack.c.l.b16 %v3227
        %v3363 = vunpack.c.l.b16 %v3228
        %v3364 = vunpack.c.l.b16 %v3229
        %v3365 = vunpack.c.l.b16 %v3230
        %v3366 = vunpack.c.l.b16 %v3231
        %v3367 = vunpack.c.l.b16 %v3232
        %v3368 = vunpack.c.l.b16 %v3233
        %v3369 = vunpack.c.l.b16 %v3234
        %v3370 = vunpack.c.l.b16 %v3235
        %v3371 = vunpack.c.l.b16 %v3236
        %v3372 = vunpack.c.l.b16 %v3237
        %v3373 = vunpack.c.l.b16 %v3238
        %v3374 = vunpack.c.l.b16 %v3239
        %v3375 = vunpack.c.l.b16 %v3240
        %v3376 = vunpack.c.l.b16 %v3241
        %v3377 = vunpack.c.l.b16 %v3242
        %v3378 = vunpack.c.l.b16 %v3243
        %v3379 = vunpack.c.l.b16 %v3244
        %v3380 = vunpack.c.l.b16 %v3245
        %v3381 = vunpack.c.l.b16 %v3246
        %v3382 = vunpack.c.l.b16 %v3247
        %v3383 = vunpack.c.l.b16 %v3248
        %v3384 = vunpack.c.l.b16 %v3249
        %v3385 = vunpack.c.l.b16 %v3250
        %v3386 = vunpack.c.l.b16 %v3251
        %v3387 = vunpack.c.l.b16 %v3252
        %v3388 = vunpack.c.l.b16 %v3253
        %v3389 = vunpack.c.l.b16 %v3254
        %v3390 = vunpack.c.l.b16 %v3255
        %v3391 = vunpack.c.l.b16 %v3256
        %v3392 = vunpack.c.l.b16 %v3257
        %v3393 = vunpack.c.l.b16 %v3258
        %v3394 = vunpack.c.l.b16 %v3259
        %v3395 = vunpack.c.l.b16 %v3260
        %v3396 = vunpack.c.l.b16 %v3261
        %v3397 = vunpack.c.l.b16 %v3262
        %v3398 = vunpack.c.l.b16 %v3263
        %v3399 = vunpack.c.l.b16 %v3264
        %v3400 = vunpack.c.l.b16 %v3265
        %v3401 = vunpack.c.l.b16 %v3266
        %v3402 = vunpack.c.l.b16 %v3267
        %v3403 = vunpack.c.l.b16 %v3268
        %v3404 = vunpack.c.l.b16 %v3269
        %v3405 = vunpack.c.l.b16 %v3270
        %v3406 = vunpack.c.l.b16 %v3271
        %v3407 = vunpack.c.l.b16 %v3272
        %v3408 = vunpack.c.l.b16 %v3273
        %v3409 = vunpack.c.l.b16 %v3274
        %v3410 = vunpack.c.l.b16 %v3275
        %v3411 = vunpack.c.l.b16 %v3276
        %v3412 = vunpack.c.l.b16 %v3277
        %v3413 = vunpack.c.l.b16 %v3278
        %v3414 = vunpack.c.l.b16 %v3279
        %v3415 = vunpack.c.l.b16 %v3280
        %v3416 = vpack.c.b16 %v3353, %v3352
        %v3417 = vpack.c.b16 %v3355, %v3354
        %v3418 = vpack.c.b16 %v3357, %v3356
        %v3419 = vpack.c.b16 %v3359, %v3358
        %v3420 = vpack.c.b16 %v3361, %v3360
        %v3421 = vpack.c.b16 %v3363, %v3362
        %v3422 = vpack.c.b16 %v3365, %v3364
        %v3423 = vpack.c.b16 %v3367, %v3366
        %v3424 = vpack.c.b16 %v3369, %v3368
        %v3425 = vpack.c.b16 %v3371, %v3370
        %v3426 = vpack.c.b16 %v3373, %v3372
        %v3427 = vpack.c.b16 %v3375, %v3374
        %v3428 = vpack.c.b16 %v3377, %v3376
        %v3429 = vpack.c.b16 %v3379, %v3378
        %v3430 = vpack.c.b16 %v3381, %v3380
        %v3431 = vpack.c.b16 %v3383, %v3382
        %v3432 = vpack.c.b16 %v3385, %v3384
        %v3433 = vpack.c.b16 %v3387, %v3386
        %v3434 = vpack.c.b16 %v3389, %v3388
        %v3435 = vpack.c.b16 %v3391, %v3390
        %v3436 = vpack.c.b16 %v3393, %v3392
        %v3437 = vpack.c.b16 %v3395, %v3394
        %v3438 = vpack.c.b16 %v3397, %v3396
        %v3439 = vpack.c.b16 %v3399, %v3398
        %v3440 = vpack.c.b16 %v3401, %v3400
        %v3441 = vpack.c.b16 %v3403, %v3402
        %v3442 = vpack.c.b16 %v3405, %v3404
        %v3443 = vpack.c.b16 %v3407, %v3406
        %v3444 = vpack.c.b16 %v3409, %v3408
        %v3445 = vpack.c.b16 %v3411, %v3410
        %v3446 = vpack.c.b16 %v3413, %v3412
        %v3447 = vpack.c.b16 %v3415, %v3414
        %3480 = vmatprep.subr.bf16.mxu0 0
        %3481 = vmatpush1.bf16.msra.mxu0 %v3416
        %3482 = vmatprep.subr.bf16.mxu0 0
        %3483 = vmatpush1.bf16.msra.mxu0 %v3417
        %3484 = vmatprep.subr.bf16.mxu0 0
        %3485 = vmatpush1.bf16.msra.mxu0 %v3418
        %3486 = vmatprep.subr.bf16.mxu0 0
        %3487 = vmatpush1.bf16.msra.mxu0 %v3419
        %3488 = vmatprep.subr.bf16.mxu0 0
        %3489 = vmatpush1.bf16.msra.mxu0 %v3420
        %3490 = vmatprep.subr.bf16.mxu0 0
        %3491 = vmatpush1.bf16.msra.mxu0 %v3421
        %3492 = vmatprep.subr.bf16.mxu0 0
        %3493 = vmatpush1.bf16.msra.mxu0 %v3422
        %3494 = vmatprep.subr.bf16.mxu0 0
        %3495 = vmatpush1.bf16.msra.mxu0 %v3423
        %3496 = vmatprep.subr.bf16.mxu0 0
        %3497 = vmatpush1.bf16.msra.mxu0 %v3424
        %3498 = vmatprep.subr.bf16.mxu0 0
        %3499 = vmatpush1.bf16.msra.mxu0 %v3425
        %3500 = vmatprep.subr.bf16.mxu0 0
        %3501 = vmatpush1.bf16.msra.mxu0 %v3426
        %3502 = vmatprep.subr.bf16.mxu0 0
        %3503 = vmatpush1.bf16.msra.mxu0 %v3427
        %3504 = vmatprep.subr.bf16.mxu0 0
        %3505 = vmatpush1.bf16.msra.mxu0 %v3428
        %3506 = vmatprep.subr.bf16.mxu0 0
        %3507 = vmatpush1.bf16.msra.mxu0 %v3429
        %3508 = vmatprep.subr.bf16.mxu0 0
        %3509 = vmatpush1.bf16.msra.mxu0 %v3430
        %3510 = vmatprep.subr.bf16.mxu0 0
        %3511 = vmatpush1.bf16.msra.mxu0 %v3431
        %3512 = vmatprep.mubr.bf16.mxu0 %v3186
        %3513 = vmatmul.mubr.bf16.gmra.mrb[0].mxu0 %v3185
        %v3514 = vpop.f32.mrb[0].mxu0
        %v3515 = vadd.f32 %v3286, %v3514
        %v3516 = vpop.f32.mrb[0].mxu0
        %v3517 = vpop.f32.mrb[0].mxu0
        %v3518 = vadd.f32 %v3286, %v3517
        %v3519 = vpop.f32.mrb[0].mxu0
        %3520 = vmatprep.mubr.bf16.mxu0 %v3190
        %3521 = vmatmul.mubr.bf16.gmra.mrb[0].mxu0 %v3189
        %v3522 = vpop.f32.mrb[0].mxu0
        %v3523 = vadd.f32 %v3286, %v3522
        %v3524 = vpop.f32.mrb[0].mxu0
        %v3525 = vpop.f32.mrb[0].mxu0
        %v3526 = vadd.f32 %v3286, %v3525
        %v3527 = vpop.f32.mrb[0].mxu0
        %3528 = vmatprep.mubr.bf16.mxu0 %v3194
        %3529 = vmatmul.mubr.bf16.gmra.mrb[0].mxu0 %v3193
        %v3530 = vpop.f32.mrb[0].mxu0
        %v3531 = vadd.f32 %v3286, %v3530
        %v3532 = vpop.f32.mrb[0].mxu0
        %v3533 = vpop.f32.mrb[0].mxu0
        %v3534 = vadd.f32 %v3286, %v3533
        %v3535 = vpop.f32.mrb[0].mxu0
        %3536 = vmatprep.mubr.bf16.mxu0 %v3198
        %3537 = vmatmul.mubr.bf16.gmra.mrb[0].mxu0 %v3197
        %v3538 = vpop.f32.mrb[0].mxu0
        %v3539 = vadd.f32 %v3286, %v3538
        %v3540 = vpop.f32.mrb[0].mxu0
        %v3541 = vpop.f32.mrb[0].mxu0
        %v3542 = vadd.f32 %v3286, %v3541
        %v3543 = vpop.f32.mrb[0].mxu0
        %3544 = vmatprep.mubr.bf16.mxu0 %v3202
        %3545 = vmatmul.mubr.bf16.gmra.mrb[0].mxu0 %v3201
        %v3546 = vpop.f32.mrb[0].mxu0
        %v3547 = vadd.f32 %v3286, %v3546
        %v3548 = vpop.f32.mrb[0].mxu0
        %v3549 = vpop.f32.mrb[0].mxu0
        %v3550 = vadd.f32 %v3286, %v3549
        %v3551 = vpop.f32.mrb[0].mxu0
        %3552 = vmatprep.mubr.bf16.mxu0 %v3206
        %3553 = vmatmul.mubr.bf16.gmra.mrb[0].mxu0 %v3205
        %v3554 = vpop.f32.mrb[0].mxu0
        %v3555 = vadd.f32 %v3286, %v3554
        %v3556 = vpop.f32.mrb[0].mxu0
        %v3557 = vpop.f32.mrb[0].mxu0
        %v3558 = vadd.f32 %v3286, %v3557
        %v3559 = vpop.f32.mrb[0].mxu0
        %3560 = vmatprep.mubr.bf16.mxu0 %v3210
        %3561 = vmatmul.mubr.bf16.gmra.mrb[0].mxu0 %v3209
        %v3562 = vpop.f32.mrb[0].mxu0
        %v3563 = vadd.f32 %v3286, %v3562
        %v3564 = vpop.f32.mrb[0].mxu0
        %v3565 = vpop.f32.mrb[0].mxu0
        %v3566 = vadd.f32 %v3286, %v3565
        %v3567 = vpop.f32.mrb[0].mxu0
        %3568 = vmatprep.mubr.bf16.mxu0 %v3214
        %3569 = vmatmul.mubr.bf16.gmra.mrb[0].mxu0 %v3213
        %v3570 = vpop.f32.mrb[0].mxu0
        %v3571 = vadd.f32 %v3286, %v3570
        %v3572 = vpop.f32.mrb[0].mxu0
        %v3573 = vpop.f32.mrb[0].mxu0
        %v3574 = vadd.f32 %v3286, %v3573
        %v3575 = vpop.f32.mrb[0].mxu0
        %3576 = vdwg.mxu0
        %3577 = vmatprep.subr.bf16.mxu0 0
        %3578 = vmatpush1.bf16.msra.mxu0 %v3432
        %3579 = vmatprep.subr.bf16.mxu0 0
        %3580 = vmatpush1.bf16.msra.mxu0 %v3433
        %3581 = vmatprep.subr.bf16.mxu0 0
        %3582 = vmatpush1.bf16.msra.mxu0 %v3434
        %3583 = vmatprep.subr.bf16.mxu0 0
        %3584 = vmatpush1.bf16.msra.mxu0 %v3435
        %3585 = vmatprep.subr.bf16.mxu0 0
        %3586 = vmatpush1.bf16.msra.mxu0 %v3436
        %3587 = vmatprep.subr.bf16.mxu0 0
        %3588 = vmatpush1.bf16.msra.mxu0 %v3437
        %3589 = vmatprep.subr.bf16.mxu0 0
        %3590 = vmatpush1.bf16.msra.mxu0 %v3438
        %3591 = vmatprep.subr.bf16.mxu0 0
        %3592 = vmatpush1.bf16.msra.mxu0 %v3439
        %3593 = vmatprep.subr.bf16.mxu0 0
        %3594 = vmatpush1.bf16.msra.mxu0 %v3440
        %3595 = vmatprep.subr.bf16.mxu0 0
        %3596 = vmatpush1.bf16.msra.mxu0 %v3441
        %3597 = vmatprep.subr.bf16.mxu0 0
        %3598 = vmatpush1.bf16.msra.mxu0 %v3442
        %3599 = vmatprep.subr.bf16.mxu0 0
        %3600 = vmatpush1.bf16.msra.mxu0 %v3443
        %3601 = vmatprep.subr.bf16.mxu0 0
        %3602 = vmatpush1.bf16.msra.mxu0 %v3444
        %3603 = vmatprep.subr.bf16.mxu0 0
        %3604 = vmatpush1.bf16.msra.mxu0 %v3445
        %3605 = vmatprep.subr.bf16.mxu0 0
        %3606 = vmatpush1.bf16.msra.mxu0 %v3446
        %3607 = vmatprep.subr.bf16.mxu0 0
        %3608 = vmatpush1.bf16.msra.mxu0 %v3447
        %3609 = vmatprep.mubr.bf16.mxu0 %v3188
        %3610 = vmatmul.mubr.bf16.gmra.mrb[0].mxu0 %v3187
        %v3611 = vpop.f32.mrb[0].mxu0
        %v3612 = vadd.f32 %v3515, %v3611
        %v3613 = vpop.f32.mrb[0].mxu0
        %v3614 = vpop.f32.mrb[0].mxu0
        %v3615 = vadd.f32 %v3518, %v3614
        %v3616 = vpop.f32.mrb[0].mxu0
        %3617 = vmatprep.mubr.bf16.mxu0 %v3192
        %3618 = vmatmul.mubr.bf16.gmra.mrb[0].mxu0 %v3191
        %v3619 = vpop.f32.mrb[0].mxu0
        %v3620 = vadd.f32 %v3523, %v3619
        %v3621 = vpop.f32.mrb[0].mxu0
        %v3622 = vpop.f32.mrb[0].mxu0
        %v3623 = vadd.f32 %v3526, %v3622
        %v3624 = vpop.f32.mrb[0].mxu0
        %3625 = vmatprep.mubr.bf16.mxu0 %v3196
        %3626 = vmatmul.mubr.bf16.gmra.mrb[0].mxu0 %v3195
        %v3627 = vpop.f32.mrb[0].mxu0
        %v3628 = vadd.f32 %v3531, %v3627
        %v3629 = vpop.f32.mrb[0].mxu0
        %v3630 = vpop.f32.mrb[0].mxu0
        %v3631 = vadd.f32 %v3534, %v3630
        %v3632 = vpop.f32.mrb[0].mxu0
        %3633 = vmatprep.mubr.bf16.mxu0 %v3200
        %3634 = vmatmul.mubr.bf16.gmra.mrb[0].mxu0 %v3199
        %v3635 = vpop.f32.mrb[0].mxu0
        %v3636 = vadd.f32 %v3539, %v3635
        %v3637 = vpop.f32.mrb[0].mxu0
        %v3638 = vpop.f32.mrb[0].mxu0
        %v3639 = vadd.f32 %v3542, %v3638
        %v3640 = vpop.f32.mrb[0].mxu0
        %3641 = vmatprep.mubr.bf16.mxu0 %v3204
        %3642 = vmatmul.mubr.bf16.gmra.mrb[0].mxu0 %v3203
        %v3643 = vpop.f32.mrb[0].mxu0
        %v3644 = vadd.f32 %v3547, %v3643
        %v3645 = vpop.f32.mrb[0].mxu0
        %v3646 = vpop.f32.mrb[0].mxu0
        %v3647 = vadd.f32 %v3550, %v3646
        %v3648 = vpop.f32.mrb[0].mxu0
        %3649 = vmatprep.mubr.bf16.mxu0 %v3208
        %3650 = vmatmul.mubr.bf16.gmra.mrb[0].mxu0 %v3207
        %v3651 = vpop.f32.mrb[0].mxu0
        %v3652 = vadd.f32 %v3555, %v3651
        %v3653 = vpop.f32.mrb[0].mxu0
        %v3654 = vpop.f32.mrb[0].mxu0
        %v3655 = vadd.f32 %v3558, %v3654
        %v3656 = vpop.f32.mrb[0].mxu0
        %3657 = vmatprep.mubr.bf16.mxu0 %v3212
        %3658 = vmatmul.mubr.bf16.gmra.mrb[0].mxu0 %v3211
        %v3659 = vpop.f32.mrb[0].mxu0
        %v3660 = vadd.f32 %v3563, %v3659
        %v3661 = vpop.f32.mrb[0].mxu0
        %v3662 = vpop.f32.mrb[0].mxu0
        %v3663 = vadd.f32 %v3566, %v3662
        %v3664 = vpop.f32.mrb[0].mxu0
        %3665 = vmatprep.mubr.bf16.mxu0 %v3216
        %3666 = vmatmul.mubr.bf16.gmra.mrb[0].mxu0 %v3215
        %v3667 = vpop.f32.mrb[0].mxu0
        %v3668 = vadd.f32 %v3571, %v3667
        %v3669 = vpop.f32.mrb[0].mxu0
        %v3670 = vpop.f32.mrb[0].mxu0
        %v3671 = vadd.f32 %v3574, %v3670
        %v3672 = vpop.f32.mrb[0].mxu0
        %3673 = vdwg.mxu0
        %v3674 = vmax.f32 %v3612, %v3615
        %v3675 = vrot.slane %v3674, 4
        %v3676 = vmax.f32 %v3674, %v3675
        %v3677 = vrot.slane %v3676, 2
        %v3678 = vmax.f32 %v3676, %v3677
        %v3679 = vrot.slane %v3678, 1
        %v3680 = vmax.f32 %v3678, %v3679
        %v3681 = vmax.f32 %v3620, %v3623
        %v3682 = vrot.slane %v3681, 4
        %v3683 = vmax.f32 %v3681, %v3682
        %v3684 = vrot.slane %v3683, 2
        %v3685 = vmax.f32 %v3683, %v3684
        %v3686 = vrot.slane %v3685, 1
        %v3687 = vmax.f32 %v3685, %v3686
        %v3688 = vmax.f32 %v3628, %v3631
        %v3689 = vrot.slane %v3688, 4
        %v3690 = vmax.f32 %v3688, %v3689
        %v3691 = vrot.slane %v3690, 2
        %v3692 = vmax.f32 %v3690, %v3691
        %v3693 = vrot.slane %v3692, 1
        %v3694 = vmax.f32 %v3692, %v3693
        %v3695 = vmax.f32 %v3636, %v3639
        %v3696 = vrot.slane %v3695, 4
        %v3697 = vmax.f32 %v3695, %v3696
        %v3698 = vrot.slane %v3697, 2
        %v3699 = vmax.f32 %v3697, %v3698
        %v3700 = vrot.slane %v3699, 1
        %v3701 = vmax.f32 %v3699, %v3700
        %v3702 = vmax.f32 %v3644, %v3647
        %v3703 = vrot.slane %v3702, 4
        %v3704 = vmax.f32 %v3702, %v3703
        %v3705 = vrot.slane %v3704, 2
        %v3706 = vmax.f32 %v3704, %v3705
        %v3707 = vrot.slane %v3706, 1
        %v3708 = vmax.f32 %v3706, %v3707
        %v3709 = vmax.f32 %v3652, %v3655
        %v3710 = vrot.slane %v3709, 4
        %v3711 = vmax.f32 %v3709, %v3710
        %v3712 = vrot.slane %v3711, 2
        %v3713 = vmax.f32 %v3711, %v3712
        %v3714 = vrot.slane %v3713, 1
        %v3715 = vmax.f32 %v3713, %v3714
        %v3716 = vmax.f32 %v3660, %v3663
        %v3717 = vrot.slane %v3716, 4
        %v3718 = vmax.f32 %v3716, %v3717
        %v3719 = vrot.slane %v3718, 2
        %v3720 = vmax.f32 %v3718, %v3719
        %v3721 = vrot.slane %v3720, 1
        %v3722 = vmax.f32 %v3720, %v3721
        %v3723 = vmax.f32 %v3668, %v3671
        %v3724 = vrot.slane %v3723, 4
        %v3725 = vmax.f32 %v3723, %v3724
        %v3726 = vrot.slane %v3725, 2
        %v3727 = vmax.f32 %v3725, %v3726
        %v3728 = vrot.slane %v3727, 1
        %v3729 = vmax.f32 %v3727, %v3728
        %v3738 = vsel %vm1514, %v3687, %v3680
        %v3739 = vsel %vm1516, %v3694, %v3738
        %v3740 = vsel %vm1518, %v3701, %v3739
        %v3741 = vsel %vm1520, %v3708, %v3740
        %v3742 = vsel %vm1522, %v3715, %v3741
        %v3743 = vsel %vm1524, %v3722, %v3742
        %v3744 = vsel %vm1526, %v3729, %v3743
        %3746 = vst [vmem:[%s656] sm:$0xff] %v3744
        %s3747 = sand.u32 %s345, 1
        %s3748 = scalar_lea.sflag [#allocation4], %s3747
        %s3749 = sand.u32 %s345, 1
        %s3750 = smul.addr %s3749, 8
        %s3751 = scalar_lea.vmem [#allocation25], %s3750
        // Predicated region
        $region133: #{tpu_custom_call.1} parent=75 // pred_check
          %p3752 = pneg %p355
        $region134: #{tpu_custom_call.1} parent=75 // pred_check_branch
          %3754 = sbr.rel (%p3752) target = $region136
        $region135: #{tpu_custom_call.1} parent=75 // pred_region
          %s3756 = ssub.s32 128, 128
          %3757 = vsyncadd %s3748, %s3756
          %s3758 = smul.addr %s38, 128
          %s3759 = scalar_lea.hbm %s14, %s3758
          %s3761 = sshll.u32 %s3751, 4
          %s3762 = int_to_ptr.vmem [resolvable:$true] %s3761
          %3764 = dma.vmem_to_hbm [thread:$0]  %s3762, 128, %s3759, %s3748
        $region136: #{tpu_custom_call.1} parent=75 // pred_fallthru
          _
      $region76: #{tpu_custom_call.1} parent=5 // pred_fallthru
        _
      %p3765 = scmp.le.s32.totalorder 2, %s33
      // Predicated region
      $region137: #{tpu_custom_call.1} parent=5 // pred_check
        %p3766 = pneg %p3765
      $region138: #{tpu_custom_call.1} parent=5 // pred_check_branch
        %3768 = sbr.rel (%p3766) target = $region140
      $region139: #{tpu_custom_call.1} parent=5 // pred_region
        %s3769 = ssub.s32 %s33, 2
        // Predicated region
        $region141: #{tpu_custom_call.1} parent=139 // pred_check
          %p3770 = pneg %p361
        $region142: #{tpu_custom_call.1} parent=139 // pred_check_branch
          %3772 = sbr.rel (%p3770) target = $region144
        $region143: #{tpu_custom_call.1} parent=139 // pred_region
          %s3773 = sand.u32 %s346, 1
          %s3774 = scalar_lea.sflag [#allocation4], %s3773
          %s3775 = sand.u32 %s346, 1
          %s3776 = smul.addr %s3775, 8
          %s3777 = scalar_lea.vmem [#allocation25], %s3776
          %3778 = dma.done %s3774, 128
        $region144: #{tpu_custom_call.1} parent=139 // pred_fallthru
          _
      $region140: #{tpu_custom_call.1} parent=5 // pred_fallthru
        _
    $region6: #{tpu_custom_call.1} parent=1 // loop_footer
      %s37 = sadd.s32 1, %s33
    $region7: #{tpu_custom_call.1} parent=1 // loop_footer_branch
      %32 = sbr.rel target = $region3
    $region8: #{tpu_custom_call.1} parent=1 // loop_exit
      _
    %3779 = vsyncpa [#allocation3], 1
    %s3780 = scalar_lea.sflag [#allocation3], 1
    %3781 = vsyncpa %s3780, 1
    %3782 = vsyncpa [#allocation6], 1
    %3783 = vsyncpa [#allocation9], 1
    %3784 = vsyncpa [#allocation12], 1
    %3785 = vsyncpa [#allocation15], 1
    %3786 = vsyncpa [#allocation18], 1
    %3787 = vsyncpa [#allocation21], 1
    %3788 = vsyncpa [#allocation24], 1
    %3789 = vsyncpa [#allocation4], 1
    %s3790 = scalar_lea.sflag [#allocation4], 1
    %3791 = vsyncpa %s3790, 1

</llo_original>
